<compile_context>
chip_gen: v7x
topology: tpu7x:2x2x1
jax: 0.10.0
libtpu: 0.0.40
codegen_flags: <defaults>
</compile_context>

<pallas_src>
import functools

import jax
import jax.numpy as jnp
from jax.experimental import pallas as pl
from jax.experimental.pallas import tpu as pltpu


# -------------------- fused GCNEncoder kernel --------------------
def fused_gcn_kernel(x_ref, adj_ref, fcw_ref, fcb_ref,
                     lng_ref, lnb_ref,
                     wq_ref, bq_ref, wk_ref, bk_ref, wv_ref, bv_ref,
                     e0_ref, e1_ref, wo_ref, bo_ref,
                     wgo_ref, wgr_ref, o_ref, *, heads, dim_head):
    bt, n, f_in = x_ref.shape
    d = fcw_ref.shape[1]
    inner = heads * dim_head
    n_layers = wq_ref.shape[0]
    scale = dim_head ** -0.5

    # ---- FC: Linear + ReLU, graphs merged into rows for one wide MXU matmul ----
    x = jnp.maximum(
        jnp.dot(x_ref[...].reshape(bt * n, f_in), fcw_ref[...],
                preferred_element_type=jnp.float32) + fcb_ref[...],
        0.0)                                                    # (bt*n, d)

    adj = adj_ref[...]                                          # (bt, n, n), binary

    for l in range(n_layers):                                   # static unroll; x stays resident
        # ---- PreNorm (LayerNorm over the feature dim) ----
        mu = jnp.mean(x, axis=-1, keepdims=True)
        var = jnp.mean(jnp.square(x - mu), axis=-1, keepdims=True)
        xn = (x - mu) * jax.lax.rsqrt(var + 1e-5) * lng_ref[l] + lnb_ref[l]

        # ---- q / k / v projections (MXU), rows = bt*n ----
        q = jnp.dot(xn, wq_ref[l], preferred_element_type=jnp.float32) + bq_ref[l]
        k = jnp.dot(xn, wk_ref[l], preferred_element_type=jnp.float32) + bk_ref[l]
        v = jnp.dot(xn, wv_ref[l], preferred_element_type=jnp.float32) + bv_ref[l]
        q3 = q.reshape(bt, n, inner)
        k3 = k.reshape(bt, n, inner)
        v3 = v.reshape(bt, n, inner)

        e0 = e0_ref[l]                                          # (1, inner): edge kv, adj == 0
        e1 = e1_ref[l]                                          # (1, inner): edge kv, adj == 1

        # ---- edge-augmented attention, decomposed so that no (N,N,inner) / (N,N,dh)
        #      tensor is ever materialized ----
        head_outs = []
        for h in range(heads):
            sl = slice(h * dim_head, (h + 1) * dim_head)
            qh, kh, vh = q3[:, :, sl], k3[:, :, sl], v3[:, :, sl]    # (bt, n, dh)
            e0h, e1h = e0[:, sl], e1[:, sl]                          # (1, dh)

            # sim[b,i,j] = q_i . (k_j + adj_ij*e1 + (1-adj_ij)*e0)
            sim_qk = jnp.einsum('bid,bjd->bij', qh, kh,
                                preferred_element_type=jnp.float32)  # MXU
            qe1 = jnp.sum(qh * e1h[None], axis=-1, keepdims=True)    # (bt, n, 1)
            qe0 = jnp.sum(qh * e0h[None], axis=-1, keepdims=True)
            sim = (sim_qk + adj * qe1 + (1.0 - adj) * qe0) * scale

            sim = sim - jnp.max(sim, axis=-1, keepdims=True)
            p = jnp.exp(sim)
            denom = jnp.sum(p, axis=-1, keepdims=True)
            attn = p * pl.reciprocal(denom, approx=True)             # EUP reciprocal

            # out_i = sum_j attn_ij * (v_j + adj_ij*e1 + (1-adj_ij)*e0)
            o_v = jnp.einsum('bij,bjd->bid', attn, vh,
                             preferred_element_type=jnp.float32)     # MXU
            s1 = jnp.sum(attn * adj, axis=-1, keepdims=True)         # (bt, n, 1)
            st = jnp.sum(attn, axis=-1, keepdims=True)
            head_outs.append(o_v + s1 * e1h[None] + (st - s1) * e0h[None])

        attn_out = jnp.concatenate(head_outs, axis=-1).reshape(bt * n, inner)
        out = jnp.dot(attn_out, wo_ref[l], preferred_element_type=jnp.float32) + bo_ref[l]

        # ---- gated residual, concat-free:
        #      sigmoid([out, x, out-x] @ wg) == sigmoid(out.(w1+w3) + x.(w2-w3)) ----
        gate_logit = (jnp.sum(out * wgo_ref[l], axis=-1, keepdims=True)
                      + jnp.sum(x * wgr_ref[l], axis=-1, keepdims=True))
        gate = jax.nn.sigmoid(gate_logit)
        x = out * gate + x * (1.0 - gate)

    o_ref[...] = x.reshape(bt, n, d)


def _replicated_spec(shape):
    zeros = (0,) * len(shape)
    return pl.BlockSpec(shape, lambda i, _z=zeros: _z)


def gcn_encoder_forward(node_features, adj_matrix, fp, heads=4, dim_head=16,
                        max_batch_block=8):
    B, N, F_in = node_features.shape
    D = fp["fc_w"].shape[1]
    inner = heads * dim_head
    L = fp["wq"].shape[0]

    # Pack several graphs per grid step (amortizes per-step overhead, raises occupancy);
    # the batch axis stays "parallel" so larger batches shard across TensorCores (v7x).
    bt = 1
    for cand in (max_batch_block, 8, 4, 2, 1):
        if 0 < cand <= B and B % cand == 0:
            bt = cand
            break
    grid = (B // bt,)

    kern = functools.partial(fused_gcn_kernel, heads=heads, dim_head=dim_head)
    in_specs = [
        pl.BlockSpec((bt, N, F_in), lambda i: (i, 0, 0)),                    # node features
        pl.BlockSpec((bt, N, N), lambda i: (i, 0, 0)),                       # adjacency
        _replicated_spec((F_in, D)), _replicated_spec((1, D)),               # fc W, b
        _replicated_spec((L, 1, D)), _replicated_spec((L, 1, D)),            # LN gamma, beta
        _replicated_spec((L, D, inner)), _replicated_spec((L, 1, inner)),    # Wq, bq
        _replicated_spec((L, D, inner)), _replicated_spec((L, 1, inner)),    # Wk, bk
        _replicated_spec((L, D, inner)), _replicated_spec((L, 1, inner)),    # Wv, bv
        _replicated_spec((L, 1, inner)), _replicated_spec((L, 1, inner)),    # e0, e1 (folded)
        _replicated_spec((L, inner, D)), _replicated_spec((L, 1, D)),        # Wo, bo
        _replicated_spec((L, 1, D)), _replicated_spec((L, 1, D)),            # gate folds
    ]
    return pl.pallas_call(
        kern,
        out_shape=jax.ShapeDtypeStruct((B, N, D), jnp.float32),
        grid=grid,
        in_specs=in_specs,
        out_specs=pl.BlockSpec((bt, N, D), lambda i: (i, 0, 0)),
        compiler_params=pltpu.CompilerParams(dimension_semantics=("parallel",)),
    )(node_features, adj_matrix, fp["fc_w"], fp["fc_b"],
      fp["ln_g"], fp["ln_b"],
      fp["wq"], fp["bq"], fp["wk"], fp["bk"], fp["wv"], fp["bv"],
      fp["e0"], fp["e1"], fp["wo"], fp["bo"],
      fp["wg_out"], fp["wg_res"])


# -------------------- parameters (deterministic, synthetic) --------------------
def init_params(key, f_in, d, n_layers, heads, dim_head):
    inner = heads * dim_head

    def lin(k, fan_in, shape):
        return jax.random.normal(k, shape, jnp.float32) / jnp.sqrt(float(fan_in))

    k_fc, k_emb, k_layers = jax.random.split(key, 3)
    params = {
        "fc_w": lin(k_fc, f_in, (f_in, d)),
        "fc_b": jnp.zeros((1, d), jnp.float32),
    }
    adj_emb = 0.1 * jax.random.normal(k_emb, (2, d), jnp.float32)

    layers = []
    for lk in jax.random.split(k_layers, n_layers):
        ks = jax.random.split(lk, 6)
        layers.append(dict(
            adj_emb=adj_emb,   # single shared embedding table (as in the module)
            ln_g=jnp.ones((1, d), jnp.float32),
            ln_b=jnp.zeros((1, d), jnp.float32),
            wq=lin(ks[0], d, (d, inner)), bq=jnp.zeros((1, inner), jnp.float32),
            wk=lin(ks[1], d, (d, inner)), bk=jnp.zeros((1, inner), jnp.float32),
            wv=lin(ks[2], d, (d, inner)), bv=jnp.zeros((1, inner), jnp.float32),
            we=lin(ks[3], d, (d, inner)), be=jnp.zeros((1, inner), jnp.float32),
            wo=lin(ks[4], inner, (inner, d)), bo=jnp.zeros((1, d), jnp.float32),
            wg=lin(ks[5], 3 * d, (1, 3 * d)),
        ))
    params["layers"] = layers
    return params


def prepare_fused_params(params):
    """One-time host-side parameter folds (analogous to weight transposition):
       * binary adjacency: e_c = emb[c] @ We + be, c in {0,1}  -> (L, 1, inner) each;
       * gated residual:   [out,x,out-x] @ wg == out@(w1+w3) + x@(w2-w3)."""
    layers = params["layers"]
    d = params["fc_w"].shape[1]
    stack = lambda name: jnp.stack([lp[name] for lp in layers], axis=0)

    e01 = jnp.stack([jnp.dot(lp["adj_emb"], lp["we"]) + lp["be"] for lp in layers], axis=0)
    wg = stack("wg")                                             # (L, 1, 3D)
    wg1, wg2, wg3 = wg[:, :, :d], wg[:, :, d:2 * d], wg[:, :, 2 * d:]

    return {
        "fc_w": params["fc_w"], "fc_b": params["fc_b"],
        "ln_g": stack("ln_g"), "ln_b": stack("ln_b"),
        "wq": stack("wq"), "bq": stack("bq"),
        "wk": stack("wk"), "bk": stack("bk"),
        "wv": stack("wv"), "bv": stack("bv"),
        "e0": e01[:, 0:1, :], "e1": e01[:, 1:2, :],
        "wo": stack("wo"), "bo": stack("bo"),
        "wg_out": wg1 + wg3, "wg_res": wg2 - wg3,
    }


# -------------------- pure-JAX reference (naive formulation) --------------------
def gcn_encoder_reference(node_features, adj, params, heads=4, dim_head=16):
    inner = heads * dim_head
    scale = dim_head ** -0.5
    x = jnp.maximum(
        jnp.einsum('bnf,fd->bnd', node_features, params["fc_w"]) + params["fc_b"], 0.0)
    B, N, _ = x.shape
    for lp in params["layers"]:
        mu = x.mean(-1, keepdims=True)
        var = jnp.square(x - mu).mean(-1, keepdims=True)
        xn = (x - mu) * jax.lax.rsqrt(var + 1e-5) * lp["ln_g"] + lp["ln_b"]
        q = xn @ lp["wq"] + lp["bq"]
        k = xn @ lp["wk"] + lp["bk"]
        v = xn @ lp["wv"] + lp["bv"]
        edges = lp["adj_emb"][adj.astype(jnp.int32)]                       # (B,N,N,D)
        ekv = jnp.einsum('bijd,de->bije', edges, lp["we"]) + lp["be"]      # (B,N,N,inner)
        qh = q.reshape(B, N, heads, dim_head)
        kh = k.reshape(B, N, heads, dim_head)
        vh = v.reshape(B, N, heads, dim_head)
        eh = ekv.reshape(B, N, N, heads, dim_head)
        keff = kh[:, None] + eh
        veff = vh[:, None] + eh
        sim = jnp.einsum('bihd,bijhd->bhij', qh, keff) * scale
        attn = jax.nn.softmax(sim, axis=-1)
        out = jnp.einsum('bhij,bijhd->bihd', attn, veff).reshape(B, N, inner)
        out = out @ lp["wo"] + lp["bo"]
        gate_in = jnp.concatenate([out, x, out - x], axis=-1)
        gate = jax.nn.sigmoid(jnp.sum(gate_in * lp["wg"], axis=-1, keepdims=True))
        x = out * gate + x * (1.0 - gate)
    return x


if __name__ == "__main__":
    B, N, F_IN, D, N_LAYERS = 2, 8, 16, 32, 2     # heads=4, dim_head=16 per the module
    HEADS, DIM_HEAD = 4, 16

    key = jax.random.PRNGKey(0)
    k_x, k_adj, k_p = jax.random.split(key, 3)

    node_features = jax.random.normal(k_x, (B, N, F_IN), jnp.float32)
    adj = (jax.random.uniform(k_adj, (B, N, N)) < 0.4).astype(jnp.float32)
    adj = jnp.clip(adj + jnp.eye(N, dtype=jnp.float32)[None], 0.0, 1.0)   # identity added

    params = init_params(k_p, F_IN, D, N_LAYERS, heads=HEADS, dim_head=DIM_HEAD)
    fused_params = prepare_fused_params(params)   # one-time parameter folds

    out = gcn_encoder_forward(node_features, adj, fused_params,
                              heads=HEADS, dim_head=DIM_HEAD)
    out = jax.block_until_ready(out)

    assert out.shape == (B, N, D), out.shape
    assert bool(jnp.all(jnp.isfinite(out)))

    # sanity check against the naive (un-decomposed) pure-JAX formulation;
    # loose tolerance covers the EUP approx-reciprocal softmax.
    ref = gcn_encoder_reference(node_features, adj, params, heads=HEADS, dim_head=DIM_HEAD)
    max_abs_err = float(jnp.max(jnp.abs(out - ref)))
    assert max_abs_err < 5e-2, max_abs_err

    print("KERNEL_OK")
</pallas_src>

<mosaic_0001>
module attributes {stable_mosaic.version = 11 : i64} {
  func.func @fused_gcn_kernel(%arg0: i32, %arg1: memref<2x8x16xf32, #tpu.memory_space<vmem>>, %arg2: memref<2x8x8xf32, #tpu.memory_space<vmem>>, %arg3: memref<16x32xf32, #tpu.memory_space<vmem>>, %arg4: memref<1x32xf32, #tpu.memory_space<vmem>>, %arg5: memref<2x1x32xf32, #tpu.memory_space<vmem>>, %arg6: memref<2x1x32xf32, #tpu.memory_space<vmem>>, %arg7: memref<2x32x64xf32, #tpu.memory_space<vmem>>, %arg8: memref<2x1x64xf32, #tpu.memory_space<vmem>>, %arg9: memref<2x32x64xf32, #tpu.memory_space<vmem>>, %arg10: memref<2x1x64xf32, #tpu.memory_space<vmem>>, %arg11: memref<2x32x64xf32, #tpu.memory_space<vmem>>, %arg12: memref<2x1x64xf32, #tpu.memory_space<vmem>>, %arg13: memref<2x1x64xf32, #tpu.memory_space<vmem>>, %arg14: memref<2x1x64xf32, #tpu.memory_space<vmem>>, %arg15: memref<2x64x32xf32, #tpu.memory_space<vmem>>, %arg16: memref<2x1x32xf32, #tpu.memory_space<vmem>>, %arg17: memref<2x1x32xf32, #tpu.memory_space<vmem>>, %arg18: memref<2x1x32xf32, #tpu.memory_space<vmem>>, %arg19: memref<2x8x32xf32, #tpu.memory_space<vmem>>) attributes {dimension_semantics = [#tpu.dimension_semantics<parallel>], iteration_bounds = array<i64: 1>, scalar_prefetch = 0 : i64, scratch_operands = 0 : i64, tpu.core_type = #tpu.core_type<tc>, window_params = [{transform_indices = @transform_0, window_bounds = array<i64: 2, 8, 16>}, {transform_indices = @transform_1, window_bounds = array<i64: 2, 8, 8>}, {pipeline_mode = #tpu.pipeline_mode<synchronous>, transform_indices = @transform_2, window_bounds = array<i64: 16, 32>}, {pipeline_mode = #tpu.pipeline_mode<synchronous>, transform_indices = @transform_3, window_bounds = array<i64: 1, 32>}, {pipeline_mode = #tpu.pipeline_mode<synchronous>, transform_indices = @transform_4, window_bounds = array<i64: 2, 1, 32>}, {pipeline_mode = #tpu.pipeline_mode<synchronous>, transform_indices = @transform_5, window_bounds = array<i64: 2, 1, 32>}, {pipeline_mode = #tpu.pipeline_mode<synchronous>, transform_indices = @transform_6, window_bounds = array<i64: 2, 32, 64>}, {pipeline_mode = #tpu.pipeline_mode<synchronous>, transform_indices = @transform_7, window_bounds = array<i64: 2, 1, 64>}, {pipeline_mode = #tpu.pipeline_mode<synchronous>, transform_indices = @transform_8, window_bounds = array<i64: 2, 32, 64>}, {pipeline_mode = #tpu.pipeline_mode<synchronous>, transform_indices = @transform_9, window_bounds = array<i64: 2, 1, 64>}, {pipeline_mode = #tpu.pipeline_mode<synchronous>, transform_indices = @transform_10, window_bounds = array<i64: 2, 32, 64>}, {pipeline_mode = #tpu.pipeline_mode<synchronous>, transform_indices = @transform_11, window_bounds = array<i64: 2, 1, 64>}, {pipeline_mode = #tpu.pipeline_mode<synchronous>, transform_indices = @transform_12, window_bounds = array<i64: 2, 1, 64>}, {pipeline_mode = #tpu.pipeline_mode<synchronous>, transform_indices = @transform_13, window_bounds = array<i64: 2, 1, 64>}, {pipeline_mode = #tpu.pipeline_mode<synchronous>, transform_indices = @transform_14, window_bounds = array<i64: 2, 64, 32>}, {pipeline_mode = #tpu.pipeline_mode<synchronous>, transform_indices = @transform_15, window_bounds = array<i64: 2, 1, 32>}, {pipeline_mode = #tpu.pipeline_mode<synchronous>, transform_indices = @transform_16, window_bounds = array<i64: 2, 1, 32>}, {pipeline_mode = #tpu.pipeline_mode<synchronous>, transform_indices = @transform_17, window_bounds = array<i64: 2, 1, 32>}, {transform_indices = @transform_18, window_bounds = array<i64: 2, 8, 32>}]} {
    %c0 = arith.constant 0 : index
    %c0_0 = arith.constant 0 : index
    %c0_1 = arith.constant 0 : index
    %0 = vector.load %arg1[%c0, %c0_0, %c0_1] : memref<2x8x16xf32, #tpu.memory_space<vmem>>, vector<2x8x16xf32>
    %1 = vector.shape_cast %0 : vector<2x8x16xf32> to vector<16x16xf32>
    %c0_2 = arith.constant 0 : index
    %c0_3 = arith.constant 0 : index
    %2 = vector.load %arg3[%c0_2, %c0_3] : memref<16x32xf32, #tpu.memory_space<vmem>>, vector<16x32xf32>
    %cst = arith.constant dense<0.000000e+00> : vector<16x32xf32>
    %3 = tpu.matmul %1, %2, %cst {dimension_numbers = #tpu.dot_dimension_numbers<[1], [0], [0], [1], [0, 0, 1, 1], [], []>} : vector<16x16xf32>, vector<16x32xf32>, vector<16x32xf32> -> vector<16x32xf32>
    %c0_4 = arith.constant 0 : index
    %c0_5 = arith.constant 0 : index
    %4 = vector.load %arg4[%c0_4, %c0_5] : memref<1x32xf32, #tpu.memory_space<vmem>>, vector<1x32xf32>
    %5 = vector.broadcast %4 : vector<1x32xf32> to vector<16x32xf32>
    %6 = arith.addf %3, %5 : vector<16x32xf32>
    %cst_6 = arith.constant 0.000000e+00 : f32
    %7 = vector.broadcast %cst_6 : f32 to vector<16x32xf32>
    %8 = arith.maximumf %6, %7 : vector<16x32xf32>
    %c0_7 = arith.constant 0 : index
    %c0_8 = arith.constant 0 : index
    %c0_9 = arith.constant 0 : index
    %9 = vector.load %arg2[%c0_7, %c0_8, %c0_9] : memref<2x8x8xf32, #tpu.memory_space<vmem>>, vector<2x8x8xf32>
    %cst_10 = arith.constant dense<0.000000e+00> : vector<16xf32>
    %10 = vector.multi_reduction <add>, %8, %cst_10 [1] : vector<16x32xf32> to vector<16xf32>
    %11 = vector.shape_cast %10 : vector<16xf32> to vector<16x1xf32>
    %cst_11 = arith.constant 3.200000e+01 : f32
    %12 = vector.broadcast %cst_11 : f32 to vector<16x1xf32>
    %13 = arith.divf %11, %12 : vector<16x1xf32>
    %14 = vector.broadcast %13 : vector<16x1xf32> to vector<16x32xf32>
    %15 = arith.subf %8, %14 : vector<16x32xf32>
    %16 = arith.mulf %15, %15 : vector<16x32xf32>
    %cst_12 = arith.constant dense<0.000000e+00> : vector<16xf32>
    %17 = vector.multi_reduction <add>, %16, %cst_12 [1] : vector<16x32xf32> to vector<16xf32>
    %18 = vector.shape_cast %17 : vector<16xf32> to vector<16x1xf32>
    %cst_13 = arith.constant 3.200000e+01 : f32
    %19 = vector.broadcast %cst_13 : f32 to vector<16x1xf32>
    %20 = arith.divf %18, %19 : vector<16x1xf32>
    %21 = vector.broadcast %13 : vector<16x1xf32> to vector<16x32xf32>
    %22 = arith.subf %8, %21 : vector<16x32xf32>
    %cst_14 = arith.constant 9.99999974E-6 : f32
    %23 = vector.broadcast %cst_14 : f32 to vector<16x1xf32>
    %24 = arith.addf %20, %23 : vector<16x1xf32>
    %25 = math.rsqrt %24 : vector<16x1xf32>
    %26 = vector.broadcast %25 : vector<16x1xf32> to vector<16x32xf32>
    %27 = arith.mulf %22, %26 : vector<16x32xf32>
    %c0_15 = arith.constant 0 : index
    %c0_16 = arith.constant 0 : index
    %c0_17 = arith.constant 0 : index
    %28 = vector.load %arg5[%c0_15, %c0_16, %c0_17] : memref<2x1x32xf32, #tpu.memory_space<vmem>>, vector<1x1x32xf32>
    %29 = vector.shape_cast %28 : vector<1x1x32xf32> to vector<1x32xf32>
    %30 = vector.broadcast %29 : vector<1x32xf32> to vector<16x32xf32>
    %31 = arith.mulf %27, %30 : vector<16x32xf32>
    %c0_18 = arith.constant 0 : index
    %c0_19 = arith.constant 0 : index
    %c0_20 = arith.constant 0 : index
    %32 = vector.load %arg6[%c0_18, %c0_19, %c0_20] : memref<2x1x32xf32, #tpu.memory_space<vmem>>, vector<1x1x32xf32>
    %33 = vector.shape_cast %32 : vector<1x1x32xf32> to vector<1x32xf32>
    %34 = vector.broadcast %33 : vector<1x32xf32> to vector<16x32xf32>
    %35 = arith.addf %31, %34 : vector<16x32xf32>
    %c0_21 = arith.constant 0 : index
    %c0_22 = arith.constant 0 : index
    %c0_23 = arith.constant 0 : index
    %36 = vector.load %arg7[%c0_21, %c0_22, %c0_23] : memref<2x32x64xf32, #tpu.memory_space<vmem>>, vector<1x32x64xf32>
    %37 = vector.shape_cast %36 : vector<1x32x64xf32> to vector<32x64xf32>
    %cst_24 = arith.constant dense<0.000000e+00> : vector<16x64xf32>
    %38 = tpu.matmul %35, %37, %cst_24 {dimension_numbers = #tpu.dot_dimension_numbers<[1], [0], [0], [1], [0, 0, 1, 1], [], []>} : vector<16x32xf32>, vector<32x64xf32>, vector<16x64xf32> -> vector<16x64xf32>
    %c0_25 = arith.constant 0 : index
    %c0_26 = arith.constant 0 : index
    %c0_27 = arith.constant 0 : index
    %39 = vector.load %arg8[%c0_25, %c0_26, %c0_27] : memref<2x1x64xf32, #tpu.memory_space<vmem>>, vector<1x1x64xf32>
    %40 = vector.shape_cast %39 : vector<1x1x64xf32> to vector<1x64xf32>
    %41 = vector.broadcast %40 : vector<1x64xf32> to vector<16x64xf32>
    %42 = arith.addf %38, %41 : vector<16x64xf32>
    %c0_28 = arith.constant 0 : index
    %c0_29 = arith.constant 0 : index
    %c0_30 = arith.constant 0 : index
    %43 = vector.load %arg9[%c0_28, %c0_29, %c0_30] : memref<2x32x64xf32, #tpu.memory_space<vmem>>, vector<1x32x64xf32>
    %44 = vector.shape_cast %43 : vector<1x32x64xf32> to vector<32x64xf32>
    %cst_31 = arith.constant dense<0.000000e+00> : vector<16x64xf32>
    %45 = tpu.matmul %35, %44, %cst_31 {dimension_numbers = #tpu.dot_dimension_numbers<[1], [0], [0], [1], [0, 0, 1, 1], [], []>} : vector<16x32xf32>, vector<32x64xf32>, vector<16x64xf32> -> vector<16x64xf32>
    %c0_32 = arith.constant 0 : index
    %c0_33 = arith.constant 0 : index
    %c0_34 = arith.constant 0 : index
    %46 = vector.load %arg10[%c0_32, %c0_33, %c0_34] : memref<2x1x64xf32, #tpu.memory_space<vmem>>, vector<1x1x64xf32>
    %47 = vector.shape_cast %46 : vector<1x1x64xf32> to vector<1x64xf32>
    %48 = vector.broadcast %47 : vector<1x64xf32> to vector<16x64xf32>
    %49 = arith.addf %45, %48 : vector<16x64xf32>
    %c0_35 = arith.constant 0 : index
    %c0_36 = arith.constant 0 : index
    %c0_37 = arith.constant 0 : index
    %50 = vector.load %arg11[%c0_35, %c0_36, %c0_37] : memref<2x32x64xf32, #tpu.memory_space<vmem>>, vector<1x32x64xf32>
    %51 = vector.shape_cast %50 : vector<1x32x64xf32> to vector<32x64xf32>
    %cst_38 = arith.constant dense<0.000000e+00> : vector<16x64xf32>
    %52 = tpu.matmul %35, %51, %cst_38 {dimension_numbers = #tpu.dot_dimension_numbers<[1], [0], [0], [1], [0, 0, 1, 1], [], []>} : vector<16x32xf32>, vector<32x64xf32>, vector<16x64xf32> -> vector<16x64xf32>
    %c0_39 = arith.constant 0 : index
    %c0_40 = arith.constant 0 : index
    %c0_41 = arith.constant 0 : index
    %53 = vector.load %arg12[%c0_39, %c0_40, %c0_41] : memref<2x1x64xf32, #tpu.memory_space<vmem>>, vector<1x1x64xf32>
    %54 = vector.shape_cast %53 : vector<1x1x64xf32> to vector<1x64xf32>
    %55 = vector.broadcast %54 : vector<1x64xf32> to vector<16x64xf32>
    %56 = arith.addf %52, %55 : vector<16x64xf32>
    %57 = vector.shape_cast %42 : vector<16x64xf32> to vector<2x8x64xf32>
    %58 = vector.shape_cast %49 : vector<16x64xf32> to vector<2x8x64xf32>
    %59 = vector.shape_cast %56 : vector<16x64xf32> to vector<2x8x64xf32>
    %c0_42 = arith.constant 0 : index
    %c0_43 = arith.constant 0 : index
    %c0_44 = arith.constant 0 : index
    %60 = vector.load %arg13[%c0_42, %c0_43, %c0_44] : memref<2x1x64xf32, #tpu.memory_space<vmem>>, vector<1x1x64xf32>
    %61 = vector.shape_cast %60 : vector<1x1x64xf32> to vector<1x64xf32>
    %c0_45 = arith.constant 0 : index
    %c0_46 = arith.constant 0 : index
    %c0_47 = arith.constant 0 : index
    %62 = vector.load %arg14[%c0_45, %c0_46, %c0_47] : memref<2x1x64xf32, #tpu.memory_space<vmem>>, vector<1x1x64xf32>
    %63 = vector.shape_cast %62 : vector<1x1x64xf32> to vector<1x64xf32>
    %64 = vector.extract_strided_slice %57 {offsets = [0, 0, 0], sizes = [2, 8, 16], strides = [1, 1, 1]} : vector<2x8x64xf32> to vector<2x8x16xf32>
    %65 = vector.extract_strided_slice %58 {offsets = [0, 0, 0], sizes = [2, 8, 16], strides = [1, 1, 1]} : vector<2x8x64xf32> to vector<2x8x16xf32>
    %66 = vector.extract_strided_slice %59 {offsets = [0, 0, 0], sizes = [2, 8, 16], strides = [1, 1, 1]} : vector<2x8x64xf32> to vector<2x8x16xf32>
    %67 = vector.extract_strided_slice %61 {offsets = [0, 0], sizes = [1, 16], strides = [1, 1]} : vector<1x64xf32> to vector<1x16xf32>
    %68 = vector.extract_strided_slice %63 {offsets = [0, 0], sizes = [1, 16], strides = [1, 1]} : vector<1x64xf32> to vector<1x16xf32>
    "tpu.trace_start"() <{level = 10 : i32, message = "bid,bjd->bij"}> : () -> ()
    %cst_48 = arith.constant dense<0.000000e+00> : vector<2x8x8xf32>
    %69 = tpu.matmul %64, %65, %cst_48 {dimension_numbers = #tpu.dot_dimension_numbers<[2], [2], [1], [1], [0, 0, 0, 1, 1, 1], [0], [0]>} : vector<2x8x16xf32>, vector<2x8x16xf32>, vector<2x8x8xf32> -> vector<2x8x8xf32>
    "tpu.trace_stop"() : () -> ()
    %70 = vector.shape_cast %68 : vector<1x16xf32> to vector<1x1x16xf32>
    %71 = vector.broadcast %70 : vector<1x1x16xf32> to vector<2x8x16xf32>
    %72 = arith.mulf %64, %71 : vector<2x8x16xf32>
    %cst_49 = arith.constant dense<0.000000e+00> : vector<2x8xf32>
    %73 = vector.multi_reduction <add>, %72, %cst_49 [2] : vector<2x8x16xf32> to vector<2x8xf32>
    %74 = vector.shape_cast %73 : vector<2x8xf32> to vector<2x8x1xf32>
    %75 = vector.shape_cast %67 : vector<1x16xf32> to vector<1x1x16xf32>
    %76 = vector.broadcast %75 : vector<1x1x16xf32> to vector<2x8x16xf32>
    %77 = arith.mulf %64, %76 : vector<2x8x16xf32>
    %cst_50 = arith.constant dense<0.000000e+00> : vector<2x8xf32>
    %78 = vector.multi_reduction <add>, %77, %cst_50 [2] : vector<2x8x16xf32> to vector<2x8xf32>
    %79 = vector.shape_cast %78 : vector<2x8xf32> to vector<2x8x1xf32>
    %80 = vector.broadcast %74 : vector<2x8x1xf32> to vector<2x8x8xf32>
    %81 = arith.mulf %9, %80 : vector<2x8x8xf32>
    %82 = arith.addf %69, %81 : vector<2x8x8xf32>
    %cst_51 = arith.constant 1.000000e+00 : f32
    %83 = vector.broadcast %cst_51 : f32 to vector<2x8x8xf32>
    %84 = arith.subf %83, %9 : vector<2x8x8xf32>
    %85 = vector.broadcast %79 : vector<2x8x1xf32> to vector<2x8x8xf32>
    %86 = arith.mulf %84, %85 : vector<2x8x8xf32>
    %87 = arith.addf %82, %86 : vector<2x8x8xf32>
    %cst_52 = arith.constant 2.500000e-01 : f32
    %88 = vector.broadcast %cst_52 : f32 to vector<2x8x8xf32>
    %89 = arith.mulf %87, %88 : vector<2x8x8xf32>
    %cst_53 = arith.constant dense<0xFF800000> : vector<2x8xf32>
    %90 = vector.multi_reduction <maximumf>, %89, %cst_53 [2] : vector<2x8x8xf32> to vector<2x8xf32>
    %91 = vector.shape_cast %90 : vector<2x8xf32> to vector<2x8x1xf32>
    %92 = vector.broadcast %91 : vector<2x8x1xf32> to vector<2x8x8xf32>
    %93 = arith.subf %89, %92 : vector<2x8x8xf32>
    %94 = math.exp %93 : vector<2x8x8xf32>
    %cst_54 = arith.constant dense<0.000000e+00> : vector<2x8xf32>
    %95 = vector.multi_reduction <add>, %94, %cst_54 [2] : vector<2x8x8xf32> to vector<2x8xf32>
    %96 = vector.shape_cast %95 : vector<2x8xf32> to vector<2x8x1xf32>
    %97 = tpu.reciprocal %96 {approx = true} : vector<2x8x1xf32> -> vector<2x8x1xf32>
    %98 = vector.broadcast %97 : vector<2x8x1xf32> to vector<2x8x8xf32>
    %99 = arith.mulf %94, %98 : vector<2x8x8xf32>
    "tpu.trace_start"() <{level = 10 : i32, message = "bij,bjd->bid"}> : () -> ()
    %cst_55 = arith.constant dense<0.000000e+00> : vector<2x8x16xf32>
    %100 = tpu.matmul %99, %66, %cst_55 {dimension_numbers = #tpu.dot_dimension_numbers<[2], [1], [1], [2], [0, 0, 0, 1, 1, 2], [0], [0]>} : vector<2x8x8xf32>, vector<2x8x16xf32>, vector<2x8x16xf32> -> vector<2x8x16xf32>
    "tpu.trace_stop"() : () -> ()
    %101 = arith.mulf %99, %9 : vector<2x8x8xf32>
    %cst_56 = arith.constant dense<0.000000e+00> : vector<2x8xf32>
    %102 = vector.multi_reduction <add>, %101, %cst_56 [2] : vector<2x8x8xf32> to vector<2x8xf32>
    %103 = vector.shape_cast %102 : vector<2x8xf32> to vector<2x8x1xf32>
    %cst_57 = arith.constant dense<0.000000e+00> : vector<2x8xf32>
    %104 = vector.multi_reduction <add>, %99, %cst_57 [2] : vector<2x8x8xf32> to vector<2x8xf32>
    %105 = vector.shape_cast %104 : vector<2x8xf32> to vector<2x8x1xf32>
    %106 = vector.shape_cast %68 : vector<1x16xf32> to vector<1x1x16xf32>
    %107 = vector.broadcast %103 : vector<2x8x1xf32> to vector<2x8x16xf32>
    %108 = vector.broadcast %106 : vector<1x1x16xf32> to vector<2x8x16xf32>
    %109 = arith.mulf %107, %108 : vector<2x8x16xf32>
    %110 = arith.addf %100, %109 : vector<2x8x16xf32>
    %111 = arith.subf %105, %103 : vector<2x8x1xf32>
    %112 = vector.shape_cast %67 : vector<1x16xf32> to vector<1x1x16xf32>
    %113 = vector.broadcast %111 : vector<2x8x1xf32> to vector<2x8x16xf32>
    %114 = vector.broadcast %112 : vector<1x1x16xf32> to vector<2x8x16xf32>
    %115 = arith.mulf %113, %114 : vector<2x8x16xf32>
    %116 = arith.addf %110, %115 : vector<2x8x16xf32>
    %117 = vector.extract_strided_slice %57 {offsets = [0, 0, 16], sizes = [2, 8, 16], strides = [1, 1, 1]} : vector<2x8x64xf32> to vector<2x8x16xf32>
    %118 = vector.extract_strided_slice %58 {offsets = [0, 0, 16], sizes = [2, 8, 16], strides = [1, 1, 1]} : vector<2x8x64xf32> to vector<2x8x16xf32>
    %119 = vector.extract_strided_slice %59 {offsets = [0, 0, 16], sizes = [2, 8, 16], strides = [1, 1, 1]} : vector<2x8x64xf32> to vector<2x8x16xf32>
    %120 = vector.extract_strided_slice %61 {offsets = [0, 16], sizes = [1, 16], strides = [1, 1]} : vector<1x64xf32> to vector<1x16xf32>
    %121 = vector.extract_strided_slice %63 {offsets = [0, 16], sizes = [1, 16], strides = [1, 1]} : vector<1x64xf32> to vector<1x16xf32>
    "tpu.trace_start"() <{level = 10 : i32, message = "bid,bjd->bij"}> : () -> ()
    %cst_58 = arith.constant dense<0.000000e+00> : vector<2x8x8xf32>
    %122 = tpu.matmul %117, %118, %cst_58 {dimension_numbers = #tpu.dot_dimension_numbers<[2], [2], [1], [1], [0, 0, 0, 1, 1, 1], [0], [0]>} : vector<2x8x16xf32>, vector<2x8x16xf32>, vector<2x8x8xf32> -> vector<2x8x8xf32>
    "tpu.trace_stop"() : () -> ()
    %123 = vector.shape_cast %121 : vector<1x16xf32> to vector<1x1x16xf32>
    %124 = vector.broadcast %123 : vector<1x1x16xf32> to vector<2x8x16xf32>
    %125 = arith.mulf %117, %124 : vector<2x8x16xf32>
    %cst_59 = arith.constant dense<0.000000e+00> : vector<2x8xf32>
    %126 = vector.multi_reduction <add>, %125, %cst_59 [2] : vector<2x8x16xf32> to vector<2x8xf32>
    %127 = vector.shape_cast %126 : vector<2x8xf32> to vector<2x8x1xf32>
    %128 = vector.shape_cast %120 : vector<1x16xf32> to vector<1x1x16xf32>
    %129 = vector.broadcast %128 : vector<1x1x16xf32> to vector<2x8x16xf32>
    %130 = arith.mulf %117, %129 : vector<2x8x16xf32>
    %cst_60 = arith.constant dense<0.000000e+00> : vector<2x8xf32>
    %131 = vector.multi_reduction <add>, %130, %cst_60 [2] : vector<2x8x16xf32> to vector<2x8xf32>
    %132 = vector.shape_cast %131 : vector<2x8xf32> to vector<2x8x1xf32>
    %133 = vector.broadcast %127 : vector<2x8x1xf32> to vector<2x8x8xf32>
    %134 = arith.mulf %9, %133 : vector<2x8x8xf32>
    %135 = arith.addf %122, %134 : vector<2x8x8xf32>
    %cst_61 = arith.constant 1.000000e+00 : f32
    %136 = vector.broadcast %cst_61 : f32 to vector<2x8x8xf32>
    %137 = arith.subf %136, %9 : vector<2x8x8xf32>
    %138 = vector.broadcast %132 : vector<2x8x1xf32> to vector<2x8x8xf32>
    %139 = arith.mulf %137, %138 : vector<2x8x8xf32>
    %140 = arith.addf %135, %139 : vector<2x8x8xf32>
    %cst_62 = arith.constant 2.500000e-01 : f32
    %141 = vector.broadcast %cst_62 : f32 to vector<2x8x8xf32>
    %142 = arith.mulf %140, %141 : vector<2x8x8xf32>
    %cst_63 = arith.constant dense<0xFF800000> : vector<2x8xf32>
    %143 = vector.multi_reduction <maximumf>, %142, %cst_63 [2] : vector<2x8x8xf32> to vector<2x8xf32>
    %144 = vector.shape_cast %143 : vector<2x8xf32> to vector<2x8x1xf32>
    %145 = vector.broadcast %144 : vector<2x8x1xf32> to vector<2x8x8xf32>
    %146 = arith.subf %142, %145 : vector<2x8x8xf32>
    %147 = math.exp %146 : vector<2x8x8xf32>
    %cst_64 = arith.constant dense<0.000000e+00> : vector<2x8xf32>
    %148 = vector.multi_reduction <add>, %147, %cst_64 [2] : vector<2x8x8xf32> to vector<2x8xf32>
    %149 = vector.shape_cast %148 : vector<2x8xf32> to vector<2x8x1xf32>
    %150 = tpu.reciprocal %149 {approx = true} : vector<2x8x1xf32> -> vector<2x8x1xf32>
    %151 = vector.broadcast %150 : vector<2x8x1xf32> to vector<2x8x8xf32>
    %152 = arith.mulf %147, %151 : vector<2x8x8xf32>
    "tpu.trace_start"() <{level = 10 : i32, message = "bij,bjd->bid"}> : () -> ()
    %cst_65 = arith.constant dense<0.000000e+00> : vector<2x8x16xf32>
    %153 = tpu.matmul %152, %119, %cst_65 {dimension_numbers = #tpu.dot_dimension_numbers<[2], [1], [1], [2], [0, 0, 0, 1, 1, 2], [0], [0]>} : vector<2x8x8xf32>, vector<2x8x16xf32>, vector<2x8x16xf32> -> vector<2x8x16xf32>
    "tpu.trace_stop"() : () -> ()
    %154 = arith.mulf %152, %9 : vector<2x8x8xf32>
    %cst_66 = arith.constant dense<0.000000e+00> : vector<2x8xf32>
    %155 = vector.multi_reduction <add>, %154, %cst_66 [2] : vector<2x8x8xf32> to vector<2x8xf32>
    %156 = vector.shape_cast %155 : vector<2x8xf32> to vector<2x8x1xf32>
    %cst_67 = arith.constant dense<0.000000e+00> : vector<2x8xf32>
    %157 = vector.multi_reduction <add>, %152, %cst_67 [2] : vector<2x8x8xf32> to vector<2x8xf32>
    %158 = vector.shape_cast %157 : vector<2x8xf32> to vector<2x8x1xf32>
    %159 = vector.shape_cast %121 : vector<1x16xf32> to vector<1x1x16xf32>
    %160 = vector.broadcast %156 : vector<2x8x1xf32> to vector<2x8x16xf32>
    %161 = vector.broadcast %159 : vector<1x1x16xf32> to vector<2x8x16xf32>
    %162 = arith.mulf %160, %161 : vector<2x8x16xf32>
    %163 = arith.addf %153, %162 : vector<2x8x16xf32>
    %164 = arith.subf %158, %156 : vector<2x8x1xf32>
    %165 = vector.shape_cast %120 : vector<1x16xf32> to vector<1x1x16xf32>
    %166 = vector.broadcast %164 : vector<2x8x1xf32> to vector<2x8x16xf32>
    %167 = vector.broadcast %165 : vector<1x1x16xf32> to vector<2x8x16xf32>
    %168 = arith.mulf %166, %167 : vector<2x8x16xf32>
    %169 = arith.addf %163, %168 : vector<2x8x16xf32>
    %170 = vector.extract_strided_slice %57 {offsets = [0, 0, 32], sizes = [2, 8, 16], strides = [1, 1, 1]} : vector<2x8x64xf32> to vector<2x8x16xf32>
    %171 = vector.extract_strided_slice %58 {offsets = [0, 0, 32], sizes = [2, 8, 16], strides = [1, 1, 1]} : vector<2x8x64xf32> to vector<2x8x16xf32>
    %172 = vector.extract_strided_slice %59 {offsets = [0, 0, 32], sizes = [2, 8, 16], strides = [1, 1, 1]} : vector<2x8x64xf32> to vector<2x8x16xf32>
    %173 = vector.extract_strided_slice %61 {offsets = [0, 32], sizes = [1, 16], strides = [1, 1]} : vector<1x64xf32> to vector<1x16xf32>
    %174 = vector.extract_strided_slice %63 {offsets = [0, 32], sizes = [1, 16], strides = [1, 1]} : vector<1x64xf32> to vector<1x16xf32>
    "tpu.trace_start"() <{level = 10 : i32, message = "bid,bjd->bij"}> : () -> ()
    %cst_68 = arith.constant dense<0.000000e+00> : vector<2x8x8xf32>
    %175 = tpu.matmul %170, %171, %cst_68 {dimension_numbers = #tpu.dot_dimension_numbers<[2], [2], [1], [1], [0, 0, 0, 1, 1, 1], [0], [0]>} : vector<2x8x16xf32>, vector<2x8x16xf32>, vector<2x8x8xf32> -> vector<2x8x8xf32>
    "tpu.trace_stop"() : () -> ()
    %176 = vector.shape_cast %174 : vector<1x16xf32> to vector<1x1x16xf32>
    %177 = vector.broadcast %176 : vector<1x1x16xf32> to vector<2x8x16xf32>
    %178 = arith.mulf %170, %177 : vector<2x8x16xf32>
    %cst_69 = arith.constant dense<0.000000e+00> : vector<2x8xf32>
    %179 = vector.multi_reduction <add>, %178, %cst_69 [2] : vector<2x8x16xf32> to vector<2x8xf32>
    %180 = vector.shape_cast %179 : vector<2x8xf32> to vector<2x8x1xf32>
    %181 = vector.shape_cast %173 : vector<1x16xf32> to vector<1x1x16xf32>
    %182 = vector.broadcast %181 : vector<1x1x16xf32> to vector<2x8x16xf32>
    %183 = arith.mulf %170, %182 : vector<2x8x16xf32>
    %cst_70 = arith.constant dense<0.000000e+00> : vector<2x8xf32>
    %184 = vector.multi_reduction <add>, %183, %cst_70 [2] : vector<2x8x16xf32> to vector<2x8xf32>
    %185 = vector.shape_cast %184 : vector<2x8xf32> to vector<2x8x1xf32>
    %186 = vector.broadcast %180 : vector<2x8x1xf32> to vector<2x8x8xf32>
    %187 = arith.mulf %9, %186 : vector<2x8x8xf32>
    %188 = arith.addf %175, %187 : vector<2x8x8xf32>
    %cst_71 = arith.constant 1.000000e+00 : f32
    %189 = vector.broadcast %cst_71 : f32 to vector<2x8x8xf32>
    %190 = arith.subf %189, %9 : vector<2x8x8xf32>
    %191 = vector.broadcast %185 : vector<2x8x1xf32> to vector<2x8x8xf32>
    %192 = arith.mulf %190, %191 : vector<2x8x8xf32>
    %193 = arith.addf %188, %192 : vector<2x8x8xf32>
    %cst_72 = arith.constant 2.500000e-01 : f32
    %194 = vector.broadcast %cst_72 : f32 to vector<2x8x8xf32>
    %195 = arith.mulf %193, %194 : vector<2x8x8xf32>
    %cst_73 = arith.constant dense<0xFF800000> : vector<2x8xf32>
    %196 = vector.multi_reduction <maximumf>, %195, %cst_73 [2] : vector<2x8x8xf32> to vector<2x8xf32>
    %197 = vector.shape_cast %196 : vector<2x8xf32> to vector<2x8x1xf32>
    %198 = vector.broadcast %197 : vector<2x8x1xf32> to vector<2x8x8xf32>
    %199 = arith.subf %195, %198 : vector<2x8x8xf32>
    %200 = math.exp %199 : vector<2x8x8xf32>
    %cst_74 = arith.constant dense<0.000000e+00> : vector<2x8xf32>
    %201 = vector.multi_reduction <add>, %200, %cst_74 [2] : vector<2x8x8xf32> to vector<2x8xf32>
    %202 = vector.shape_cast %201 : vector<2x8xf32> to vector<2x8x1xf32>
    %203 = tpu.reciprocal %202 {approx = true} : vector<2x8x1xf32> -> vector<2x8x1xf32>
    %204 = vector.broadcast %203 : vector<2x8x1xf32> to vector<2x8x8xf32>
    %205 = arith.mulf %200, %204 : vector<2x8x8xf32>
    "tpu.trace_start"() <{level = 10 : i32, message = "bij,bjd->bid"}> : () -> ()
    %cst_75 = arith.constant dense<0.000000e+00> : vector<2x8x16xf32>
    %206 = tpu.matmul %205, %172, %cst_75 {dimension_numbers = #tpu.dot_dimension_numbers<[2], [1], [1], [2], [0, 0, 0, 1, 1, 2], [0], [0]>} : vector<2x8x8xf32>, vector<2x8x16xf32>, vector<2x8x16xf32> -> vector<2x8x16xf32>
    "tpu.trace_stop"() : () -> ()
    %207 = arith.mulf %205, %9 : vector<2x8x8xf32>
    %cst_76 = arith.constant dense<0.000000e+00> : vector<2x8xf32>
    %208 = vector.multi_reduction <add>, %207, %cst_76 [2] : vector<2x8x8xf32> to vector<2x8xf32>
    %209 = vector.shape_cast %208 : vector<2x8xf32> to vector<2x8x1xf32>
    %cst_77 = arith.constant dense<0.000000e+00> : vector<2x8xf32>
    %210 = vector.multi_reduction <add>, %205, %cst_77 [2] : vector<2x8x8xf32> to vector<2x8xf32>
    %211 = vector.shape_cast %210 : vector<2x8xf32> to vector<2x8x1xf32>
    %212 = vector.shape_cast %174 : vector<1x16xf32> to vector<1x1x16xf32>
    %213 = vector.broadcast %209 : vector<2x8x1xf32> to vector<2x8x16xf32>
    %214 = vector.broadcast %212 : vector<1x1x16xf32> to vector<2x8x16xf32>
    %215 = arith.mulf %213, %214 : vector<2x8x16xf32>
    %216 = arith.addf %206, %215 : vector<2x8x16xf32>
    %217 = arith.subf %211, %209 : vector<2x8x1xf32>
    %218 = vector.shape_cast %173 : vector<1x16xf32> to vector<1x1x16xf32>
    %219 = vector.broadcast %217 : vector<2x8x1xf32> to vector<2x8x16xf32>
    %220 = vector.broadcast %218 : vector<1x1x16xf32> to vector<2x8x16xf32>
    %221 = arith.mulf %219, %220 : vector<2x8x16xf32>
    %222 = arith.addf %216, %221 : vector<2x8x16xf32>
    %223 = vector.extract_strided_slice %57 {offsets = [0, 0, 48], sizes = [2, 8, 16], strides = [1, 1, 1]} : vector<2x8x64xf32> to vector<2x8x16xf32>
    %224 = vector.extract_strided_slice %58 {offsets = [0, 0, 48], sizes = [2, 8, 16], strides = [1, 1, 1]} : vector<2x8x64xf32> to vector<2x8x16xf32>
    %225 = vector.extract_strided_slice %59 {offsets = [0, 0, 48], sizes = [2, 8, 16], strides = [1, 1, 1]} : vector<2x8x64xf32> to vector<2x8x16xf32>
    %226 = vector.extract_strided_slice %61 {offsets = [0, 48], sizes = [1, 16], strides = [1, 1]} : vector<1x64xf32> to vector<1x16xf32>
    %227 = vector.extract_strided_slice %63 {offsets = [0, 48], sizes = [1, 16], strides = [1, 1]} : vector<1x64xf32> to vector<1x16xf32>
    "tpu.trace_start"() <{level = 10 : i32, message = "bid,bjd->bij"}> : () -> ()
    %cst_78 = arith.constant dense<0.000000e+00> : vector<2x8x8xf32>
    %228 = tpu.matmul %223, %224, %cst_78 {dimension_numbers = #tpu.dot_dimension_numbers<[2], [2], [1], [1], [0, 0, 0, 1, 1, 1], [0], [0]>} : vector<2x8x16xf32>, vector<2x8x16xf32>, vector<2x8x8xf32> -> vector<2x8x8xf32>
    "tpu.trace_stop"() : () -> ()
    %229 = vector.shape_cast %227 : vector<1x16xf32> to vector<1x1x16xf32>
    %230 = vector.broadcast %229 : vector<1x1x16xf32> to vector<2x8x16xf32>
    %231 = arith.mulf %223, %230 : vector<2x8x16xf32>
    %cst_79 = arith.constant dense<0.000000e+00> : vector<2x8xf32>
    %232 = vector.multi_reduction <add>, %231, %cst_79 [2] : vector<2x8x16xf32> to vector<2x8xf32>
    %233 = vector.shape_cast %232 : vector<2x8xf32> to vector<2x8x1xf32>
    %234 = vector.shape_cast %226 : vector<1x16xf32> to vector<1x1x16xf32>
    %235 = vector.broadcast %234 : vector<1x1x16xf32> to vector<2x8x16xf32>
    %236 = arith.mulf %223, %235 : vector<2x8x16xf32>
    %cst_80 = arith.constant dense<0.000000e+00> : vector<2x8xf32>
    %237 = vector.multi_reduction <add>, %236, %cst_80 [2] : vector<2x8x16xf32> to vector<2x8xf32>
    %238 = vector.shape_cast %237 : vector<2x8xf32> to vector<2x8x1xf32>
    %239 = vector.broadcast %233 : vector<2x8x1xf32> to vector<2x8x8xf32>
    %240 = arith.mulf %9, %239 : vector<2x8x8xf32>
    %241 = arith.addf %228, %240 : vector<2x8x8xf32>
    %cst_81 = arith.constant 1.000000e+00 : f32
    %242 = vector.broadcast %cst_81 : f32 to vector<2x8x8xf32>
    %243 = arith.subf %242, %9 : vector<2x8x8xf32>
    %244 = vector.broadcast %238 : vector<2x8x1xf32> to vector<2x8x8xf32>
    %245 = arith.mulf %243, %244 : vector<2x8x8xf32>
    %246 = arith.addf %241, %245 : vector<2x8x8xf32>
    %cst_82 = arith.constant 2.500000e-01 : f32
    %247 = vector.broadcast %cst_82 : f32 to vector<2x8x8xf32>
    %248 = arith.mulf %246, %247 : vector<2x8x8xf32>
    %cst_83 = arith.constant dense<0xFF800000> : vector<2x8xf32>
    %249 = vector.multi_reduction <maximumf>, %248, %cst_83 [2] : vector<2x8x8xf32> to vector<2x8xf32>
    %250 = vector.shape_cast %249 : vector<2x8xf32> to vector<2x8x1xf32>
    %251 = vector.broadcast %250 : vector<2x8x1xf32> to vector<2x8x8xf32>
    %252 = arith.subf %248, %251 : vector<2x8x8xf32>
    %253 = math.exp %252 : vector<2x8x8xf32>
    %cst_84 = arith.constant dense<0.000000e+00> : vector<2x8xf32>
    %254 = vector.multi_reduction <add>, %253, %cst_84 [2] : vector<2x8x8xf32> to vector<2x8xf32>
    %255 = vector.shape_cast %254 : vector<2x8xf32> to vector<2x8x1xf32>
    %256 = tpu.reciprocal %255 {approx = true} : vector<2x8x1xf32> -> vector<2x8x1xf32>
    %257 = vector.broadcast %256 : vector<2x8x1xf32> to vector<2x8x8xf32>
    %258 = arith.mulf %253, %257 : vector<2x8x8xf32>
    "tpu.trace_start"() <{level = 10 : i32, message = "bij,bjd->bid"}> : () -> ()
    %cst_85 = arith.constant dense<0.000000e+00> : vector<2x8x16xf32>
    %259 = tpu.matmul %258, %225, %cst_85 {dimension_numbers = #tpu.dot_dimension_numbers<[2], [1], [1], [2], [0, 0, 0, 1, 1, 2], [0], [0]>} : vector<2x8x8xf32>, vector<2x8x16xf32>, vector<2x8x16xf32> -> vector<2x8x16xf32>
    "tpu.trace_stop"() : () -> ()
    %260 = arith.mulf %258, %9 : vector<2x8x8xf32>
    %cst_86 = arith.constant dense<0.000000e+00> : vector<2x8xf32>
    %261 = vector.multi_reduction <add>, %260, %cst_86 [2] : vector<2x8x8xf32> to vector<2x8xf32>
    %262 = vector.shape_cast %261 : vector<2x8xf32> to vector<2x8x1xf32>
    %cst_87 = arith.constant dense<0.000000e+00> : vector<2x8xf32>
    %263 = vector.multi_reduction <add>, %258, %cst_87 [2] : vector<2x8x8xf32> to vector<2x8xf32>
    %264 = vector.shape_cast %263 : vector<2x8xf32> to vector<2x8x1xf32>
    %265 = vector.shape_cast %227 : vector<1x16xf32> to vector<1x1x16xf32>
    %266 = vector.broadcast %262 : vector<2x8x1xf32> to vector<2x8x16xf32>
    %267 = vector.broadcast %265 : vector<1x1x16xf32> to vector<2x8x16xf32>
    %268 = arith.mulf %266, %267 : vector<2x8x16xf32>
    %269 = arith.addf %259, %268 : vector<2x8x16xf32>
    %270 = arith.subf %264, %262 : vector<2x8x1xf32>
    %271 = vector.shape_cast %226 : vector<1x16xf32> to vector<1x1x16xf32>
    %272 = vector.broadcast %270 : vector<2x8x1xf32> to vector<2x8x16xf32>
    %273 = vector.broadcast %271 : vector<1x1x16xf32> to vector<2x8x16xf32>
    %274 = arith.mulf %272, %273 : vector<2x8x16xf32>
    %275 = arith.addf %269, %274 : vector<2x8x16xf32>
    %276 = tpu.concatenate %116, %169, %222, %275 in 2 : vector<2x8x16xf32>, vector<2x8x16xf32>, vector<2x8x16xf32>, vector<2x8x16xf32> -> vector<2x8x64xf32>
    %277 = vector.shape_cast %276 : vector<2x8x64xf32> to vector<16x64xf32>
    %c0_88 = arith.constant 0 : index
    %c0_89 = arith.constant 0 : index
    %c0_90 = arith.constant 0 : index
    %278 = vector.load %arg15[%c0_88, %c0_89, %c0_90] : memref<2x64x32xf32, #tpu.memory_space<vmem>>, vector<1x64x32xf32>
    %279 = vector.shape_cast %278 : vector<1x64x32xf32> to vector<64x32xf32>
    %cst_91 = arith.constant dense<0.000000e+00> : vector<16x32xf32>
    %280 = tpu.matmul %277, %279, %cst_91 {dimension_numbers = #tpu.dot_dimension_numbers<[1], [0], [0], [1], [0, 0, 1, 1], [], []>} : vector<16x64xf32>, vector<64x32xf32>, vector<16x32xf32> -> vector<16x32xf32>
    %c0_92 = arith.constant 0 : index
    %c0_93 = arith.constant 0 : index
    %c0_94 = arith.constant 0 : index
    %281 = vector.load %arg16[%c0_92, %c0_93, %c0_94] : memref<2x1x32xf32, #tpu.memory_space<vmem>>, vector<1x1x32xf32>
    %282 = vector.shape_cast %281 : vector<1x1x32xf32> to vector<1x32xf32>
    %283 = vector.broadcast %282 : vector<1x32xf32> to vector<16x32xf32>
    %284 = arith.addf %280, %283 : vector<16x32xf32>
    %c0_95 = arith.constant 0 : index
    %c0_96 = arith.constant 0 : index
    %c0_97 = arith.constant 0 : index
    %285 = vector.load %arg17[%c0_95, %c0_96, %c0_97] : memref<2x1x32xf32, #tpu.memory_space<vmem>>, vector<1x1x32xf32>
    %286 = vector.shape_cast %285 : vector<1x1x32xf32> to vector<1x32xf32>
    %287 = vector.broadcast %286 : vector<1x32xf32> to vector<16x32xf32>
    %288 = arith.mulf %284, %287 : vector<16x32xf32>
    %cst_98 = arith.constant dense<0.000000e+00> : vector<16xf32>
    %289 = vector.multi_reduction <add>, %288, %cst_98 [1] : vector<16x32xf32> to vector<16xf32>
    %290 = vector.shape_cast %289 : vector<16xf32> to vector<16x1xf32>
    %c0_99 = arith.constant 0 : index
    %c0_100 = arith.constant 0 : index
    %c0_101 = arith.constant 0 : index
    %291 = vector.load %arg18[%c0_99, %c0_100, %c0_101] : memref<2x1x32xf32, #tpu.memory_space<vmem>>, vector<1x1x32xf32>
    %292 = vector.shape_cast %291 : vector<1x1x32xf32> to vector<1x32xf32>
    %293 = vector.broadcast %292 : vector<1x32xf32> to vector<16x32xf32>
    %294 = arith.mulf %8, %293 : vector<16x32xf32>
    %cst_102 = arith.constant dense<0.000000e+00> : vector<16xf32>
    %295 = vector.multi_reduction <add>, %294, %cst_102 [1] : vector<16x32xf32> to vector<16xf32>
    %296 = vector.shape_cast %295 : vector<16xf32> to vector<16x1xf32>
    %297 = arith.addf %290, %296 : vector<16x1xf32>
    %298 = arith.negf %297 : vector<16x1xf32>
    %299 = math.exp %298 : vector<16x1xf32>
    %cst_103 = arith.constant 1.000000e+00 : f32
    %300 = vector.broadcast %cst_103 : f32 to vector<16x1xf32>
    %301 = arith.addf %300, %299 : vector<16x1xf32>
    %302 = arith.divf %300, %301 : vector<16x1xf32>
    %303 = vector.broadcast %302 : vector<16x1xf32> to vector<16x32xf32>
    %304 = arith.mulf %284, %303 : vector<16x32xf32>
    %cst_104 = arith.constant 1.000000e+00 : f32
    %305 = vector.broadcast %cst_104 : f32 to vector<16x1xf32>
    %306 = arith.subf %305, %302 : vector<16x1xf32>
    %307 = vector.broadcast %306 : vector<16x1xf32> to vector<16x32xf32>
    %308 = arith.mulf %8, %307 : vector<16x32xf32>
    %309 = arith.addf %304, %308 : vector<16x32xf32>
    %cst_105 = arith.constant dense<0.000000e+00> : vector<16xf32>
    %310 = vector.multi_reduction <add>, %309, %cst_105 [1] : vector<16x32xf32> to vector<16xf32>
    %311 = vector.shape_cast %310 : vector<16xf32> to vector<16x1xf32>
    %cst_106 = arith.constant 3.200000e+01 : f32
    %312 = vector.broadcast %cst_106 : f32 to vector<16x1xf32>
    %313 = arith.divf %311, %312 : vector<16x1xf32>
    %314 = vector.broadcast %313 : vector<16x1xf32> to vector<16x32xf32>
    %315 = arith.subf %309, %314 : vector<16x32xf32>
    %316 = arith.mulf %315, %315 : vector<16x32xf32>
    %cst_107 = arith.constant dense<0.000000e+00> : vector<16xf32>
    %317 = vector.multi_reduction <add>, %316, %cst_107 [1] : vector<16x32xf32> to vector<16xf32>
    %318 = vector.shape_cast %317 : vector<16xf32> to vector<16x1xf32>
    %cst_108 = arith.constant 3.200000e+01 : f32
    %319 = vector.broadcast %cst_108 : f32 to vector<16x1xf32>
    %320 = arith.divf %318, %319 : vector<16x1xf32>
    %321 = vector.broadcast %313 : vector<16x1xf32> to vector<16x32xf32>
    %322 = arith.subf %309, %321 : vector<16x32xf32>
    %cst_109 = arith.constant 9.99999974E-6 : f32
    %323 = vector.broadcast %cst_109 : f32 to vector<16x1xf32>
    %324 = arith.addf %320, %323 : vector<16x1xf32>
    %325 = math.rsqrt %324 : vector<16x1xf32>
    %326 = vector.broadcast %325 : vector<16x1xf32> to vector<16x32xf32>
    %327 = arith.mulf %322, %326 : vector<16x32xf32>
    %c1 = arith.constant 1 : index
    %c0_110 = arith.constant 0 : index
    %c0_111 = arith.constant 0 : index
    %328 = vector.load %arg5[%c1, %c0_110, %c0_111] : memref<2x1x32xf32, #tpu.memory_space<vmem>>, vector<1x1x32xf32>
    %329 = vector.shape_cast %328 : vector<1x1x32xf32> to vector<1x32xf32>
    %330 = vector.broadcast %329 : vector<1x32xf32> to vector<16x32xf32>
    %331 = arith.mulf %327, %330 : vector<16x32xf32>
    %c1_112 = arith.constant 1 : index
    %c0_113 = arith.constant 0 : index
    %c0_114 = arith.constant 0 : index
    %332 = vector.load %arg6[%c1_112, %c0_113, %c0_114] : memref<2x1x32xf32, #tpu.memory_space<vmem>>, vector<1x1x32xf32>
    %333 = vector.shape_cast %332 : vector<1x1x32xf32> to vector<1x32xf32>
    %334 = vector.broadcast %333 : vector<1x32xf32> to vector<16x32xf32>
    %335 = arith.addf %331, %334 : vector<16x32xf32>
    %c1_115 = arith.constant 1 : index
    %c0_116 = arith.constant 0 : index
    %c0_117 = arith.constant 0 : index
    %336 = vector.load %arg7[%c1_115, %c0_116, %c0_117] : memref<2x32x64xf32, #tpu.memory_space<vmem>>, vector<1x32x64xf32>
    %337 = vector.shape_cast %336 : vector<1x32x64xf32> to vector<32x64xf32>
    %cst_118 = arith.constant dense<0.000000e+00> : vector<16x64xf32>
    %338 = tpu.matmul %335, %337, %cst_118 {dimension_numbers = #tpu.dot_dimension_numbers<[1], [0], [0], [1], [0, 0, 1, 1], [], []>} : vector<16x32xf32>, vector<32x64xf32>, vector<16x64xf32> -> vector<16x64xf32>
    %c1_119 = arith.constant 1 : index
    %c0_120 = arith.constant 0 : index
    %c0_121 = arith.constant 0 : index
    %339 = vector.load %arg8[%c1_119, %c0_120, %c0_121] : memref<2x1x64xf32, #tpu.memory_space<vmem>>, vector<1x1x64xf32>
    %340 = vector.shape_cast %339 : vector<1x1x64xf32> to vector<1x64xf32>
    %341 = vector.broadcast %340 : vector<1x64xf32> to vector<16x64xf32>
    %342 = arith.addf %338, %341 : vector<16x64xf32>
    %c1_122 = arith.constant 1 : index
    %c0_123 = arith.constant 0 : index
    %c0_124 = arith.constant 0 : index
    %343 = vector.load %arg9[%c1_122, %c0_123, %c0_124] : memref<2x32x64xf32, #tpu.memory_space<vmem>>, vector<1x32x64xf32>
    %344 = vector.shape_cast %343 : vector<1x32x64xf32> to vector<32x64xf32>
    %cst_125 = arith.constant dense<0.000000e+00> : vector<16x64xf32>
    %345 = tpu.matmul %335, %344, %cst_125 {dimension_numbers = #tpu.dot_dimension_numbers<[1], [0], [0], [1], [0, 0, 1, 1], [], []>} : vector<16x32xf32>, vector<32x64xf32>, vector<16x64xf32> -> vector<16x64xf32>
    %c1_126 = arith.constant 1 : index
    %c0_127 = arith.constant 0 : index
    %c0_128 = arith.constant 0 : index
    %346 = vector.load %arg10[%c1_126, %c0_127, %c0_128] : memref<2x1x64xf32, #tpu.memory_space<vmem>>, vector<1x1x64xf32>
    %347 = vector.shape_cast %346 : vector<1x1x64xf32> to vector<1x64xf32>
    %348 = vector.broadcast %347 : vector<1x64xf32> to vector<16x64xf32>
    %349 = arith.addf %345, %348 : vector<16x64xf32>
    %c1_129 = arith.constant 1 : index
    %c0_130 = arith.constant 0 : index
    %c0_131 = arith.constant 0 : index
    %350 = vector.load %arg11[%c1_129, %c0_130, %c0_131] : memref<2x32x64xf32, #tpu.memory_space<vmem>>, vector<1x32x64xf32>
    %351 = vector.shape_cast %350 : vector<1x32x64xf32> to vector<32x64xf32>
    %cst_132 = arith.constant dense<0.000000e+00> : vector<16x64xf32>
    %352 = tpu.matmul %335, %351, %cst_132 {dimension_numbers = #tpu.dot_dimension_numbers<[1], [0], [0], [1], [0, 0, 1, 1], [], []>} : vector<16x32xf32>, vector<32x64xf32>, vector<16x64xf32> -> vector<16x64xf32>
    %c1_133 = arith.constant 1 : index
    %c0_134 = arith.constant 0 : index
    %c0_135 = arith.constant 0 : index
    %353 = vector.load %arg12[%c1_133, %c0_134, %c0_135] : memref<2x1x64xf32, #tpu.memory_space<vmem>>, vector<1x1x64xf32>
    %354 = vector.shape_cast %353 : vector<1x1x64xf32> to vector<1x64xf32>
    %355 = vector.broadcast %354 : vector<1x64xf32> to vector<16x64xf32>
    %356 = arith.addf %352, %355 : vector<16x64xf32>
    %357 = vector.shape_cast %342 : vector<16x64xf32> to vector<2x8x64xf32>
    %358 = vector.shape_cast %349 : vector<16x64xf32> to vector<2x8x64xf32>
    %359 = vector.shape_cast %356 : vector<16x64xf32> to vector<2x8x64xf32>
    %c1_136 = arith.constant 1 : index
    %c0_137 = arith.constant 0 : index
    %c0_138 = arith.constant 0 : index
    %360 = vector.load %arg13[%c1_136, %c0_137, %c0_138] : memref<2x1x64xf32, #tpu.memory_space<vmem>>, vector<1x1x64xf32>
    %361 = vector.shape_cast %360 : vector<1x1x64xf32> to vector<1x64xf32>
    %c1_139 = arith.constant 1 : index
    %c0_140 = arith.constant 0 : index
    %c0_141 = arith.constant 0 : index
    %362 = vector.load %arg14[%c1_139, %c0_140, %c0_141] : memref<2x1x64xf32, #tpu.memory_space<vmem>>, vector<1x1x64xf32>
    %363 = vector.shape_cast %362 : vector<1x1x64xf32> to vector<1x64xf32>
    %364 = vector.extract_strided_slice %357 {offsets = [0, 0, 0], sizes = [2, 8, 16], strides = [1, 1, 1]} : vector<2x8x64xf32> to vector<2x8x16xf32>
    %365 = vector.extract_strided_slice %358 {offsets = [0, 0, 0], sizes = [2, 8, 16], strides = [1, 1, 1]} : vector<2x8x64xf32> to vector<2x8x16xf32>
    %366 = vector.extract_strided_slice %359 {offsets = [0, 0, 0], sizes = [2, 8, 16], strides = [1, 1, 1]} : vector<2x8x64xf32> to vector<2x8x16xf32>
    %367 = vector.extract_strided_slice %361 {offsets = [0, 0], sizes = [1, 16], strides = [1, 1]} : vector<1x64xf32> to vector<1x16xf32>
    %368 = vector.extract_strided_slice %363 {offsets = [0, 0], sizes = [1, 16], strides = [1, 1]} : vector<1x64xf32> to vector<1x16xf32>
    "tpu.trace_start"() <{level = 10 : i32, message = "bid,bjd->bij"}> : () -> ()
    %cst_142 = arith.constant dense<0.000000e+00> : vector<2x8x8xf32>
    %369 = tpu.matmul %364, %365, %cst_142 {dimension_numbers = #tpu.dot_dimension_numbers<[2], [2], [1], [1], [0, 0, 0, 1, 1, 1], [0], [0]>} : vector<2x8x16xf32>, vector<2x8x16xf32>, vector<2x8x8xf32> -> vector<2x8x8xf32>
    "tpu.trace_stop"() : () -> ()
    %370 = vector.shape_cast %368 : vector<1x16xf32> to vector<1x1x16xf32>
    %371 = vector.broadcast %370 : vector<1x1x16xf32> to vector<2x8x16xf32>
    %372 = arith.mulf %364, %371 : vector<2x8x16xf32>
    %cst_143 = arith.constant dense<0.000000e+00> : vector<2x8xf32>
    %373 = vector.multi_reduction <add>, %372, %cst_143 [2] : vector<2x8x16xf32> to vector<2x8xf32>
    %374 = vector.shape_cast %373 : vector<2x8xf32> to vector<2x8x1xf32>
    %375 = vector.shape_cast %367 : vector<1x16xf32> to vector<1x1x16xf32>
    %376 = vector.broadcast %375 : vector<1x1x16xf32> to vector<2x8x16xf32>
    %377 = arith.mulf %364, %376 : vector<2x8x16xf32>
    %cst_144 = arith.constant dense<0.000000e+00> : vector<2x8xf32>
    %378 = vector.multi_reduction <add>, %377, %cst_144 [2] : vector<2x8x16xf32> to vector<2x8xf32>
    %379 = vector.shape_cast %378 : vector<2x8xf32> to vector<2x8x1xf32>
    %380 = vector.broadcast %374 : vector<2x8x1xf32> to vector<2x8x8xf32>
    %381 = arith.mulf %9, %380 : vector<2x8x8xf32>
    %382 = arith.addf %369, %381 : vector<2x8x8xf32>
    %cst_145 = arith.constant 1.000000e+00 : f32
    %383 = vector.broadcast %cst_145 : f32 to vector<2x8x8xf32>
    %384 = arith.subf %383, %9 : vector<2x8x8xf32>
    %385 = vector.broadcast %379 : vector<2x8x1xf32> to vector<2x8x8xf32>
    %386 = arith.mulf %384, %385 : vector<2x8x8xf32>
    %387 = arith.addf %382, %386 : vector<2x8x8xf32>
    %cst_146 = arith.constant 2.500000e-01 : f32
    %388 = vector.broadcast %cst_146 : f32 to vector<2x8x8xf32>
    %389 = arith.mulf %387, %388 : vector<2x8x8xf32>
    %cst_147 = arith.constant dense<0xFF800000> : vector<2x8xf32>
    %390 = vector.multi_reduction <maximumf>, %389, %cst_147 [2] : vector<2x8x8xf32> to vector<2x8xf32>
    %391 = vector.shape_cast %390 : vector<2x8xf32> to vector<2x8x1xf32>
    %392 = vector.broadcast %391 : vector<2x8x1xf32> to vector<2x8x8xf32>
    %393 = arith.subf %389, %392 : vector<2x8x8xf32>
    %394 = math.exp %393 : vector<2x8x8xf32>
    %cst_148 = arith.constant dense<0.000000e+00> : vector<2x8xf32>
    %395 = vector.multi_reduction <add>, %394, %cst_148 [2] : vector<2x8x8xf32> to vector<2x8xf32>
    %396 = vector.shape_cast %395 : vector<2x8xf32> to vector<2x8x1xf32>
    %397 = tpu.reciprocal %396 {approx = true} : vector<2x8x1xf32> -> vector<2x8x1xf32>
    %398 = vector.broadcast %397 : vector<2x8x1xf32> to vector<2x8x8xf32>
    %399 = arith.mulf %394, %398 : vector<2x8x8xf32>
    "tpu.trace_start"() <{level = 10 : i32, message = "bij,bjd->bid"}> : () -> ()
    %cst_149 = arith.constant dense<0.000000e+00> : vector<2x8x16xf32>
    %400 = tpu.matmul %399, %366, %cst_149 {dimension_numbers = #tpu.dot_dimension_numbers<[2], [1], [1], [2], [0, 0, 0, 1, 1, 2], [0], [0]>} : vector<2x8x8xf32>, vector<2x8x16xf32>, vector<2x8x16xf32> -> vector<2x8x16xf32>
    "tpu.trace_stop"() : () -> ()
    %401 = arith.mulf %399, %9 : vector<2x8x8xf32>
    %cst_150 = arith.constant dense<0.000000e+00> : vector<2x8xf32>
    %402 = vector.multi_reduction <add>, %401, %cst_150 [2] : vector<2x8x8xf32> to vector<2x8xf32>
    %403 = vector.shape_cast %402 : vector<2x8xf32> to vector<2x8x1xf32>
    %cst_151 = arith.constant dense<0.000000e+00> : vector<2x8xf32>
    %404 = vector.multi_reduction <add>, %399, %cst_151 [2] : vector<2x8x8xf32> to vector<2x8xf32>
    %405 = vector.shape_cast %404 : vector<2x8xf32> to vector<2x8x1xf32>
    %406 = vector.shape_cast %368 : vector<1x16xf32> to vector<1x1x16xf32>
    %407 = vector.broadcast %403 : vector<2x8x1xf32> to vector<2x8x16xf32>
    %408 = vector.broadcast %406 : vector<1x1x16xf32> to vector<2x8x16xf32>
    %409 = arith.mulf %407, %408 : vector<2x8x16xf32>
    %410 = arith.addf %400, %409 : vector<2x8x16xf32>
    %411 = arith.subf %405, %403 : vector<2x8x1xf32>
    %412 = vector.shape_cast %367 : vector<1x16xf32> to vector<1x1x16xf32>
    %413 = vector.broadcast %411 : vector<2x8x1xf32> to vector<2x8x16xf32>
    %414 = vector.broadcast %412 : vector<1x1x16xf32> to vector<2x8x16xf32>
    %415 = arith.mulf %413, %414 : vector<2x8x16xf32>
    %416 = arith.addf %410, %415 : vector<2x8x16xf32>
    %417 = vector.extract_strided_slice %357 {offsets = [0, 0, 16], sizes = [2, 8, 16], strides = [1, 1, 1]} : vector<2x8x64xf32> to vector<2x8x16xf32>
    %418 = vector.extract_strided_slice %358 {offsets = [0, 0, 16], sizes = [2, 8, 16], strides = [1, 1, 1]} : vector<2x8x64xf32> to vector<2x8x16xf32>
    %419 = vector.extract_strided_slice %359 {offsets = [0, 0, 16], sizes = [2, 8, 16], strides = [1, 1, 1]} : vector<2x8x64xf32> to vector<2x8x16xf32>
    %420 = vector.extract_strided_slice %361 {offsets = [0, 16], sizes = [1, 16], strides = [1, 1]} : vector<1x64xf32> to vector<1x16xf32>
    %421 = vector.extract_strided_slice %363 {offsets = [0, 16], sizes = [1, 16], strides = [1, 1]} : vector<1x64xf32> to vector<1x16xf32>
    "tpu.trace_start"() <{level = 10 : i32, message = "bid,bjd->bij"}> : () -> ()
    %cst_152 = arith.constant dense<0.000000e+00> : vector<2x8x8xf32>
    %422 = tpu.matmul %417, %418, %cst_152 {dimension_numbers = #tpu.dot_dimension_numbers<[2], [2], [1], [1], [0, 0, 0, 1, 1, 1], [0], [0]>} : vector<2x8x16xf32>, vector<2x8x16xf32>, vector<2x8x8xf32> -> vector<2x8x8xf32>
    "tpu.trace_stop"() : () -> ()
    %423 = vector.shape_cast %421 : vector<1x16xf32> to vector<1x1x16xf32>
    %424 = vector.broadcast %423 : vector<1x1x16xf32> to vector<2x8x16xf32>
    %425 = arith.mulf %417, %424 : vector<2x8x16xf32>
    %cst_153 = arith.constant dense<0.000000e+00> : vector<2x8xf32>
    %426 = vector.multi_reduction <add>, %425, %cst_153 [2] : vector<2x8x16xf32> to vector<2x8xf32>
    %427 = vector.shape_cast %426 : vector<2x8xf32> to vector<2x8x1xf32>
    %428 = vector.shape_cast %420 : vector<1x16xf32> to vector<1x1x16xf32>
    %429 = vector.broadcast %428 : vector<1x1x16xf32> to vector<2x8x16xf32>
    %430 = arith.mulf %417, %429 : vector<2x8x16xf32>
    %cst_154 = arith.constant dense<0.000000e+00> : vector<2x8xf32>
    %431 = vector.multi_reduction <add>, %430, %cst_154 [2] : vector<2x8x16xf32> to vector<2x8xf32>
    %432 = vector.shape_cast %431 : vector<2x8xf32> to vector<2x8x1xf32>
    %433 = vector.broadcast %427 : vector<2x8x1xf32> to vector<2x8x8xf32>
    %434 = arith.mulf %9, %433 : vector<2x8x8xf32>
    %435 = arith.addf %422, %434 : vector<2x8x8xf32>
    %cst_155 = arith.constant 1.000000e+00 : f32
    %436 = vector.broadcast %cst_155 : f32 to vector<2x8x8xf32>
    %437 = arith.subf %436, %9 : vector<2x8x8xf32>
    %438 = vector.broadcast %432 : vector<2x8x1xf32> to vector<2x8x8xf32>
    %439 = arith.mulf %437, %438 : vector<2x8x8xf32>
    %440 = arith.addf %435, %439 : vector<2x8x8xf32>
    %cst_156 = arith.constant 2.500000e-01 : f32
    %441 = vector.broadcast %cst_156 : f32 to vector<2x8x8xf32>
    %442 = arith.mulf %440, %441 : vector<2x8x8xf32>
    %cst_157 = arith.constant dense<0xFF800000> : vector<2x8xf32>
    %443 = vector.multi_reduction <maximumf>, %442, %cst_157 [2] : vector<2x8x8xf32> to vector<2x8xf32>
    %444 = vector.shape_cast %443 : vector<2x8xf32> to vector<2x8x1xf32>
    %445 = vector.broadcast %444 : vector<2x8x1xf32> to vector<2x8x8xf32>
    %446 = arith.subf %442, %445 : vector<2x8x8xf32>
    %447 = math.exp %446 : vector<2x8x8xf32>
    %cst_158 = arith.constant dense<0.000000e+00> : vector<2x8xf32>
    %448 = vector.multi_reduction <add>, %447, %cst_158 [2] : vector<2x8x8xf32> to vector<2x8xf32>
    %449 = vector.shape_cast %448 : vector<2x8xf32> to vector<2x8x1xf32>
    %450 = tpu.reciprocal %449 {approx = true} : vector<2x8x1xf32> -> vector<2x8x1xf32>
    %451 = vector.broadcast %450 : vector<2x8x1xf32> to vector<2x8x8xf32>
    %452 = arith.mulf %447, %451 : vector<2x8x8xf32>
    "tpu.trace_start"() <{level = 10 : i32, message = "bij,bjd->bid"}> : () -> ()
    %cst_159 = arith.constant dense<0.000000e+00> : vector<2x8x16xf32>
    %453 = tpu.matmul %452, %419, %cst_159 {dimension_numbers = #tpu.dot_dimension_numbers<[2], [1], [1], [2], [0, 0, 0, 1, 1, 2], [0], [0]>} : vector<2x8x8xf32>, vector<2x8x16xf32>, vector<2x8x16xf32> -> vector<2x8x16xf32>
    "tpu.trace_stop"() : () -> ()
    %454 = arith.mulf %452, %9 : vector<2x8x8xf32>
    %cst_160 = arith.constant dense<0.000000e+00> : vector<2x8xf32>
    %455 = vector.multi_reduction <add>, %454, %cst_160 [2] : vector<2x8x8xf32> to vector<2x8xf32>
    %456 = vector.shape_cast %455 : vector<2x8xf32> to vector<2x8x1xf32>
    %cst_161 = arith.constant dense<0.000000e+00> : vector<2x8xf32>
    %457 = vector.multi_reduction <add>, %452, %cst_161 [2] : vector<2x8x8xf32> to vector<2x8xf32>
    %458 = vector.shape_cast %457 : vector<2x8xf32> to vector<2x8x1xf32>
    %459 = vector.shape_cast %421 : vector<1x16xf32> to vector<1x1x16xf32>
    %460 = vector.broadcast %456 : vector<2x8x1xf32> to vector<2x8x16xf32>
    %461 = vector.broadcast %459 : vector<1x1x16xf32> to vector<2x8x16xf32>
    %462 = arith.mulf %460, %461 : vector<2x8x16xf32>
    %463 = arith.addf %453, %462 : vector<2x8x16xf32>
    %464 = arith.subf %458, %456 : vector<2x8x1xf32>
    %465 = vector.shape_cast %420 : vector<1x16xf32> to vector<1x1x16xf32>
    %466 = vector.broadcast %464 : vector<2x8x1xf32> to vector<2x8x16xf32>
    %467 = vector.broadcast %465 : vector<1x1x16xf32> to vector<2x8x16xf32>
    %468 = arith.mulf %466, %467 : vector<2x8x16xf32>
    %469 = arith.addf %463, %468 : vector<2x8x16xf32>
    %470 = vector.extract_strided_slice %357 {offsets = [0, 0, 32], sizes = [2, 8, 16], strides = [1, 1, 1]} : vector<2x8x64xf32> to vector<2x8x16xf32>
    %471 = vector.extract_strided_slice %358 {offsets = [0, 0, 32], sizes = [2, 8, 16], strides = [1, 1, 1]} : vector<2x8x64xf32> to vector<2x8x16xf32>
    %472 = vector.extract_strided_slice %359 {offsets = [0, 0, 32], sizes = [2, 8, 16], strides = [1, 1, 1]} : vector<2x8x64xf32> to vector<2x8x16xf32>
    %473 = vector.extract_strided_slice %361 {offsets = [0, 32], sizes = [1, 16], strides = [1, 1]} : vector<1x64xf32> to vector<1x16xf32>
    %474 = vector.extract_strided_slice %363 {offsets = [0, 32], sizes = [1, 16], strides = [1, 1]} : vector<1x64xf32> to vector<1x16xf32>
    "tpu.trace_start"() <{level = 10 : i32, message = "bid,bjd->bij"}> : () -> ()
    %cst_162 = arith.constant dense<0.000000e+00> : vector<2x8x8xf32>
    %475 = tpu.matmul %470, %471, %cst_162 {dimension_numbers = #tpu.dot_dimension_numbers<[2], [2], [1], [1], [0, 0, 0, 1, 1, 1], [0], [0]>} : vector<2x8x16xf32>, vector<2x8x16xf32>, vector<2x8x8xf32> -> vector<2x8x8xf32>
    "tpu.trace_stop"() : () -> ()
    %476 = vector.shape_cast %474 : vector<1x16xf32> to vector<1x1x16xf32>
    %477 = vector.broadcast %476 : vector<1x1x16xf32> to vector<2x8x16xf32>
    %478 = arith.mulf %470, %477 : vector<2x8x16xf32>
    %cst_163 = arith.constant dense<0.000000e+00> : vector<2x8xf32>
    %479 = vector.multi_reduction <add>, %478, %cst_163 [2] : vector<2x8x16xf32> to vector<2x8xf32>
    %480 = vector.shape_cast %479 : vector<2x8xf32> to vector<2x8x1xf32>
    %481 = vector.shape_cast %473 : vector<1x16xf32> to vector<1x1x16xf32>
    %482 = vector.broadcast %481 : vector<1x1x16xf32> to vector<2x8x16xf32>
    %483 = arith.mulf %470, %482 : vector<2x8x16xf32>
    %cst_164 = arith.constant dense<0.000000e+00> : vector<2x8xf32>
    %484 = vector.multi_reduction <add>, %483, %cst_164 [2] : vector<2x8x16xf32> to vector<2x8xf32>
    %485 = vector.shape_cast %484 : vector<2x8xf32> to vector<2x8x1xf32>
    %486 = vector.broadcast %480 : vector<2x8x1xf32> to vector<2x8x8xf32>
    %487 = arith.mulf %9, %486 : vector<2x8x8xf32>
    %488 = arith.addf %475, %487 : vector<2x8x8xf32>
    %cst_165 = arith.constant 1.000000e+00 : f32
    %489 = vector.broadcast %cst_165 : f32 to vector<2x8x8xf32>
    %490 = arith.subf %489, %9 : vector<2x8x8xf32>
    %491 = vector.broadcast %485 : vector<2x8x1xf32> to vector<2x8x8xf32>
    %492 = arith.mulf %490, %491 : vector<2x8x8xf32>
    %493 = arith.addf %488, %492 : vector<2x8x8xf32>
    %cst_166 = arith.constant 2.500000e-01 : f32
    %494 = vector.broadcast %cst_166 : f32 to vector<2x8x8xf32>
    %495 = arith.mulf %493, %494 : vector<2x8x8xf32>
    %cst_167 = arith.constant dense<0xFF800000> : vector<2x8xf32>
    %496 = vector.multi_reduction <maximumf>, %495, %cst_167 [2] : vector<2x8x8xf32> to vector<2x8xf32>
    %497 = vector.shape_cast %496 : vector<2x8xf32> to vector<2x8x1xf32>
    %498 = vector.broadcast %497 : vector<2x8x1xf32> to vector<2x8x8xf32>
    %499 = arith.subf %495, %498 : vector<2x8x8xf32>
    %500 = math.exp %499 : vector<2x8x8xf32>
    %cst_168 = arith.constant dense<0.000000e+00> : vector<2x8xf32>
    %501 = vector.multi_reduction <add>, %500, %cst_168 [2] : vector<2x8x8xf32> to vector<2x8xf32>
    %502 = vector.shape_cast %501 : vector<2x8xf32> to vector<2x8x1xf32>
    %503 = tpu.reciprocal %502 {approx = true} : vector<2x8x1xf32> -> vector<2x8x1xf32>
    %504 = vector.broadcast %503 : vector<2x8x1xf32> to vector<2x8x8xf32>
    %505 = arith.mulf %500, %504 : vector<2x8x8xf32>
    "tpu.trace_start"() <{level = 10 : i32, message = "bij,bjd->bid"}> : () -> ()
    %cst_169 = arith.constant dense<0.000000e+00> : vector<2x8x16xf32>
    %506 = tpu.matmul %505, %472, %cst_169 {dimension_numbers = #tpu.dot_dimension_numbers<[2], [1], [1], [2], [0, 0, 0, 1, 1, 2], [0], [0]>} : vector<2x8x8xf32>, vector<2x8x16xf32>, vector<2x8x16xf32> -> vector<2x8x16xf32>
    "tpu.trace_stop"() : () -> ()
    %507 = arith.mulf %505, %9 : vector<2x8x8xf32>
    %cst_170 = arith.constant dense<0.000000e+00> : vector<2x8xf32>
    %508 = vector.multi_reduction <add>, %507, %cst_170 [2] : vector<2x8x8xf32> to vector<2x8xf32>
    %509 = vector.shape_cast %508 : vector<2x8xf32> to vector<2x8x1xf32>
    %cst_171 = arith.constant dense<0.000000e+00> : vector<2x8xf32>
    %510 = vector.multi_reduction <add>, %505, %cst_171 [2] : vector<2x8x8xf32> to vector<2x8xf32>
    %511 = vector.shape_cast %510 : vector<2x8xf32> to vector<2x8x1xf32>
    %512 = vector.shape_cast %474 : vector<1x16xf32> to vector<1x1x16xf32>
    %513 = vector.broadcast %509 : vector<2x8x1xf32> to vector<2x8x16xf32>
    %514 = vector.broadcast %512 : vector<1x1x16xf32> to vector<2x8x16xf32>
    %515 = arith.mulf %513, %514 : vector<2x8x16xf32>
    %516 = arith.addf %506, %515 : vector<2x8x16xf32>
    %517 = arith.subf %511, %509 : vector<2x8x1xf32>
    %518 = vector.shape_cast %473 : vector<1x16xf32> to vector<1x1x16xf32>
    %519 = vector.broadcast %517 : vector<2x8x1xf32> to vector<2x8x16xf32>
    %520 = vector.broadcast %518 : vector<1x1x16xf32> to vector<2x8x16xf32>
    %521 = arith.mulf %519, %520 : vector<2x8x16xf32>
    %522 = arith.addf %516, %521 : vector<2x8x16xf32>
    %523 = vector.extract_strided_slice %357 {offsets = [0, 0, 48], sizes = [2, 8, 16], strides = [1, 1, 1]} : vector<2x8x64xf32> to vector<2x8x16xf32>
    %524 = vector.extract_strided_slice %358 {offsets = [0, 0, 48], sizes = [2, 8, 16], strides = [1, 1, 1]} : vector<2x8x64xf32> to vector<2x8x16xf32>
    %525 = vector.extract_strided_slice %359 {offsets = [0, 0, 48], sizes = [2, 8, 16], strides = [1, 1, 1]} : vector<2x8x64xf32> to vector<2x8x16xf32>
    %526 = vector.extract_strided_slice %361 {offsets = [0, 48], sizes = [1, 16], strides = [1, 1]} : vector<1x64xf32> to vector<1x16xf32>
    %527 = vector.extract_strided_slice %363 {offsets = [0, 48], sizes = [1, 16], strides = [1, 1]} : vector<1x64xf32> to vector<1x16xf32>
    "tpu.trace_start"() <{level = 10 : i32, message = "bid,bjd->bij"}> : () -> ()
    %cst_172 = arith.constant dense<0.000000e+00> : vector<2x8x8xf32>
    %528 = tpu.matmul %523, %524, %cst_172 {dimension_numbers = #tpu.dot_dimension_numbers<[2], [2], [1], [1], [0, 0, 0, 1, 1, 1], [0], [0]>} : vector<2x8x16xf32>, vector<2x8x16xf32>, vector<2x8x8xf32> -> vector<2x8x8xf32>
    "tpu.trace_stop"() : () -> ()
    %529 = vector.shape_cast %527 : vector<1x16xf32> to vector<1x1x16xf32>
    %530 = vector.broadcast %529 : vector<1x1x16xf32> to vector<2x8x16xf32>
    %531 = arith.mulf %523, %530 : vector<2x8x16xf32>
    %cst_173 = arith.constant dense<0.000000e+00> : vector<2x8xf32>
    %532 = vector.multi_reduction <add>, %531, %cst_173 [2] : vector<2x8x16xf32> to vector<2x8xf32>
    %533 = vector.shape_cast %532 : vector<2x8xf32> to vector<2x8x1xf32>
    %534 = vector.shape_cast %526 : vector<1x16xf32> to vector<1x1x16xf32>
    %535 = vector.broadcast %534 : vector<1x1x16xf32> to vector<2x8x16xf32>
    %536 = arith.mulf %523, %535 : vector<2x8x16xf32>
    %cst_174 = arith.constant dense<0.000000e+00> : vector<2x8xf32>
    %537 = vector.multi_reduction <add>, %536, %cst_174 [2] : vector<2x8x16xf32> to vector<2x8xf32>
    %538 = vector.shape_cast %537 : vector<2x8xf32> to vector<2x8x1xf32>
    %539 = vector.broadcast %533 : vector<2x8x1xf32> to vector<2x8x8xf32>
    %540 = arith.mulf %9, %539 : vector<2x8x8xf32>
    %541 = arith.addf %528, %540 : vector<2x8x8xf32>
    %cst_175 = arith.constant 1.000000e+00 : f32
    %542 = vector.broadcast %cst_175 : f32 to vector<2x8x8xf32>
    %543 = arith.subf %542, %9 : vector<2x8x8xf32>
    %544 = vector.broadcast %538 : vector<2x8x1xf32> to vector<2x8x8xf32>
    %545 = arith.mulf %543, %544 : vector<2x8x8xf32>
    %546 = arith.addf %541, %545 : vector<2x8x8xf32>
    %cst_176 = arith.constant 2.500000e-01 : f32
    %547 = vector.broadcast %cst_176 : f32 to vector<2x8x8xf32>
    %548 = arith.mulf %546, %547 : vector<2x8x8xf32>
    %cst_177 = arith.constant dense<0xFF800000> : vector<2x8xf32>
    %549 = vector.multi_reduction <maximumf>, %548, %cst_177 [2] : vector<2x8x8xf32> to vector<2x8xf32>
    %550 = vector.shape_cast %549 : vector<2x8xf32> to vector<2x8x1xf32>
    %551 = vector.broadcast %550 : vector<2x8x1xf32> to vector<2x8x8xf32>
    %552 = arith.subf %548, %551 : vector<2x8x8xf32>
    %553 = math.exp %552 : vector<2x8x8xf32>
    %cst_178 = arith.constant dense<0.000000e+00> : vector<2x8xf32>
    %554 = vector.multi_reduction <add>, %553, %cst_178 [2] : vector<2x8x8xf32> to vector<2x8xf32>
    %555 = vector.shape_cast %554 : vector<2x8xf32> to vector<2x8x1xf32>
    %556 = tpu.reciprocal %555 {approx = true} : vector<2x8x1xf32> -> vector<2x8x1xf32>
    %557 = vector.broadcast %556 : vector<2x8x1xf32> to vector<2x8x8xf32>
    %558 = arith.mulf %553, %557 : vector<2x8x8xf32>
    "tpu.trace_start"() <{level = 10 : i32, message = "bij,bjd->bid"}> : () -> ()
    %cst_179 = arith.constant dense<0.000000e+00> : vector<2x8x16xf32>
    %559 = tpu.matmul %558, %525, %cst_179 {dimension_numbers = #tpu.dot_dimension_numbers<[2], [1], [1], [2], [0, 0, 0, 1, 1, 2], [0], [0]>} : vector<2x8x8xf32>, vector<2x8x16xf32>, vector<2x8x16xf32> -> vector<2x8x16xf32>
    "tpu.trace_stop"() : () -> ()
    %560 = arith.mulf %558, %9 : vector<2x8x8xf32>
    %cst_180 = arith.constant dense<0.000000e+00> : vector<2x8xf32>
    %561 = vector.multi_reduction <add>, %560, %cst_180 [2] : vector<2x8x8xf32> to vector<2x8xf32>
    %562 = vector.shape_cast %561 : vector<2x8xf32> to vector<2x8x1xf32>
    %cst_181 = arith.constant dense<0.000000e+00> : vector<2x8xf32>
    %563 = vector.multi_reduction <add>, %558, %cst_181 [2] : vector<2x8x8xf32> to vector<2x8xf32>
    %564 = vector.shape_cast %563 : vector<2x8xf32> to vector<2x8x1xf32>
    %565 = vector.shape_cast %527 : vector<1x16xf32> to vector<1x1x16xf32>
    %566 = vector.broadcast %562 : vector<2x8x1xf32> to vector<2x8x16xf32>
    %567 = vector.broadcast %565 : vector<1x1x16xf32> to vector<2x8x16xf32>
    %568 = arith.mulf %566, %567 : vector<2x8x16xf32>
    %569 = arith.addf %559, %568 : vector<2x8x16xf32>
    %570 = arith.subf %564, %562 : vector<2x8x1xf32>
    %571 = vector.shape_cast %526 : vector<1x16xf32> to vector<1x1x16xf32>
    %572 = vector.broadcast %570 : vector<2x8x1xf32> to vector<2x8x16xf32>
    %573 = vector.broadcast %571 : vector<1x1x16xf32> to vector<2x8x16xf32>
    %574 = arith.mulf %572, %573 : vector<2x8x16xf32>
    %575 = arith.addf %569, %574 : vector<2x8x16xf32>
    %576 = tpu.concatenate %416, %469, %522, %575 in 2 : vector<2x8x16xf32>, vector<2x8x16xf32>, vector<2x8x16xf32>, vector<2x8x16xf32> -> vector<2x8x64xf32>
    %577 = vector.shape_cast %576 : vector<2x8x64xf32> to vector<16x64xf32>
    %c1_182 = arith.constant 1 : index
    %c0_183 = arith.constant 0 : index
    %c0_184 = arith.constant 0 : index
    %578 = vector.load %arg15[%c1_182, %c0_183, %c0_184] : memref<2x64x32xf32, #tpu.memory_space<vmem>>, vector<1x64x32xf32>
    %579 = vector.shape_cast %578 : vector<1x64x32xf32> to vector<64x32xf32>
    %cst_185 = arith.constant dense<0.000000e+00> : vector<16x32xf32>
    %580 = tpu.matmul %577, %579, %cst_185 {dimension_numbers = #tpu.dot_dimension_numbers<[1], [0], [0], [1], [0, 0, 1, 1], [], []>} : vector<16x64xf32>, vector<64x32xf32>, vector<16x32xf32> -> vector<16x32xf32>
    %c1_186 = arith.constant 1 : index
    %c0_187 = arith.constant 0 : index
    %c0_188 = arith.constant 0 : index
    %581 = vector.load %arg16[%c1_186, %c0_187, %c0_188] : memref<2x1x32xf32, #tpu.memory_space<vmem>>, vector<1x1x32xf32>
    %582 = vector.shape_cast %581 : vector<1x1x32xf32> to vector<1x32xf32>
    %583 = vector.broadcast %582 : vector<1x32xf32> to vector<16x32xf32>
    %584 = arith.addf %580, %583 : vector<16x32xf32>
    %c1_189 = arith.constant 1 : index
    %c0_190 = arith.constant 0 : index
    %c0_191 = arith.constant 0 : index
    %585 = vector.load %arg17[%c1_189, %c0_190, %c0_191] : memref<2x1x32xf32, #tpu.memory_space<vmem>>, vector<1x1x32xf32>
    %586 = vector.shape_cast %585 : vector<1x1x32xf32> to vector<1x32xf32>
    %587 = vector.broadcast %586 : vector<1x32xf32> to vector<16x32xf32>
    %588 = arith.mulf %584, %587 : vector<16x32xf32>
    %cst_192 = arith.constant dense<0.000000e+00> : vector<16xf32>
    %589 = vector.multi_reduction <add>, %588, %cst_192 [1] : vector<16x32xf32> to vector<16xf32>
    %590 = vector.shape_cast %589 : vector<16xf32> to vector<16x1xf32>
    %c1_193 = arith.constant 1 : index
    %c0_194 = arith.constant 0 : index
    %c0_195 = arith.constant 0 : index
    %591 = vector.load %arg18[%c1_193, %c0_194, %c0_195] : memref<2x1x32xf32, #tpu.memory_space<vmem>>, vector<1x1x32xf32>
    %592 = vector.shape_cast %591 : vector<1x1x32xf32> to vector<1x32xf32>
    %593 = vector.broadcast %592 : vector<1x32xf32> to vector<16x32xf32>
    %594 = arith.mulf %309, %593 : vector<16x32xf32>
    %cst_196 = arith.constant dense<0.000000e+00> : vector<16xf32>
    %595 = vector.multi_reduction <add>, %594, %cst_196 [1] : vector<16x32xf32> to vector<16xf32>
    %596 = vector.shape_cast %595 : vector<16xf32> to vector<16x1xf32>
    %597 = arith.addf %590, %596 : vector<16x1xf32>
    %598 = arith.negf %597 : vector<16x1xf32>
    %599 = math.exp %598 : vector<16x1xf32>
    %cst_197 = arith.constant 1.000000e+00 : f32
    %600 = vector.broadcast %cst_197 : f32 to vector<16x1xf32>
    %601 = arith.addf %600, %599 : vector<16x1xf32>
    %602 = arith.divf %600, %601 : vector<16x1xf32>
    %603 = vector.broadcast %602 : vector<16x1xf32> to vector<16x32xf32>
    %604 = arith.mulf %584, %603 : vector<16x32xf32>
    %cst_198 = arith.constant 1.000000e+00 : f32
    %605 = vector.broadcast %cst_198 : f32 to vector<16x1xf32>
    %606 = arith.subf %605, %602 : vector<16x1xf32>
    %607 = vector.broadcast %606 : vector<16x1xf32> to vector<16x32xf32>
    %608 = arith.mulf %309, %607 : vector<16x32xf32>
    %609 = arith.addf %604, %608 : vector<16x32xf32>
    %610 = vector.shape_cast %609 : vector<16x32xf32> to vector<2x8x32xf32>
    %c0_199 = arith.constant 0 : index
    %c0_200 = arith.constant 0 : index
    %c0_201 = arith.constant 0 : index
    %611 = vector.load %arg19[%c0_199, %c0_200, %c0_201] : memref<2x8x32xf32, #tpu.memory_space<vmem>>, vector<2x8x32xf32>
    tpu.vector_store %arg19[%c0_199, %c0_200, %c0_201], %610 {strides = array<i32>} : memref<2x8x32xf32, #tpu.memory_space<vmem>>, vector<2x8x32xf32>,
    return
  }
  func.func @transform_0(%arg0: i32) -> (i32, i32, i32) {
    %c0_i32 = arith.constant 0 : i32
    %c0_i32_0 = arith.constant 0 : i32
    %c0_i32_1 = arith.constant 0 : i32
    return %arg0, %c0_i32, %c0_i32_0 : i32, i32, i32
  }
  func.func @transform_1(%arg0: i32) -> (i32, i32, i32) {
    %c0_i32 = arith.constant 0 : i32
    %c0_i32_0 = arith.constant 0 : i32
    %c0_i32_1 = arith.constant 0 : i32
    return %arg0, %c0_i32, %c0_i32_0 : i32, i32, i32
  }
  func.func @transform_2(%arg0: i32) -> (i32, i32) {
    %c0_i32 = arith.constant 0 : i32
    %c0_i32_0 = arith.constant 0 : i32
    %c0_i32_1 = arith.constant 0 : i32
    return %c0_i32, %c0_i32_0 : i32, i32
  }
  func.func @transform_3(%arg0: i32) -> (i32, i32) {
    %c0_i32 = arith.constant 0 : i32
    %c0_i32_0 = arith.constant 0 : i32
    %c0_i32_1 = arith.constant 0 : i32
    return %c0_i32, %c0_i32_0 : i32, i32
  }
  func.func @transform_4(%arg0: i32) -> (i32, i32, i32) {
    %c0_i32 = arith.constant 0 : i32
    %c0_i32_0 = arith.constant 0 : i32
    %c0_i32_1 = arith.constant 0 : i32
    %c0_i32_2 = arith.constant 0 : i32
    return %c0_i32, %c0_i32_0, %c0_i32_1 : i32, i32, i32
  }
  func.func @transform_5(%arg0: i32) -> (i32, i32, i32) {
    %c0_i32 = arith.constant 0 : i32
    %c0_i32_0 = arith.constant 0 : i32
    %c0_i32_1 = arith.constant 0 : i32
    %c0_i32_2 = arith.constant 0 : i32
    return %c0_i32, %c0_i32_0, %c0_i32_1 : i32, i32, i32
  }
  func.func @transform_6(%arg0: i32) -> (i32, i32, i32) {
    %c0_i32 = arith.constant 0 : i32
    %c0_i32_0 = arith.constant 0 : i32
    %c0_i32_1 = arith.constant 0 : i32
    %c0_i32_2 = arith.constant 0 : i32
    return %c0_i32, %c0_i32_0, %c0_i32_1 : i32, i32, i32
  }
  func.func @transform_7(%arg0: i32) -> (i32, i32, i32) {
    %c0_i32 = arith.constant 0 : i32
    %c0_i32_0 = arith.constant 0 : i32
    %c0_i32_1 = arith.constant 0 : i32
    %c0_i32_2 = arith.constant 0 : i32
    return %c0_i32, %c0_i32_0, %c0_i32_1 : i32, i32, i32
  }
  func.func @transform_8(%arg0: i32) -> (i32, i32, i32) {
    %c0_i32 = arith.constant 0 : i32
    %c0_i32_0 = arith.constant 0 : i32
    %c0_i32_1 = arith.constant 0 : i32
    %c0_i32_2 = arith.constant 0 : i32
    return %c0_i32, %c0_i32_0, %c0_i32_1 : i32, i32, i32
  }
  func.func @transform_9(%arg0: i32) -> (i32, i32, i32) {
    %c0_i32 = arith.constant 0 : i32
    %c0_i32_0 = arith.constant 0 : i32
    %c0_i32_1 = arith.constant 0 : i32
    %c0_i32_2 = arith.constant 0 : i32
    return %c0_i32, %c0_i32_0, %c0_i32_1 : i32, i32, i32
  }
  func.func @transform_10(%arg0: i32) -> (i32, i32, i32) {
    %c0_i32 = arith.constant 0 : i32
    %c0_i32_0 = arith.constant 0 : i32
    %c0_i32_1 = arith.constant 0 : i32
    %c0_i32_2 = arith.constant 0 : i32
    return %c0_i32, %c0_i32_0, %c0_i32_1 : i32, i32, i32
  }
  func.func @transform_11(%arg0: i32) -> (i32, i32, i32) {
    %c0_i32 = arith.constant 0 : i32
    %c0_i32_0 = arith.constant 0 : i32
    %c0_i32_1 = arith.constant 0 : i32
    %c0_i32_2 = arith.constant 0 : i32
    return %c0_i32, %c0_i32_0, %c0_i32_1 : i32, i32, i32
  }
  func.func @transform_12(%arg0: i32) -> (i32, i32, i32) {
    %c0_i32 = arith.constant 0 : i32
    %c0_i32_0 = arith.constant 0 : i32
    %c0_i32_1 = arith.constant 0 : i32
    %c0_i32_2 = arith.constant 0 : i32
    return %c0_i32, %c0_i32_0, %c0_i32_1 : i32, i32, i32
  }
  func.func @transform_13(%arg0: i32) -> (i32, i32, i32) {
    %c0_i32 = arith.constant 0 : i32
    %c0_i32_0 = arith.constant 0 : i32
    %c0_i32_1 = arith.constant 0 : i32
    %c0_i32_2 = arith.constant 0 : i32
    return %c0_i32, %c0_i32_0, %c0_i32_1 : i32, i32, i32
  }
  func.func @transform_14(%arg0: i32) -> (i32, i32, i32) {
    %c0_i32 = arith.constant 0 : i32
    %c0_i32_0 = arith.constant 0 : i32
    %c0_i32_1 = arith.constant 0 : i32
    %c0_i32_2 = arith.constant 0 : i32
    return %c0_i32, %c0_i32_0, %c0_i32_1 : i32, i32, i32
  }
  func.func @transform_15(%arg0: i32) -> (i32, i32, i32) {
    %c0_i32 = arith.constant 0 : i32
    %c0_i32_0 = arith.constant 0 : i32
    %c0_i32_1 = arith.constant 0 : i32
    %c0_i32_2 = arith.constant 0 : i32
    return %c0_i32, %c0_i32_0, %c0_i32_1 : i32, i32, i32
  }
  func.func @transform_16(%arg0: i32) -> (i32, i32, i32) {
    %c0_i32 = arith.constant 0 : i32
    %c0_i32_0 = arith.constant 0 : i32
    %c0_i32_1 = arith.constant 0 : i32
    %c0_i32_2 = arith.constant 0 : i32
    return %c0_i32, %c0_i32_0, %c0_i32_1 : i32, i32, i32
  }
  func.func @transform_17(%arg0: i32) -> (i32, i32, i32) {
    %c0_i32 = arith.constant 0 : i32
    %c0_i32_0 = arith.constant 0 : i32
    %c0_i32_1 = arith.constant 0 : i32
    %c0_i32_2 = arith.constant 0 : i32
    return %c0_i32, %c0_i32_0, %c0_i32_1 : i32, i32, i32
  }
  func.func @transform_18(%arg0: i32) -> (i32, i32, i32) {
    %c0_i32 = arith.constant 0 : i32
    %c0_i32_0 = arith.constant 0 : i32
    %c0_i32_1 = arith.constant 0 : i32
    return %arg0, %c0_i32, %c0_i32_0 : i32, i32, i32
  }
}

</mosaic_0001>

<llo_original>
// kernel: tpu_custom_call.1
$region0: #{tpu_custom_call.1}
  #allocation0 [shape = 'u32[]', space=smem, size = 0x4, offset = 0x4, fixed_abs, tag = 'smem constant byte address 0x4 - core index']
  #allocation1 [shape = 'u32[144,128]{1,0:T(1,128)}', space=vmem, size = 0x12000, scoped, tag = 'internal scratch']
  %s0 = inlined_call_operand.hbm [shape: f32[2,8,16], index: 0, kind: input, shape index: {}]
  %s1 = inlined_call_operand.hbm [shape: f32[2,8,8], index: 1, kind: input, shape index: {}]
  %s2 = inlined_call_operand.hbm [shape: f32[16,32], index: 2, kind: input, shape index: {}]
  %s3 = inlined_call_operand.hbm [shape: f32[1,32], index: 3, kind: input, shape index: {}]
  %s4 = inlined_call_operand.vmem [shape: f32[2,1,32], index: 4, kind: input, shape index: {}]
  %s5 = inlined_call_operand.vmem [shape: f32[2,1,32], index: 5, kind: input, shape index: {}]
  %s6 = inlined_call_operand.vmem [shape: f32[2,32,64], index: 6, kind: input, shape index: {}]
  %s7 = inlined_call_operand.vmem [shape: f32[2,1,64], index: 7, kind: input, shape index: {}]
  %s8 = inlined_call_operand.vmem [shape: f32[2,32,64], index: 8, kind: input, shape index: {}]
  %s9 = inlined_call_operand.vmem [shape: f32[2,1,64], index: 9, kind: input, shape index: {}]
  %s10 = inlined_call_operand.vmem [shape: f32[2,32,64], index: 10, kind: input, shape index: {}]
  %s11 = inlined_call_operand.vmem [shape: f32[2,1,64], index: 11, kind: input, shape index: {}]
  %s12 = inlined_call_operand.vmem [shape: f32[2,1,64], index: 12, kind: input, shape index: {}]
  %s13 = inlined_call_operand.vmem [shape: f32[2,1,64], index: 13, kind: input, shape index: {}]
  %s14 = inlined_call_operand.vmem [shape: f32[2,64,32], index: 14, kind: input, shape index: {}]
  %s15 = inlined_call_operand.vmem [shape: f32[2,1,32], index: 15, kind: input, shape index: {}]
  %s16 = inlined_call_operand.vmem [shape: f32[2,1,32], index: 16, kind: input, shape index: {}]
  %s17 = inlined_call_operand.vmem [shape: f32[2,1,32], index: 17, kind: input, shape index: {}]
  %s18 = inlined_call_operand.hbm [shape: f32[2,8,32], index: 18, kind: output, shape index: {}]
  %s19 = sld [smem:[#allocation0]]
  $region98: #{tpu_custom_call.1} parent=0
    _
  %s21 = ssub.s32 1, %s19
  %s22 = scalar_select 0, %s21, %s19
  $region1: #{tpu_custom_call.1} parent=0
    #allocation2 [shape = 'u8[8192]{0}', space=vmem, size = 0x2000, scoped, tag = 'input window, operand 0, single buffered']
    #allocation3 [shape = 's32[1]{0}', space=sflag, size = 0x4, scoped, tag = 'scoped memory for tpu_custom_call.1']
    #allocation4 [shape = 's32[1]{0}', space=sflag, size = 0x4, scoped, tag = 'scoped memory for tpu_custom_call.1']
    #allocation5 [shape = 'u8[8192]{0}', space=vmem, size = 0x2000, scoped, tag = 'input window, operand 1, single buffered']
    #allocation6 [shape = 's32[1]{0}', space=sflag, size = 0x4, scoped, tag = 'scoped memory for tpu_custom_call.1']
    #allocation7 [shape = 'u8[8192]{0}', space=vmem, size = 0x2000, scoped, tag = 'input window, operand 2, single buffered']
    #allocation8 [shape = 'u8[512]{0}', space=vmem, size = 0x400, scoped, tag = 'input window, operand 3, single buffered']
    #allocation9 [shape = 's32[1]{0}', space=sflag, size = 0x4, scoped, tag = 'scoped memory for tpu_custom_call.1']
    #allocation10 [shape = 'u8[8192]{0}', space=vmem, size = 0x2000, scoped, tag = 'output window, operand 0, single buffered']
    %23 = vsyncpa [#allocation3], 0
    %24 = vsyncpa [#allocation6], 0
    %25 = vsyncpa [#allocation9], 0
    %26 = vsyncpa [#allocation4], 0
    // Predicated region
    $region2: #{tpu_custom_call.1} parent=1 // pred_check
      _
    $region3: #{tpu_custom_call.1} parent=1 // pred_check_branch
      %28 = sbr.rel (0) target = $region5
    $region4: #{tpu_custom_call.1} parent=1 // pred_region
      %s30 = ssub.s32 256, 256
      %31 = vsyncadd [#allocation3], %s30
      %s32 = sshll.u32 [#allocation2], 4
      %s33 = int_to_ptr.vmem [resolvable:$true] %s32
      %38 = dma.hbm_to_vmem [thread:$0]  %s0, 256, %s33, [#allocation3], 128, 128, 8
    $region5: #{tpu_custom_call.1} parent=1 // pred_fallthru
      _
    // Predicated region
    $region6: #{tpu_custom_call.1} parent=1 // pred_check
      _
    $region7: #{tpu_custom_call.1} parent=1 // pred_check_branch
      %40 = sbr.rel (0) target = $region9
    $region8: #{tpu_custom_call.1} parent=1 // pred_region
      %s42 = ssub.s32 256, 256
      %43 = vsyncadd [#allocation6], %s42
      %s44 = sshll.u32 [#allocation5], 4
      %s45 = int_to_ptr.vmem [resolvable:$true] %s44
      %50 = dma.hbm_to_vmem [thread:$0]  %s1, 256, %s45, [#allocation6], 128, 128, 8
    $region9: #{tpu_custom_call.1} parent=1 // pred_fallthru
      _
    // Predicated region
    $region10: #{tpu_custom_call.1} parent=1 // pred_check
      _
    $region11: #{tpu_custom_call.1} parent=1 // pred_check_branch
      %52 = sbr.rel (0) target = $region13
    $region12: #{tpu_custom_call.1} parent=1 // pred_region
      %s54 = ssub.s32 256, 256
      %55 = vsyncadd [#allocation6], %s54
      %s56 = sshll.u32 [#allocation7], 4
      %s57 = int_to_ptr.vmem [resolvable:$true] %s56
      %62 = dma.hbm_to_vmem [thread:$0]  %s2, 256, %s57, [#allocation6], 128, 128, 8
    $region13: #{tpu_custom_call.1} parent=1 // pred_fallthru
      _
    // Predicated region
    $region14: #{tpu_custom_call.1} parent=1 // pred_check
      _
    $region15: #{tpu_custom_call.1} parent=1 // pred_check_branch
      %64 = sbr.rel (0) target = $region17
    $region16: #{tpu_custom_call.1} parent=1 // pred_region
      %s66 = ssub.s32 16, 16
      %67 = vsyncadd [#allocation9], %s66
      %s69 = sshll.u32 [#allocation8], 4
      %s70 = int_to_ptr.vmem [resolvable:$true] %s69
      %72 = dma.hbm_to_vmem [thread:$0]  %s3, 16, %s70, [#allocation9]
    $region17: #{tpu_custom_call.1} parent=1 // pred_fallthru
      _
    // Predicated region
    $region18: #{tpu_custom_call.1} parent=1 // pred_check
      _
    $region19: #{tpu_custom_call.1} parent=1 // pred_check_branch
      %74 = sbr.rel (0) target = $region21
    $region20: #{tpu_custom_call.1} parent=1 // pred_region
      _
    $region21: #{tpu_custom_call.1} parent=1 // pred_fallthru
      _
    // Predicated region
    $region22: #{tpu_custom_call.1} parent=1 // pred_check
      _
    $region23: #{tpu_custom_call.1} parent=1 // pred_check_branch
      %76 = sbr.rel (0) target = $region25
    $region24: #{tpu_custom_call.1} parent=1 // pred_region
      _
    $region25: #{tpu_custom_call.1} parent=1 // pred_fallthru
      _
    // Predicated region
    $region26: #{tpu_custom_call.1} parent=1 // pred_check
      _
    $region27: #{tpu_custom_call.1} parent=1 // pred_check_branch
      %78 = sbr.rel (0) target = $region29
    $region28: #{tpu_custom_call.1} parent=1 // pred_region
      _
    $region29: #{tpu_custom_call.1} parent=1 // pred_fallthru
      _
    // Predicated region
    $region30: #{tpu_custom_call.1} parent=1 // pred_check
      _
    $region31: #{tpu_custom_call.1} parent=1 // pred_check_branch
      %80 = sbr.rel (0) target = $region33
    $region32: #{tpu_custom_call.1} parent=1 // pred_region
      _
    $region33: #{tpu_custom_call.1} parent=1 // pred_fallthru
      _
    // Predicated region
    $region34: #{tpu_custom_call.1} parent=1 // pred_check
      _
    $region35: #{tpu_custom_call.1} parent=1 // pred_check_branch
      %82 = sbr.rel (0) target = $region37
    $region36: #{tpu_custom_call.1} parent=1 // pred_region
      _
    $region37: #{tpu_custom_call.1} parent=1 // pred_fallthru
      _
    // Predicated region
    $region38: #{tpu_custom_call.1} parent=1 // pred_check
      _
    $region39: #{tpu_custom_call.1} parent=1 // pred_check_branch
      %84 = sbr.rel (0) target = $region41
    $region40: #{tpu_custom_call.1} parent=1 // pred_region
      _
    $region41: #{tpu_custom_call.1} parent=1 // pred_fallthru
      _
    // Predicated region
    $region42: #{tpu_custom_call.1} parent=1 // pred_check
      _
    $region43: #{tpu_custom_call.1} parent=1 // pred_check_branch
      %86 = sbr.rel (0) target = $region45
    $region44: #{tpu_custom_call.1} parent=1 // pred_region
      _
    $region45: #{tpu_custom_call.1} parent=1 // pred_fallthru
      _
    // Predicated region
    $region46: #{tpu_custom_call.1} parent=1 // pred_check
      _
    $region47: #{tpu_custom_call.1} parent=1 // pred_check_branch
      %88 = sbr.rel (0) target = $region49
    $region48: #{tpu_custom_call.1} parent=1 // pred_region
      _
    $region49: #{tpu_custom_call.1} parent=1 // pred_fallthru
      _
    // Predicated region
    $region50: #{tpu_custom_call.1} parent=1 // pred_check
      _
    $region51: #{tpu_custom_call.1} parent=1 // pred_check_branch
      %90 = sbr.rel (0) target = $region53
    $region52: #{tpu_custom_call.1} parent=1 // pred_region
      _
    $region53: #{tpu_custom_call.1} parent=1 // pred_fallthru
      _
    // Predicated region
    $region54: #{tpu_custom_call.1} parent=1 // pred_check
      _
    $region55: #{tpu_custom_call.1} parent=1 // pred_check_branch
      %92 = sbr.rel (0) target = $region57
    $region56: #{tpu_custom_call.1} parent=1 // pred_region
      _
    $region57: #{tpu_custom_call.1} parent=1 // pred_fallthru
      _
    // Predicated region
    $region58: #{tpu_custom_call.1} parent=1 // pred_check
      _
    $region59: #{tpu_custom_call.1} parent=1 // pred_check_branch
      %94 = sbr.rel (0) target = $region61
    $region60: #{tpu_custom_call.1} parent=1 // pred_region
      _
    $region61: #{tpu_custom_call.1} parent=1 // pred_fallthru
      _
    // Predicated region
    $region62: #{tpu_custom_call.1} parent=1 // pred_check
      _
    $region63: #{tpu_custom_call.1} parent=1 // pred_check_branch
      %96 = sbr.rel (0) target = $region65
    $region64: #{tpu_custom_call.1} parent=1 // pred_region
      _
    $region65: #{tpu_custom_call.1} parent=1 // pred_fallthru
      _
    // Predicated region
    $region66: #{tpu_custom_call.1} parent=1 // pred_check
      _
    $region67: #{tpu_custom_call.1} parent=1 // pred_check_branch
      %98 = sbr.rel (0) target = $region69
    $region68: #{tpu_custom_call.1} parent=1 // pred_region
      _
    $region69: #{tpu_custom_call.1} parent=1 // pred_fallthru
      _
    // Predicated region
    $region70: #{tpu_custom_call.1} parent=1 // pred_check
      _
    $region71: #{tpu_custom_call.1} parent=1 // pred_check_branch
      %100 = sbr.rel (0) target = $region73
    $region72: #{tpu_custom_call.1} parent=1 // pred_region
      _
    $region73: #{tpu_custom_call.1} parent=1 // pred_fallthru
      _
    // Predicated region
    $region74: #{tpu_custom_call.1} parent=1 // pred_check
      _
    $region75: #{tpu_custom_call.1} parent=1 // pred_check_branch
      %102 = sbr.rel (0) target = $region77
    $region76: #{tpu_custom_call.1} parent=1 // pred_region
      %103 = dma.done [#allocation3], 256
    $region77: #{tpu_custom_call.1} parent=1 // pred_fallthru
      _
    // Predicated region
    $region78: #{tpu_custom_call.1} parent=1 // pred_check
      _
    $region79: #{tpu_custom_call.1} parent=1 // pred_check_branch
      %105 = sbr.rel (0) target = $region81
    $region80: #{tpu_custom_call.1} parent=1 // pred_region
      %106 = dma.done [#allocation6], 256
    $region81: #{tpu_custom_call.1} parent=1 // pred_fallthru
      _
    // Predicated region
    $region82: #{tpu_custom_call.1} parent=1 // pred_check
      _
    $region83: #{tpu_custom_call.1} parent=1 // pred_check_branch
      %108 = sbr.rel (0) target = $region85
    $region84: #{tpu_custom_call.1} parent=1 // pred_region
      %109 = dma.done [#allocation6], 256
    $region85: #{tpu_custom_call.1} parent=1 // pred_fallthru
      _
    // Predicated region
    $region86: #{tpu_custom_call.1} parent=1 // pred_check
      _
    $region87: #{tpu_custom_call.1} parent=1 // pred_check_branch
      %111 = sbr.rel (0) target = $region89
    $region88: #{tpu_custom_call.1} parent=1 // pred_region
      %112 = dma.done [#allocation9], 16
    $region89: #{tpu_custom_call.1} parent=1 // pred_fallthru
      _
    %v113 = vld [vmem:[#allocation2] sm:$0xff]
    %v114 = vld [vmem:[#allocation2 + $0x8] sm:$0xff]
    %v115 = vld [vmem:[#allocation7] sm:$0xff]
    %v116 = vld [vmem:[#allocation7 + $0x8] sm:$0xff]
    %v117 = vld [vmem:[#allocation8] sm:$0x1]
    %v119 = vlaneseq
    %v120 = vshrl.u32 %v119, 7
    %v121 = vsub.s32 0, %v120
    %v122 = vrot.slane %v117, %v121
    %vm124 = vcmask 130048
    %v126 = vsel %vm124, %v113, 0
    %v129 = vsel %vm124, %v114, 0
    %131 = vmatprep.subr.mxu0 0.0
    %132 = vmatpush1.msra.mxu0 %v115
    %133 = vmatprep.subr.mxu0 0.0
    %134 = vmatpush1.msra.mxu0 %v116
    %135 = vmatprep.subr.mxu0 0.0
    %136 = vmatpush1.msra.mxu0 0.0
    %137 = vmatprep.subr.mxu0 0.0
    %138 = vmatpush1.msra.mxu0 0.0
    %139 = vmatprep.subr.mxu0 0.0
    %140 = vmatpush1.msra.mxu0 0.0
    %141 = vmatprep.subr.mxu0 0.0
    %142 = vmatpush1.msra.mxu0 0.0
    %143 = vmatprep.subr.mxu0 0.0
    %144 = vmatpush1.msra.mxu0 0.0
    %145 = vmatprep.subr.mxu0 0.0
    %146 = vmatpush1.msra.mxu0 0.0
    %147 = vmatprep.subr.mxu0 0.0
    %148 = vmatpush1.msra.mxu0 0.0
    %149 = vmatprep.subr.mxu0 0.0
    %150 = vmatpush1.msra.mxu0 0.0
    %151 = vmatprep.subr.mxu0 0.0
    %152 = vmatpush1.msra.mxu0 0.0
    %153 = vmatprep.subr.mxu0 0.0
    %154 = vmatpush1.msra.mxu0 0.0
    %155 = vmatprep.subr.mxu0 0.0
    %156 = vmatpush1.msra.mxu0 0.0
    %157 = vmatprep.subr.mxu0 0.0
    %158 = vmatpush1.msra.mxu0 0.0
    %159 = vmatprep.subr.mxu0 0.0
    %160 = vmatpush1.msra.mxu0 0.0
    %161 = vmatprep.subr.mxu0 0.0
    %162 = vmatpush1.msra.mxu0 0.0
    %163 = vmatprep.subr.mxu0 0.0
    %164 = vmatpush1.msra.mxu0 0.0
    %165 = vmatprep.subr.mxu0 0.0
    %166 = vmatpush1.msra.mxu0 0.0
    %167 = vmatprep.subr.mxu0 0.0
    %168 = vmatpush1.msra.mxu0 0.0
    %169 = vmatprep.subr.mxu0 0.0
    %170 = vmatpush1.msra.mxu0 0.0
    %171 = vmatprep.subr.mxu0 0.0
    %172 = vmatpush1.msra.mxu0 0.0
    %173 = vmatprep.subr.mxu0 0.0
    %174 = vmatpush1.msra.mxu0 0.0
    %175 = vmatprep.subr.mxu0 0.0
    %176 = vmatpush1.msra.mxu0 0.0
    %177 = vmatprep.subr.mxu0 0.0
    %178 = vmatpush1.msra.mxu0 0.0
    %179 = vmatprep.subr.mxu0 0.0
    %180 = vmatpush1.msra.mxu0 0.0
    %181 = vmatprep.subr.mxu0 0.0
    %182 = vmatpush1.msra.mxu0 0.0
    %183 = vmatprep.subr.mxu0 0.0
    %184 = vmatpush1.msra.mxu0 0.0
    %185 = vmatprep.subr.mxu0 0.0
    %186 = vmatpush1.msra.mxu0 0.0
    %187 = vmatprep.subr.mxu0 0.0
    %188 = vmatpush1.msra.mxu0 0.0
    %189 = vmatprep.subr.mxu0 0.0
    %190 = vmatpush1.msra.mxu0 0.0
    %191 = vmatprep.subr.mxu0 0.0
    %192 = vmatpush1.msra.mxu0 0.0
    %193 = vmatprep.subr.mxu0 0.0
    %194 = vmatpush1.msra.mxu0 0.0
    %195 = vmatprep.mubr.f32.mxu0 0.0
    %196 = vmatmul.mubr.f32.gmra.mrb[0].mxu0 %v126
    %v197 = vpop.f32.mrb[0].mxu0
    %v198 = vadd.f32 %v122, %v197
    %v199 = vpop.f32.mrb[0].mxu0
    %200 = vmatprep.mubr.f32.mxu0 0.0
    %201 = vmatmul.mubr.f32.gmra.mrb[0].mxu0 %v129
    %v202 = vpop.f32.mrb[0].mxu0
    %v203 = vadd.f32 %v122, %v202
    %v204 = vpop.f32.mrb[0].mxu0
    %205 = vdwg.mxu0
    %v206 = vmax.f32 %v198, 0.0
    %v207 = vmax.f32 %v203, 0.0
    %v208 = vld [vmem:[#allocation5] sm:$0xff]
    %v209 = vld [vmem:[#allocation5 + $0x8] sm:$0xff]
    %vm210 = vcmask 261120
    %v211 = vsel %vm210, %v206, 0.0
    %212 = vadd.xlane.f32.xlu0 %v211
    %v213 = vpop.xlane.xlu0 %212
    %v214 = vsel %vm210, %v207, 0.0
    %215 = vadd.xlane.f32.xlu0 %v214
    %v216 = vpop.xlane.xlu0 %215
    %v217 = vrcp.pop 32.0
    %v218 = vmul.f32 %v213, %v217
    %v219 = vmul.f32 %v216, %v217
    %v220 = vsub.f32 %v206, %v218
    %v221 = vsub.f32 %v207, %v219
    %v222 = vmul.f32 %v220, %v220
    %v223 = vmul.f32 %v221, %v221
    %v224 = vsel %vm210, %v222, 0.0
    %225 = vadd.xlane.f32.xlu0 %v224
    %v226 = vpop.xlane.xlu0 %225
    %v227 = vsel %vm210, %v223, 0.0
    %228 = vadd.xlane.f32.xlu0 %v227
    %v229 = vpop.xlane.xlu0 %228
    %v230 = vmul.f32 %v226, %v217
    %v231 = vmul.f32 %v229, %v217
    %v232 = vadd.f32 %v230, 1e-05
    %v233 = vadd.f32 %v231, 1e-05
    %v234 = vrsqrt.pop %v232
    %v235 = vrsqrt.pop %v233
    %v236 = vmul.f32 %v220, %v234
    %v237 = vmul.f32 %v221, %v235
    %v238 = vld [vmem:[%s4] sm:$0x1]
    %v240 = vlaneseq
    %v241 = vshrl.u32 %v240, 7
    %v242 = vsub.s32 0, %v241
    %v243 = vrot.slane %v238, %v242
    %v245 = vmul.f32 %v236, %v243
    %v246 = vmul.f32 %v237, %v243
    %v247 = vld [vmem:[%s5] sm:$0x1]
    %v249 = vlaneseq
    %v250 = vshrl.u32 %v249, 7
    %v251 = vsub.s32 0, %v250
    %v252 = vrot.slane %v247, %v251
    %v254 = vadd.f32 %v245, %v252
    %v255 = vadd.f32 %v246, %v252
    %v256 = vld [vmem:[%s6] sm:$0xff]
    %v257 = vld [vmem:[%s6 + $0x8] sm:$0xff]
    %v258 = vld [vmem:[%s6 + $0x10] sm:$0xff]
    %v259 = vld [vmem:[%s6 + $0x18] sm:$0xff]
    %v260 = vld [vmem:[%s7] sm:$0x1]
    %v262 = vlaneseq
    %v263 = vshrl.u32 %v262, 7
    %v264 = vsub.s32 0, %v263
    %v265 = vrot.slane %v260, %v264
    %v268 = vsel %vm210, %v254, 0
    %v271 = vsel %vm210, %v255, 0
    %273 = vmatprep.subr.mxu0 0.0
    %274 = vmatpush1.msra.mxu0 %v256
    %275 = vmatprep.subr.mxu0 0.0
    %276 = vmatpush1.msra.mxu0 %v257
    %277 = vmatprep.subr.mxu0 0.0
    %278 = vmatpush1.msra.mxu0 %v258
    %279 = vmatprep.subr.mxu0 0.0
    %280 = vmatpush1.msra.mxu0 %v259
    %281 = vmatprep.subr.mxu0 0.0
    %282 = vmatpush1.msra.mxu0 0.0
    %283 = vmatprep.subr.mxu0 0.0
    %284 = vmatpush1.msra.mxu0 0.0
    %285 = vmatprep.subr.mxu0 0.0
    %286 = vmatpush1.msra.mxu0 0.0
    %287 = vmatprep.subr.mxu0 0.0
    %288 = vmatpush1.msra.mxu0 0.0
    %289 = vmatprep.subr.mxu0 0.0
    %290 = vmatpush1.msra.mxu0 0.0
    %291 = vmatprep.subr.mxu0 0.0
    %292 = vmatpush1.msra.mxu0 0.0
    %293 = vmatprep.subr.mxu0 0.0
    %294 = vmatpush1.msra.mxu0 0.0
    %295 = vmatprep.subr.mxu0 0.0
    %296 = vmatpush1.msra.mxu0 0.0
    %297 = vmatprep.subr.mxu0 0.0
    %298 = vmatpush1.msra.mxu0 0.0
    %299 = vmatprep.subr.mxu0 0.0
    %300 = vmatpush1.msra.mxu0 0.0
    %301 = vmatprep.subr.mxu0 0.0
    %302 = vmatpush1.msra.mxu0 0.0
    %303 = vmatprep.subr.mxu0 0.0
    %304 = vmatpush1.msra.mxu0 0.0
    %305 = vmatprep.subr.mxu0 0.0
    %306 = vmatpush1.msra.mxu0 0.0
    %307 = vmatprep.subr.mxu0 0.0
    %308 = vmatpush1.msra.mxu0 0.0
    %309 = vmatprep.subr.mxu0 0.0
    %310 = vmatpush1.msra.mxu0 0.0
    %311 = vmatprep.subr.mxu0 0.0
    %312 = vmatpush1.msra.mxu0 0.0
    %313 = vmatprep.subr.mxu0 0.0
    %314 = vmatpush1.msra.mxu0 0.0
    %315 = vmatprep.subr.mxu0 0.0
    %316 = vmatpush1.msra.mxu0 0.0
    %317 = vmatprep.subr.mxu0 0.0
    %318 = vmatpush1.msra.mxu0 0.0
    %319 = vmatprep.subr.mxu0 0.0
    %320 = vmatpush1.msra.mxu0 0.0
    %321 = vmatprep.subr.mxu0 0.0
    %322 = vmatpush1.msra.mxu0 0.0
    %323 = vmatprep.subr.mxu0 0.0
    %324 = vmatpush1.msra.mxu0 0.0
    %325 = vmatprep.subr.mxu0 0.0
    %326 = vmatpush1.msra.mxu0 0.0
    %327 = vmatprep.subr.mxu0 0.0
    %328 = vmatpush1.msra.mxu0 0.0
    %329 = vmatprep.subr.mxu0 0.0
    %330 = vmatpush1.msra.mxu0 0.0
    %331 = vmatprep.subr.mxu0 0.0
    %332 = vmatpush1.msra.mxu0 0.0
    %333 = vmatprep.subr.mxu0 0.0
    %334 = vmatpush1.msra.mxu0 0.0
    %335 = vmatprep.subr.mxu0 0.0
    %336 = vmatpush1.msra.mxu0 0.0
    %337 = vmatprep.mubr.f32.mxu0 0.0
    %338 = vmatmul.mubr.f32.gmra.mrb[0].mxu0 %v268
    %v339 = vpop.f32.mrb[0].mxu0
    %v340 = vadd.f32 %v265, %v339
    %v341 = vpop.f32.mrb[0].mxu0
    %342 = vmatprep.mubr.f32.mxu0 0.0
    %343 = vmatmul.mubr.f32.gmra.mrb[0].mxu0 %v271
    %v344 = vpop.f32.mrb[0].mxu0
    %v345 = vadd.f32 %v265, %v344
    %v346 = vpop.f32.mrb[0].mxu0
    %347 = vdwg.mxu0
    %v348 = vld [vmem:[%s8] sm:$0xff]
    %v349 = vld [vmem:[%s8 + $0x8] sm:$0xff]
    %v350 = vld [vmem:[%s8 + $0x10] sm:$0xff]
    %v351 = vld [vmem:[%s8 + $0x18] sm:$0xff]
    %v352 = vld [vmem:[%s9] sm:$0x1]
    %v354 = vlaneseq
    %v355 = vshrl.u32 %v354, 7
    %v356 = vsub.s32 0, %v355
    %v357 = vrot.slane %v352, %v356
    %359 = vmatprep.subr.mxu0 0.0
    %360 = vmatpush1.msra.mxu0 %v348
    %361 = vmatprep.subr.mxu0 0.0
    %362 = vmatpush1.msra.mxu0 %v349
    %363 = vmatprep.subr.mxu0 0.0
    %364 = vmatpush1.msra.mxu0 %v350
    %365 = vmatprep.subr.mxu0 0.0
    %366 = vmatpush1.msra.mxu0 %v351
    %367 = vmatprep.subr.mxu0 0.0
    %368 = vmatpush1.msra.mxu0 0.0
    %369 = vmatprep.subr.mxu0 0.0
    %370 = vmatpush1.msra.mxu0 0.0
    %371 = vmatprep.subr.mxu0 0.0
    %372 = vmatpush1.msra.mxu0 0.0
    %373 = vmatprep.subr.mxu0 0.0
    %374 = vmatpush1.msra.mxu0 0.0
    %375 = vmatprep.subr.mxu0 0.0
    %376 = vmatpush1.msra.mxu0 0.0
    %377 = vmatprep.subr.mxu0 0.0
    %378 = vmatpush1.msra.mxu0 0.0
    %379 = vmatprep.subr.mxu0 0.0
    %380 = vmatpush1.msra.mxu0 0.0
    %381 = vmatprep.subr.mxu0 0.0
    %382 = vmatpush1.msra.mxu0 0.0
    %383 = vmatprep.subr.mxu0 0.0
    %384 = vmatpush1.msra.mxu0 0.0
    %385 = vmatprep.subr.mxu0 0.0
    %386 = vmatpush1.msra.mxu0 0.0
    %387 = vmatprep.subr.mxu0 0.0
    %388 = vmatpush1.msra.mxu0 0.0
    %389 = vmatprep.subr.mxu0 0.0
    %390 = vmatpush1.msra.mxu0 0.0
    %391 = vmatprep.subr.mxu0 0.0
    %392 = vmatpush1.msra.mxu0 0.0
    %393 = vmatprep.subr.mxu0 0.0
    %394 = vmatpush1.msra.mxu0 0.0
    %395 = vmatprep.subr.mxu0 0.0
    %396 = vmatpush1.msra.mxu0 0.0
    %397 = vmatprep.subr.mxu0 0.0
    %398 = vmatpush1.msra.mxu0 0.0
    %399 = vmatprep.subr.mxu0 0.0
    %400 = vmatpush1.msra.mxu0 0.0
    %401 = vmatprep.subr.mxu0 0.0
    %402 = vmatpush1.msra.mxu0 0.0
    %403 = vmatprep.subr.mxu0 0.0
    %404 = vmatpush1.msra.mxu0 0.0
    %405 = vmatprep.subr.mxu0 0.0
    %406 = vmatpush1.msra.mxu0 0.0
    %407 = vmatprep.subr.mxu0 0.0
    %408 = vmatpush1.msra.mxu0 0.0
    %409 = vmatprep.subr.mxu0 0.0
    %410 = vmatpush1.msra.mxu0 0.0
    %411 = vmatprep.subr.mxu0 0.0
    %412 = vmatpush1.msra.mxu0 0.0
    %413 = vmatprep.subr.mxu0 0.0
    %414 = vmatpush1.msra.mxu0 0.0
    %415 = vmatprep.subr.mxu0 0.0
    %416 = vmatpush1.msra.mxu0 0.0
    %417 = vmatprep.subr.mxu0 0.0
    %418 = vmatpush1.msra.mxu0 0.0
    %419 = vmatprep.subr.mxu0 0.0
    %420 = vmatpush1.msra.mxu0 0.0
    %421 = vmatprep.subr.mxu0 0.0
    %422 = vmatpush1.msra.mxu0 0.0
    %423 = vmatprep.mubr.f32.mxu0 0.0
    %424 = vmatmul.mubr.f32.gmra.mrb[0].mxu0 %v268
    %v425 = vpop.f32.mrb[0].mxu0
    %v426 = vadd.f32 %v357, %v425
    %v427 = vpop.f32.mrb[0].mxu0
    %428 = vmatprep.mubr.f32.mxu0 0.0
    %429 = vmatmul.mubr.f32.gmra.mrb[0].mxu0 %v271
    %v430 = vpop.f32.mrb[0].mxu0
    %v431 = vadd.f32 %v357, %v430
    %v432 = vpop.f32.mrb[0].mxu0
    %433 = vdwg.mxu0
    %v434 = vld [vmem:[%s10] sm:$0xff]
    %v435 = vld [vmem:[%s10 + $0x8] sm:$0xff]
    %v436 = vld [vmem:[%s10 + $0x10] sm:$0xff]
    %v437 = vld [vmem:[%s10 + $0x18] sm:$0xff]
    %v438 = vld [vmem:[%s11] sm:$0x1]
    %v440 = vlaneseq
    %v441 = vshrl.u32 %v440, 7
    %v442 = vsub.s32 0, %v441
    %v443 = vrot.slane %v438, %v442
    %445 = vmatprep.subr.mxu0 0.0
    %446 = vmatpush1.msra.mxu0 %v434
    %447 = vmatprep.subr.mxu0 0.0
    %448 = vmatpush1.msra.mxu0 %v435
    %449 = vmatprep.subr.mxu0 0.0
    %450 = vmatpush1.msra.mxu0 %v436
    %451 = vmatprep.subr.mxu0 0.0
    %452 = vmatpush1.msra.mxu0 %v437
    %453 = vmatprep.subr.mxu0 0.0
    %454 = vmatpush1.msra.mxu0 0.0
    %455 = vmatprep.subr.mxu0 0.0
    %456 = vmatpush1.msra.mxu0 0.0
    %457 = vmatprep.subr.mxu0 0.0
    %458 = vmatpush1.msra.mxu0 0.0
    %459 = vmatprep.subr.mxu0 0.0
    %460 = vmatpush1.msra.mxu0 0.0
    %461 = vmatprep.subr.mxu0 0.0
    %462 = vmatpush1.msra.mxu0 0.0
    %463 = vmatprep.subr.mxu0 0.0
    %464 = vmatpush1.msra.mxu0 0.0
    %465 = vmatprep.subr.mxu0 0.0
    %466 = vmatpush1.msra.mxu0 0.0
    %467 = vmatprep.subr.mxu0 0.0
    %468 = vmatpush1.msra.mxu0 0.0
    %469 = vmatprep.subr.mxu0 0.0
    %470 = vmatpush1.msra.mxu0 0.0
    %471 = vmatprep.subr.mxu0 0.0
    %472 = vmatpush1.msra.mxu0 0.0
    %473 = vmatprep.subr.mxu0 0.0
    %474 = vmatpush1.msra.mxu0 0.0
    %475 = vmatprep.subr.mxu0 0.0
    %476 = vmatpush1.msra.mxu0 0.0
    %477 = vmatprep.subr.mxu0 0.0
    %478 = vmatpush1.msra.mxu0 0.0
    %479 = vmatprep.subr.mxu0 0.0
    %480 = vmatpush1.msra.mxu0 0.0
    %481 = vmatprep.subr.mxu0 0.0
    %482 = vmatpush1.msra.mxu0 0.0
    %483 = vmatprep.subr.mxu0 0.0
    %484 = vmatpush1.msra.mxu0 0.0
    %485 = vmatprep.subr.mxu0 0.0
    %486 = vmatpush1.msra.mxu0 0.0
    %487 = vmatprep.subr.mxu0 0.0
    %488 = vmatpush1.msra.mxu0 0.0
    %489 = vmatprep.subr.mxu0 0.0
    %490 = vmatpush1.msra.mxu0 0.0
    %491 = vmatprep.subr.mxu0 0.0
    %492 = vmatpush1.msra.mxu0 0.0
    %493 = vmatprep.subr.mxu0 0.0
    %494 = vmatpush1.msra.mxu0 0.0
    %495 = vmatprep.subr.mxu0 0.0
    %496 = vmatpush1.msra.mxu0 0.0
    %497 = vmatprep.subr.mxu0 0.0
    %498 = vmatpush1.msra.mxu0 0.0
    %499 = vmatprep.subr.mxu0 0.0
    %500 = vmatpush1.msra.mxu0 0.0
    %501 = vmatprep.subr.mxu0 0.0
    %502 = vmatpush1.msra.mxu0 0.0
    %503 = vmatprep.subr.mxu0 0.0
    %504 = vmatpush1.msra.mxu0 0.0
    %505 = vmatprep.subr.mxu0 0.0
    %506 = vmatpush1.msra.mxu0 0.0
    %507 = vmatprep.subr.mxu0 0.0
    %508 = vmatpush1.msra.mxu0 0.0
    %509 = vmatprep.mubr.f32.mxu0 0.0
    %510 = vmatmul.mubr.f32.gmra.mrb[0].mxu0 %v268
    %v511 = vpop.f32.mrb[0].mxu0
    %v512 = vadd.f32 %v443, %v511
    %v513 = vpop.f32.mrb[0].mxu0
    %514 = vmatprep.mubr.f32.mxu0 0.0
    %515 = vmatmul.mubr.f32.gmra.mrb[0].mxu0 %v271
    %v516 = vpop.f32.mrb[0].mxu0
    %v517 = vadd.f32 %v443, %v516
    %v518 = vpop.f32.mrb[0].mxu0
    %519 = vdwg.mxu0
    %v520 = vld [vmem:[%s12] sm:$0x1]
    %v521 = vld [vmem:[%s13] sm:$0x1]
    %v523 = vlaneseq
    %v524 = vshrl.u32 %v523, 7
    %v525 = vsub.s32 0, %v524
    %v526 = vrot.slane %v521, %v525
    %v528 = vmul.f32 %v340, %v526
    %v529 = vmul.f32 %v345, %v526
    %v530 = vsel %vm124, %v528, 0.0
    %531 = vadd.xlane.f32.xlu0 %v530
    %v532 = vpop.xlane.xlu0 %531
    %v533 = vsel %vm124, %v529, 0.0
    %534 = vadd.xlane.f32.xlu0 %v533
    %v535 = vpop.xlane.xlu0 %534
    %v537 = vlaneseq
    %v538 = vshrl.u32 %v537, 7
    %v539 = vsub.s32 0, %v538
    %v540 = vrot.slane %v520, %v539
    %v542 = vmul.f32 %v340, %v540
    %v543 = vmul.f32 %v345, %v540
    %v544 = vsel %vm124, %v542, 0.0
    %545 = vadd.xlane.f32.xlu0 %v544
    %v546 = vpop.xlane.xlu0 %545
    %v547 = vsel %vm124, %v543, 0.0
    %548 = vadd.xlane.f32.xlu0 %v547
    %v549 = vpop.xlane.xlu0 %548
    %v550 = vmul.f32 %v208, %v532
    %v551 = vmul.f32 %v209, %v535
    %v553 = vsel %vm124, %v340, 0
    %v556 = vsel %vm124, %v426, 0
    %558 = vmatprep.subr.mxu0 0.0
    %559 = vmatpush1.xpose.msra.mxu0 %v556
    %560 = vmatprep.subr.mxu0 0.0
    %561 = vmatpush1.xpose.msra.mxu0 0.0
    %562 = vmatprep.subr.mxu0 0.0
    %563 = vmatpush1.xpose.msra.mxu0 0.0
    %564 = vmatprep.subr.mxu0 0.0
    %565 = vmatpush1.xpose.msra.mxu0 0.0
    %566 = vmatprep.subr.mxu0 0.0
    %567 = vmatpush1.xpose.msra.mxu0 0.0
    %568 = vmatprep.subr.mxu0 0.0
    %569 = vmatpush1.xpose.msra.mxu0 0.0
    %570 = vmatprep.subr.mxu0 0.0
    %571 = vmatpush1.xpose.msra.mxu0 0.0
    %572 = vmatprep.subr.mxu0 0.0
    %573 = vmatpush1.xpose.msra.mxu0 0.0
    %574 = vmatprep.subr.mxu0 0.0
    %575 = vmatpush1.xpose.msra.mxu0 0.0
    %576 = vmatprep.subr.mxu0 0.0
    %577 = vmatpush1.xpose.msra.mxu0 0.0
    %578 = vmatprep.subr.mxu0 0.0
    %579 = vmatpush1.xpose.msra.mxu0 0.0
    %580 = vmatprep.subr.mxu0 0.0
    %581 = vmatpush1.xpose.msra.mxu0 0.0
    %582 = vmatprep.subr.mxu0 0.0
    %583 = vmatpush1.xpose.msra.mxu0 0.0
    %584 = vmatprep.subr.mxu0 0.0
    %585 = vmatpush1.xpose.msra.mxu0 0.0
    %586 = vmatprep.subr.mxu0 0.0
    %587 = vmatpush1.xpose.msra.mxu0 0.0
    %588 = vmatprep.subr.mxu0 0.0
    %589 = vmatpush1.xpose.msra.mxu0 0.0
    %590 = vmatprep.subr.mxu0 0.0
    %591 = vmatpush1.xpose.msra.mxu0 0.0
    %592 = vmatprep.subr.mxu0 0.0
    %593 = vmatpush1.xpose.msra.mxu0 0.0
    %594 = vmatprep.subr.mxu0 0.0
    %595 = vmatpush1.xpose.msra.mxu0 0.0
    %596 = vmatprep.subr.mxu0 0.0
    %597 = vmatpush1.xpose.msra.mxu0 0.0
    %598 = vmatprep.subr.mxu0 0.0
    %599 = vmatpush1.xpose.msra.mxu0 0.0
    %600 = vmatprep.subr.mxu0 0.0
    %601 = vmatpush1.xpose.msra.mxu0 0.0
    %602 = vmatprep.subr.mxu0 0.0
    %603 = vmatpush1.xpose.msra.mxu0 0.0
    %604 = vmatprep.subr.mxu0 0.0
    %605 = vmatpush1.xpose.msra.mxu0 0.0
    %606 = vmatprep.subr.mxu0 0.0
    %607 = vmatpush1.xpose.msra.mxu0 0.0
    %608 = vmatprep.subr.mxu0 0.0
    %609 = vmatpush1.xpose.msra.mxu0 0.0
    %610 = vmatprep.subr.mxu0 0.0
    %611 = vmatpush1.xpose.msra.mxu0 0.0
    %612 = vmatprep.subr.mxu0 0.0
    %613 = vmatpush1.xpose.msra.mxu0 0.0
    %614 = vmatprep.subr.mxu0 0.0
    %615 = vmatpush1.xpose.msra.mxu0 0.0
    %616 = vmatprep.subr.mxu0 0.0
    %617 = vmatpush1.xpose.msra.mxu0 0.0
    %618 = vmatprep.subr.mxu0 0.0
    %619 = vmatpush1.xpose.msra.mxu0 0.0
    %620 = vmatprep.subr.mxu0 0.0
    %621 = vmatpush1.xpose.msra.mxu0 0.0
    %622 = vmatprep.mubr.f32.mxu0 0.0
    %623 = vmatmul.mubr.f32.gmra.mrb[0].mxu0 %v553
    %v624 = vpop.f32.mrb[0].mxu0
    %v625 = vadd.f32 %v550, %v624
    %v626 = vpop.f32.mrb[0].mxu0
    %627 = vdwg.mxu0
    %v629 = vsel %vm124, %v345, 0
    %v632 = vsel %vm124, %v431, 0
    %634 = vmatprep.subr.mxu0 0.0
    %635 = vmatpush1.xpose.msra.mxu0 %v632
    %636 = vmatprep.subr.mxu0 0.0
    %637 = vmatpush1.xpose.msra.mxu0 0.0
    %638 = vmatprep.subr.mxu0 0.0
    %639 = vmatpush1.xpose.msra.mxu0 0.0
    %640 = vmatprep.subr.mxu0 0.0
    %641 = vmatpush1.xpose.msra.mxu0 0.0
    %642 = vmatprep.subr.mxu0 0.0
    %643 = vmatpush1.xpose.msra.mxu0 0.0
    %644 = vmatprep.subr.mxu0 0.0
    %645 = vmatpush1.xpose.msra.mxu0 0.0
    %646 = vmatprep.subr.mxu0 0.0
    %647 = vmatpush1.xpose.msra.mxu0 0.0
    %648 = vmatprep.subr.mxu0 0.0
    %649 = vmatpush1.xpose.msra.mxu0 0.0
    %650 = vmatprep.subr.mxu0 0.0
    %651 = vmatpush1.xpose.msra.mxu0 0.0
    %652 = vmatprep.subr.mxu0 0.0
    %653 = vmatpush1.xpose.msra.mxu0 0.0
    %654 = vmatprep.subr.mxu0 0.0
    %655 = vmatpush1.xpose.msra.mxu0 0.0
    %656 = vmatprep.subr.mxu0 0.0
    %657 = vmatpush1.xpose.msra.mxu0 0.0
    %658 = vmatprep.subr.mxu0 0.0
    %659 = vmatpush1.xpose.msra.mxu0 0.0
    %660 = vmatprep.subr.mxu0 0.0
    %661 = vmatpush1.xpose.msra.mxu0 0.0
    %662 = vmatprep.subr.mxu0 0.0
    %663 = vmatpush1.xpose.msra.mxu0 0.0
    %664 = vmatprep.subr.mxu0 0.0
    %665 = vmatpush1.xpose.msra.mxu0 0.0
    %666 = vmatprep.subr.mxu0 0.0
    %667 = vmatpush1.xpose.msra.mxu0 0.0
    %668 = vmatprep.subr.mxu0 0.0
    %669 = vmatpush1.xpose.msra.mxu0 0.0
    %670 = vmatprep.subr.mxu0 0.0
    %671 = vmatpush1.xpose.msra.mxu0 0.0
    %672 = vmatprep.subr.mxu0 0.0
    %673 = vmatpush1.xpose.msra.mxu0 0.0
    %674 = vmatprep.subr.mxu0 0.0
    %675 = vmatpush1.xpose.msra.mxu0 0.0
    %676 = vmatprep.subr.mxu0 0.0
    %677 = vmatpush1.xpose.msra.mxu0 0.0
    %678 = vmatprep.subr.mxu0 0.0
    %679 = vmatpush1.xpose.msra.mxu0 0.0
    %680 = vmatprep.subr.mxu0 0.0
    %681 = vmatpush1.xpose.msra.mxu0 0.0
    %682 = vmatprep.subr.mxu0 0.0
    %683 = vmatpush1.xpose.msra.mxu0 0.0
    %684 = vmatprep.subr.mxu0 0.0
    %685 = vmatpush1.xpose.msra.mxu0 0.0
    %686 = vmatprep.subr.mxu0 0.0
    %687 = vmatpush1.xpose.msra.mxu0 0.0
    %688 = vmatprep.subr.mxu0 0.0
    %689 = vmatpush1.xpose.msra.mxu0 0.0
    %690 = vmatprep.subr.mxu0 0.0
    %691 = vmatpush1.xpose.msra.mxu0 0.0
    %692 = vmatprep.subr.mxu0 0.0
    %693 = vmatpush1.xpose.msra.mxu0 0.0
    %694 = vmatprep.subr.mxu0 0.0
    %695 = vmatpush1.xpose.msra.mxu0 0.0
    %696 = vmatprep.subr.mxu0 0.0
    %697 = vmatpush1.xpose.msra.mxu0 0.0
    %698 = vmatprep.mubr.f32.mxu0 0.0
    %699 = vmatmul.mubr.f32.gmra.mrb[0].mxu0 %v629
    %v700 = vpop.f32.mrb[0].mxu0
    %v701 = vadd.f32 %v551, %v700
    %v702 = vpop.f32.mrb[0].mxu0
    %703 = vdwg.mxu0
    %v704 = vsub.f32 1.0, %v208
    %v705 = vsub.f32 1.0, %v209
    %v706 = vmul.f32 %v704, %v546
    %v707 = vmul.f32 %v705, %v549
    %v708 = vadd.f32 %v625, %v706
    %v709 = vadd.f32 %v701, %v707
    %v710 = vmul.f32 %v708, 0.25
    %v711 = vmul.f32 %v709, 0.25
    %vm712 = vcmask 64512
    %v713 = vsel %vm712, %v710, -inf
    %714 = vmax.xlane.f32.xlu0 %v713
    %v715 = vpop.xlane.xlu0 %714
    %v716 = vsel %vm712, %v711, -inf
    %717 = vmax.xlane.f32.xlu0 %v716
    %v718 = vpop.xlane.xlu0 %717
    %v719 = vsub.f32 %v710, %v715
    %v720 = vsub.f32 %v711, %v718
    %v721 = vmul.f32 %v719, 1.442695
    %v722 = vpow.pop %v721
    %v723 = vmul.f32 %v720, 1.442695
    %v724 = vpow.pop %v723
    %v725 = vsel %vm712, %v722, 0.0
    %726 = vadd.xlane.f32.xlu0 %v725
    %v727 = vpop.xlane.xlu0 %726
    %v728 = vsel %vm712, %v724, 0.0
    %729 = vadd.xlane.f32.xlu0 %v728
    %v730 = vpop.xlane.xlu0 %729
    %v731 = vrcp.pop %v727
    %v732 = vrcp.pop %v730
    %v733 = vmul.f32 %v722, %v731
    %v734 = vmul.f32 %v724, %v732
    %v735 = vmul.f32 %v733, %v208
    %v736 = vmul.f32 %v734, %v209
    %v737 = vsel %vm712, %v735, 0.0
    %738 = vadd.xlane.f32.xlu0 %v737
    %v739 = vpop.xlane.xlu0 %738
    %v740 = vsel %vm712, %v736, 0.0
    %741 = vadd.xlane.f32.xlu0 %v740
    %v742 = vpop.xlane.xlu0 %741
    %v743 = vsel %vm712, %v733, 0.0
    %744 = vadd.xlane.f32.xlu0 %v743
    %v745 = vpop.xlane.xlu0 %744
    %v746 = vsel %vm712, %v734, 0.0
    %747 = vadd.xlane.f32.xlu0 %v746
    %v748 = vpop.xlane.xlu0 %747
    %v749 = vmul.f32 %v739, %v526
    %v750 = vmul.f32 %v742, %v526
    %v752 = vsel %vm712, %v733, 0
    %754 = vmatprep.subr.mxu0 0.0
    %755 = vmatpush1.msra.mxu0 %v512
    %756 = vmatprep.subr.mxu0 0.0
    %757 = vmatpush1.msra.mxu0 0.0
    %758 = vmatprep.subr.mxu0 0.0
    %759 = vmatpush1.msra.mxu0 0.0
    %760 = vmatprep.subr.mxu0 0.0
    %761 = vmatpush1.msra.mxu0 0.0
    %762 = vmatprep.subr.mxu0 0.0
    %763 = vmatpush1.msra.mxu0 0.0
    %764 = vmatprep.subr.mxu0 0.0
    %765 = vmatpush1.msra.mxu0 0.0
    %766 = vmatprep.subr.mxu0 0.0
    %767 = vmatpush1.msra.mxu0 0.0
    %768 = vmatprep.subr.mxu0 0.0
    %769 = vmatpush1.msra.mxu0 0.0
    %770 = vmatprep.subr.mxu0 0.0
    %771 = vmatpush1.msra.mxu0 0.0
    %772 = vmatprep.subr.mxu0 0.0
    %773 = vmatpush1.msra.mxu0 0.0
    %774 = vmatprep.subr.mxu0 0.0
    %775 = vmatpush1.msra.mxu0 0.0
    %776 = vmatprep.subr.mxu0 0.0
    %777 = vmatpush1.msra.mxu0 0.0
    %778 = vmatprep.subr.mxu0 0.0
    %779 = vmatpush1.msra.mxu0 0.0
    %780 = vmatprep.subr.mxu0 0.0
    %781 = vmatpush1.msra.mxu0 0.0
    %782 = vmatprep.subr.mxu0 0.0
    %783 = vmatpush1.msra.mxu0 0.0
    %784 = vmatprep.subr.mxu0 0.0
    %785 = vmatpush1.msra.mxu0 0.0
    %786 = vmatprep.subr.mxu0 0.0
    %787 = vmatpush1.msra.mxu0 0.0
    %788 = vmatprep.subr.mxu0 0.0
    %789 = vmatpush1.msra.mxu0 0.0
    %790 = vmatprep.subr.mxu0 0.0
    %791 = vmatpush1.msra.mxu0 0.0
    %792 = vmatprep.subr.mxu0 0.0
    %793 = vmatpush1.msra.mxu0 0.0
    %794 = vmatprep.subr.mxu0 0.0
    %795 = vmatpush1.msra.mxu0 0.0
    %796 = vmatprep.subr.mxu0 0.0
    %797 = vmatpush1.msra.mxu0 0.0
    %798 = vmatprep.subr.mxu0 0.0
    %799 = vmatpush1.msra.mxu0 0.0
    %800 = vmatprep.subr.mxu0 0.0
    %801 = vmatpush1.msra.mxu0 0.0
    %802 = vmatprep.subr.mxu0 0.0
    %803 = vmatpush1.msra.mxu0 0.0
    %804 = vmatprep.subr.mxu0 0.0
    %805 = vmatpush1.msra.mxu0 0.0
    %806 = vmatprep.subr.mxu0 0.0
    %807 = vmatpush1.msra.mxu0 0.0
    %808 = vmatprep.subr.mxu0 0.0
    %809 = vmatpush1.msra.mxu0 0.0
    %810 = vmatprep.subr.mxu0 0.0
    %811 = vmatpush1.msra.mxu0 0.0
    %812 = vmatprep.subr.mxu0 0.0
    %813 = vmatpush1.msra.mxu0 0.0
    %814 = vmatprep.subr.mxu0 0.0
    %815 = vmatpush1.msra.mxu0 0.0
    %816 = vmatprep.subr.mxu0 0.0
    %817 = vmatpush1.msra.mxu0 0.0
    %818 = vmatprep.mubr.f32.mxu0 0.0
    %819 = vmatmul.mubr.f32.gmra.mrb[0].mxu0 %v752
    %v820 = vpop.f32.mrb[0].mxu0
    %v821 = vadd.f32 %v749, %v820
    %v822 = vpop.f32.mrb[0].mxu0
    %823 = vdwg.mxu0
    %v825 = vsel %vm712, %v734, 0
    %827 = vmatprep.subr.mxu0 0.0
    %828 = vmatpush1.msra.mxu0 %v517
    %829 = vmatprep.subr.mxu0 0.0
    %830 = vmatpush1.msra.mxu0 0.0
    %831 = vmatprep.subr.mxu0 0.0
    %832 = vmatpush1.msra.mxu0 0.0
    %833 = vmatprep.subr.mxu0 0.0
    %834 = vmatpush1.msra.mxu0 0.0
    %835 = vmatprep.subr.mxu0 0.0
    %836 = vmatpush1.msra.mxu0 0.0
    %837 = vmatprep.subr.mxu0 0.0
    %838 = vmatpush1.msra.mxu0 0.0
    %839 = vmatprep.subr.mxu0 0.0
    %840 = vmatpush1.msra.mxu0 0.0
    %841 = vmatprep.subr.mxu0 0.0
    %842 = vmatpush1.msra.mxu0 0.0
    %843 = vmatprep.subr.mxu0 0.0
    %844 = vmatpush1.msra.mxu0 0.0
    %845 = vmatprep.subr.mxu0 0.0
    %846 = vmatpush1.msra.mxu0 0.0
    %847 = vmatprep.subr.mxu0 0.0
    %848 = vmatpush1.msra.mxu0 0.0
    %849 = vmatprep.subr.mxu0 0.0
    %850 = vmatpush1.msra.mxu0 0.0
    %851 = vmatprep.subr.mxu0 0.0
    %852 = vmatpush1.msra.mxu0 0.0
    %853 = vmatprep.subr.mxu0 0.0
    %854 = vmatpush1.msra.mxu0 0.0
    %855 = vmatprep.subr.mxu0 0.0
    %856 = vmatpush1.msra.mxu0 0.0
    %857 = vmatprep.subr.mxu0 0.0
    %858 = vmatpush1.msra.mxu0 0.0
    %859 = vmatprep.subr.mxu0 0.0
    %860 = vmatpush1.msra.mxu0 0.0
    %861 = vmatprep.subr.mxu0 0.0
    %862 = vmatpush1.msra.mxu0 0.0
    %863 = vmatprep.subr.mxu0 0.0
    %864 = vmatpush1.msra.mxu0 0.0
    %865 = vmatprep.subr.mxu0 0.0
    %866 = vmatpush1.msra.mxu0 0.0
    %867 = vmatprep.subr.mxu0 0.0
    %868 = vmatpush1.msra.mxu0 0.0
    %869 = vmatprep.subr.mxu0 0.0
    %870 = vmatpush1.msra.mxu0 0.0
    %871 = vmatprep.subr.mxu0 0.0
    %872 = vmatpush1.msra.mxu0 0.0
    %873 = vmatprep.subr.mxu0 0.0
    %874 = vmatpush1.msra.mxu0 0.0
    %875 = vmatprep.subr.mxu0 0.0
    %876 = vmatpush1.msra.mxu0 0.0
    %877 = vmatprep.subr.mxu0 0.0
    %878 = vmatpush1.msra.mxu0 0.0
    %879 = vmatprep.subr.mxu0 0.0
    %880 = vmatpush1.msra.mxu0 0.0
    %881 = vmatprep.subr.mxu0 0.0
    %882 = vmatpush1.msra.mxu0 0.0
    %883 = vmatprep.subr.mxu0 0.0
    %884 = vmatpush1.msra.mxu0 0.0
    %885 = vmatprep.subr.mxu0 0.0
    %886 = vmatpush1.msra.mxu0 0.0
    %887 = vmatprep.subr.mxu0 0.0
    %888 = vmatpush1.msra.mxu0 0.0
    %889 = vmatprep.subr.mxu0 0.0
    %890 = vmatpush1.msra.mxu0 0.0
    %891 = vmatprep.mubr.f32.mxu0 0.0
    %892 = vmatmul.mubr.f32.gmra.mrb[0].mxu0 %v825
    %v893 = vpop.f32.mrb[0].mxu0
    %v894 = vadd.f32 %v750, %v893
    %v895 = vpop.f32.mrb[0].mxu0
    %896 = vdwg.mxu0
    %v897 = vsub.f32 %v745, %v739
    %v898 = vsub.f32 %v748, %v742
    %v899 = vmul.f32 %v897, %v540
    %v900 = vmul.f32 %v898, %v540
    %v901 = vadd.f32 %v821, %v899
    %v902 = vadd.f32 %v894, %v900
    %905 = vrot.lane.b32.xlu0 %v528, 112
    %v906 = vpop.permute.xlu0 %905
    %907 = vrot.lane.b32.xlu0 %v529, 112
    %v908 = vpop.permute.xlu0 %907
    %v911 = vsel %vm124, %v906, 0.0
    %912 = vadd.xlane.f32.xlu0 %v911
    %v913 = vpop.xlane.xlu0 %912
    %v914 = vsel %vm124, %v908, 0.0
    %915 = vadd.xlane.f32.xlu0 %v914
    %v916 = vpop.xlane.xlu0 %915
    %919 = vrot.lane.b32.xlu0 %v542, 112
    %v920 = vpop.permute.xlu0 %919
    %921 = vrot.lane.b32.xlu0 %v543, 112
    %v922 = vpop.permute.xlu0 %921
    %v925 = vsel %vm124, %v920, 0.0
    %926 = vadd.xlane.f32.xlu0 %v925
    %v927 = vpop.xlane.xlu0 %926
    %v928 = vsel %vm124, %v922, 0.0
    %929 = vadd.xlane.f32.xlu0 %v928
    %v930 = vpop.xlane.xlu0 %929
    %v931 = vmul.f32 %v208, %v913
    %v932 = vmul.f32 %v209, %v916
    %933 = vrot.lane.b32.xlu0 %v340, 112
    %v934 = vpop.permute.xlu0 %933
    %935 = vrot.lane.b32.xlu0 %v426, 112
    %v936 = vpop.permute.xlu0 %935
    %v937 = vsel %vm124, %v934, 0
    %v939 = vsel %vm124, %v936, 0
    %941 = vmatprep.subr.mxu0 0.0
    %942 = vmatpush1.xpose.msra.mxu0 %v939
    %943 = vmatprep.subr.mxu0 0.0
    %944 = vmatpush1.xpose.msra.mxu0 0.0
    %945 = vmatprep.subr.mxu0 0.0
    %946 = vmatpush1.xpose.msra.mxu0 0.0
    %947 = vmatprep.subr.mxu0 0.0
    %948 = vmatpush1.xpose.msra.mxu0 0.0
    %949 = vmatprep.subr.mxu0 0.0
    %950 = vmatpush1.xpose.msra.mxu0 0.0
    %951 = vmatprep.subr.mxu0 0.0
    %952 = vmatpush1.xpose.msra.mxu0 0.0
    %953 = vmatprep.subr.mxu0 0.0
    %954 = vmatpush1.xpose.msra.mxu0 0.0
    %955 = vmatprep.subr.mxu0 0.0
    %956 = vmatpush1.xpose.msra.mxu0 0.0
    %957 = vmatprep.subr.mxu0 0.0
    %958 = vmatpush1.xpose.msra.mxu0 0.0
    %959 = vmatprep.subr.mxu0 0.0
    %960 = vmatpush1.xpose.msra.mxu0 0.0
    %961 = vmatprep.subr.mxu0 0.0
    %962 = vmatpush1.xpose.msra.mxu0 0.0
    %963 = vmatprep.subr.mxu0 0.0
    %964 = vmatpush1.xpose.msra.mxu0 0.0
    %965 = vmatprep.subr.mxu0 0.0
    %966 = vmatpush1.xpose.msra.mxu0 0.0
    %967 = vmatprep.subr.mxu0 0.0
    %968 = vmatpush1.xpose.msra.mxu0 0.0
    %969 = vmatprep.subr.mxu0 0.0
    %970 = vmatpush1.xpose.msra.mxu0 0.0
    %971 = vmatprep.subr.mxu0 0.0
    %972 = vmatpush1.xpose.msra.mxu0 0.0
    %973 = vmatprep.subr.mxu0 0.0
    %974 = vmatpush1.xpose.msra.mxu0 0.0
    %975 = vmatprep.subr.mxu0 0.0
    %976 = vmatpush1.xpose.msra.mxu0 0.0
    %977 = vmatprep.subr.mxu0 0.0
    %978 = vmatpush1.xpose.msra.mxu0 0.0
    %979 = vmatprep.subr.mxu0 0.0
    %980 = vmatpush1.xpose.msra.mxu0 0.0
    %981 = vmatprep.subr.mxu0 0.0
    %982 = vmatpush1.xpose.msra.mxu0 0.0
    %983 = vmatprep.subr.mxu0 0.0
    %984 = vmatpush1.xpose.msra.mxu0 0.0
    %985 = vmatprep.subr.mxu0 0.0
    %986 = vmatpush1.xpose.msra.mxu0 0.0
    %987 = vmatprep.subr.mxu0 0.0
    %988 = vmatpush1.xpose.msra.mxu0 0.0
    %989 = vmatprep.subr.mxu0 0.0
    %990 = vmatpush1.xpose.msra.mxu0 0.0
    %991 = vmatprep.subr.mxu0 0.0
    %992 = vmatpush1.xpose.msra.mxu0 0.0
    %993 = vmatprep.subr.mxu0 0.0
    %994 = vmatpush1.xpose.msra.mxu0 0.0
    %995 = vmatprep.subr.mxu0 0.0
    %996 = vmatpush1.xpose.msra.mxu0 0.0
    %997 = vmatprep.subr.mxu0 0.0
    %998 = vmatpush1.xpose.msra.mxu0 0.0
    %999 = vmatprep.subr.mxu0 0.0
    %1000 = vmatpush1.xpose.msra.mxu0 0.0
    %1001 = vmatprep.subr.mxu0 0.0
    %1002 = vmatpush1.xpose.msra.mxu0 0.0
    %1003 = vmatprep.subr.mxu0 0.0
    %1004 = vmatpush1.xpose.msra.mxu0 0.0
    %1005 = vmatprep.mubr.f32.mxu0 0.0
    %1006 = vmatmul.mubr.f32.gmra.mrb[0].mxu0 %v937
    %v1007 = vpop.f32.mrb[0].mxu0
    %v1008 = vadd.f32 %v931, %v1007
    %v1009 = vpop.f32.mrb[0].mxu0
    %1010 = vdwg.mxu0
    %1011 = vrot.lane.b32.xlu0 %v345, 112
    %v1012 = vpop.permute.xlu0 %1011
    %1013 = vrot.lane.b32.xlu0 %v431, 112
    %v1014 = vpop.permute.xlu0 %1013
    %v1015 = vsel %vm124, %v1012, 0
    %v1017 = vsel %vm124, %v1014, 0
    %1019 = vmatprep.subr.mxu0 0.0
    %1020 = vmatpush1.xpose.msra.mxu0 %v1017
    %1021 = vmatprep.subr.mxu0 0.0
    %1022 = vmatpush1.xpose.msra.mxu0 0.0
    %1023 = vmatprep.subr.mxu0 0.0
    %1024 = vmatpush1.xpose.msra.mxu0 0.0
    %1025 = vmatprep.subr.mxu0 0.0
    %1026 = vmatpush1.xpose.msra.mxu0 0.0
    %1027 = vmatprep.subr.mxu0 0.0
    %1028 = vmatpush1.xpose.msra.mxu0 0.0
    %1029 = vmatprep.subr.mxu0 0.0
    %1030 = vmatpush1.xpose.msra.mxu0 0.0
    %1031 = vmatprep.subr.mxu0 0.0
    %1032 = vmatpush1.xpose.msra.mxu0 0.0
    %1033 = vmatprep.subr.mxu0 0.0
    %1034 = vmatpush1.xpose.msra.mxu0 0.0
    %1035 = vmatprep.subr.mxu0 0.0
    %1036 = vmatpush1.xpose.msra.mxu0 0.0
    %1037 = vmatprep.subr.mxu0 0.0
    %1038 = vmatpush1.xpose.msra.mxu0 0.0
    %1039 = vmatprep.subr.mxu0 0.0
    %1040 = vmatpush1.xpose.msra.mxu0 0.0
    %1041 = vmatprep.subr.mxu0 0.0
    %1042 = vmatpush1.xpose.msra.mxu0 0.0
    %1043 = vmatprep.subr.mxu0 0.0
    %1044 = vmatpush1.xpose.msra.mxu0 0.0
    %1045 = vmatprep.subr.mxu0 0.0
    %1046 = vmatpush1.xpose.msra.mxu0 0.0
    %1047 = vmatprep.subr.mxu0 0.0
    %1048 = vmatpush1.xpose.msra.mxu0 0.0
    %1049 = vmatprep.subr.mxu0 0.0
    %1050 = vmatpush1.xpose.msra.mxu0 0.0
    %1051 = vmatprep.subr.mxu0 0.0
    %1052 = vmatpush1.xpose.msra.mxu0 0.0
    %1053 = vmatprep.subr.mxu0 0.0
    %1054 = vmatpush1.xpose.msra.mxu0 0.0
    %1055 = vmatprep.subr.mxu0 0.0
    %1056 = vmatpush1.xpose.msra.mxu0 0.0
    %1057 = vmatprep.subr.mxu0 0.0
    %1058 = vmatpush1.xpose.msra.mxu0 0.0
    %1059 = vmatprep.subr.mxu0 0.0
    %1060 = vmatpush1.xpose.msra.mxu0 0.0
    %1061 = vmatprep.subr.mxu0 0.0
    %1062 = vmatpush1.xpose.msra.mxu0 0.0
    %1063 = vmatprep.subr.mxu0 0.0
    %1064 = vmatpush1.xpose.msra.mxu0 0.0
    %1065 = vmatprep.subr.mxu0 0.0
    %1066 = vmatpush1.xpose.msra.mxu0 0.0
    %1067 = vmatprep.subr.mxu0 0.0
    %1068 = vmatpush1.xpose.msra.mxu0 0.0
    %1069 = vmatprep.subr.mxu0 0.0
    %1070 = vmatpush1.xpose.msra.mxu0 0.0
    %1071 = vmatprep.subr.mxu0 0.0
    %1072 = vmatpush1.xpose.msra.mxu0 0.0
    %1073 = vmatprep.subr.mxu0 0.0
    %1074 = vmatpush1.xpose.msra.mxu0 0.0
    %1075 = vmatprep.subr.mxu0 0.0
    %1076 = vmatpush1.xpose.msra.mxu0 0.0
    %1077 = vmatprep.subr.mxu0 0.0
    %1078 = vmatpush1.xpose.msra.mxu0 0.0
    %1079 = vmatprep.subr.mxu0 0.0
    %1080 = vmatpush1.xpose.msra.mxu0 0.0
    %1081 = vmatprep.subr.mxu0 0.0
    %1082 = vmatpush1.xpose.msra.mxu0 0.0
    %1083 = vmatprep.mubr.f32.mxu0 0.0
    %1084 = vmatmul.mubr.f32.gmra.mrb[0].mxu0 %v1015
    %v1085 = vpop.f32.mrb[0].mxu0
    %v1086 = vadd.f32 %v932, %v1085
    %v1087 = vpop.f32.mrb[0].mxu0
    %1088 = vdwg.mxu0
    %v1089 = vmul.f32 %v704, %v927
    %v1090 = vmul.f32 %v705, %v930
    %v1091 = vadd.f32 %v1008, %v1089
    %v1092 = vadd.f32 %v1086, %v1090
    %v1093 = vmul.f32 %v1091, 0.25
    %v1094 = vmul.f32 %v1092, 0.25
    %v1095 = vsel %vm712, %v1093, -inf
    %1096 = vmax.xlane.f32.xlu0 %v1095
    %v1097 = vpop.xlane.xlu0 %1096
    %v1098 = vsel %vm712, %v1094, -inf
    %1099 = vmax.xlane.f32.xlu0 %v1098
    %v1100 = vpop.xlane.xlu0 %1099
    %v1101 = vsub.f32 %v1093, %v1097
    %v1102 = vsub.f32 %v1094, %v1100
    %v1103 = vmul.f32 %v1101, 1.442695
    %v1104 = vpow.pop %v1103
    %v1105 = vmul.f32 %v1102, 1.442695
    %v1106 = vpow.pop %v1105
    %v1107 = vsel %vm712, %v1104, 0.0
    %1108 = vadd.xlane.f32.xlu0 %v1107
    %v1109 = vpop.xlane.xlu0 %1108
    %v1110 = vsel %vm712, %v1106, 0.0
    %1111 = vadd.xlane.f32.xlu0 %v1110
    %v1112 = vpop.xlane.xlu0 %1111
    %v1113 = vrcp.pop %v1109
    %v1114 = vrcp.pop %v1112
    %v1115 = vmul.f32 %v1104, %v1113
    %v1116 = vmul.f32 %v1106, %v1114
    %v1117 = vmul.f32 %v1115, %v208
    %v1118 = vmul.f32 %v1116, %v209
    %v1119 = vsel %vm712, %v1117, 0.0
    %1120 = vadd.xlane.f32.xlu0 %v1119
    %v1121 = vpop.xlane.xlu0 %1120
    %v1122 = vsel %vm712, %v1118, 0.0
    %1123 = vadd.xlane.f32.xlu0 %v1122
    %v1124 = vpop.xlane.xlu0 %1123
    %v1125 = vsel %vm712, %v1115, 0.0
    %1126 = vadd.xlane.f32.xlu0 %v1125
    %v1127 = vpop.xlane.xlu0 %1126
    %v1128 = vsel %vm712, %v1116, 0.0
    %1129 = vadd.xlane.f32.xlu0 %v1128
    %v1130 = vpop.xlane.xlu0 %1129
    %v1131 = vmul.f32 %v1121, %v526
    %v1132 = vmul.f32 %v1124, %v526
    %1134 = vrot.lane.b32.xlu0 %v512, 112
    %v1135 = vpop.permute.xlu0 %1134
    %1138 = vrot.lane.b32.xlu0 %v1131, 112
    %v1139 = vpop.permute.xlu0 %1138
    %v1142 = vsel %vm712, %v1115, 0
    %1144 = vmatprep.subr.mxu0 0.0
    %1145 = vmatpush1.msra.mxu0 %v1135
    %1146 = vmatprep.subr.mxu0 0.0
    %1147 = vmatpush1.msra.mxu0 0.0
    %1148 = vmatprep.subr.mxu0 0.0
    %1149 = vmatpush1.msra.mxu0 0.0
    %1150 = vmatprep.subr.mxu0 0.0
    %1151 = vmatpush1.msra.mxu0 0.0
    %1152 = vmatprep.subr.mxu0 0.0
    %1153 = vmatpush1.msra.mxu0 0.0
    %1154 = vmatprep.subr.mxu0 0.0
    %1155 = vmatpush1.msra.mxu0 0.0
    %1156 = vmatprep.subr.mxu0 0.0
    %1157 = vmatpush1.msra.mxu0 0.0
    %1158 = vmatprep.subr.mxu0 0.0
    %1159 = vmatpush1.msra.mxu0 0.0
    %1160 = vmatprep.subr.mxu0 0.0
    %1161 = vmatpush1.msra.mxu0 0.0
    %1162 = vmatprep.subr.mxu0 0.0
    %1163 = vmatpush1.msra.mxu0 0.0
    %1164 = vmatprep.subr.mxu0 0.0
    %1165 = vmatpush1.msra.mxu0 0.0
    %1166 = vmatprep.subr.mxu0 0.0
    %1167 = vmatpush1.msra.mxu0 0.0
    %1168 = vmatprep.subr.mxu0 0.0
    %1169 = vmatpush1.msra.mxu0 0.0
    %1170 = vmatprep.subr.mxu0 0.0
    %1171 = vmatpush1.msra.mxu0 0.0
    %1172 = vmatprep.subr.mxu0 0.0
    %1173 = vmatpush1.msra.mxu0 0.0
    %1174 = vmatprep.subr.mxu0 0.0
    %1175 = vmatpush1.msra.mxu0 0.0
    %1176 = vmatprep.subr.mxu0 0.0
    %1177 = vmatpush1.msra.mxu0 0.0
    %1178 = vmatprep.subr.mxu0 0.0
    %1179 = vmatpush1.msra.mxu0 0.0
    %1180 = vmatprep.subr.mxu0 0.0
    %1181 = vmatpush1.msra.mxu0 0.0
    %1182 = vmatprep.subr.mxu0 0.0
    %1183 = vmatpush1.msra.mxu0 0.0
    %1184 = vmatprep.subr.mxu0 0.0
    %1185 = vmatpush1.msra.mxu0 0.0
    %1186 = vmatprep.subr.mxu0 0.0
    %1187 = vmatpush1.msra.mxu0 0.0
    %1188 = vmatprep.subr.mxu0 0.0
    %1189 = vmatpush1.msra.mxu0 0.0
    %1190 = vmatprep.subr.mxu0 0.0
    %1191 = vmatpush1.msra.mxu0 0.0
    %1192 = vmatprep.subr.mxu0 0.0
    %1193 = vmatpush1.msra.mxu0 0.0
    %1194 = vmatprep.subr.mxu0 0.0
    %1195 = vmatpush1.msra.mxu0 0.0
    %1196 = vmatprep.subr.mxu0 0.0
    %1197 = vmatpush1.msra.mxu0 0.0
    %1198 = vmatprep.subr.mxu0 0.0
    %1199 = vmatpush1.msra.mxu0 0.0
    %1200 = vmatprep.subr.mxu0 0.0
    %1201 = vmatpush1.msra.mxu0 0.0
    %1202 = vmatprep.subr.mxu0 0.0
    %1203 = vmatpush1.msra.mxu0 0.0
    %1204 = vmatprep.subr.mxu0 0.0
    %1205 = vmatpush1.msra.mxu0 0.0
    %1206 = vmatprep.subr.mxu0 0.0
    %1207 = vmatpush1.msra.mxu0 0.0
    %1208 = vmatprep.mubr.f32.mxu0 0.0
    %1209 = vmatmul.mubr.f32.gmra.mrb[0].mxu0 %v1142
    %v1210 = vpop.f32.mrb[0].mxu0
    %v1211 = vadd.f32 %v1139, %v1210
    %v1212 = vpop.f32.mrb[0].mxu0
    %1213 = vdwg.mxu0
    %1215 = vrot.lane.b32.xlu0 %v517, 112
    %v1216 = vpop.permute.xlu0 %1215
    %1219 = vrot.lane.b32.xlu0 %v1132, 112
    %v1220 = vpop.permute.xlu0 %1219
    %v1223 = vsel %vm712, %v1116, 0
    %1225 = vmatprep.subr.mxu0 0.0
    %1226 = vmatpush1.msra.mxu0 %v1216
    %1227 = vmatprep.subr.mxu0 0.0
    %1228 = vmatpush1.msra.mxu0 0.0
    %1229 = vmatprep.subr.mxu0 0.0
    %1230 = vmatpush1.msra.mxu0 0.0
    %1231 = vmatprep.subr.mxu0 0.0
    %1232 = vmatpush1.msra.mxu0 0.0
    %1233 = vmatprep.subr.mxu0 0.0
    %1234 = vmatpush1.msra.mxu0 0.0
    %1235 = vmatprep.subr.mxu0 0.0
    %1236 = vmatpush1.msra.mxu0 0.0
    %1237 = vmatprep.subr.mxu0 0.0
    %1238 = vmatpush1.msra.mxu0 0.0
    %1239 = vmatprep.subr.mxu0 0.0
    %1240 = vmatpush1.msra.mxu0 0.0
    %1241 = vmatprep.subr.mxu0 0.0
    %1242 = vmatpush1.msra.mxu0 0.0
    %1243 = vmatprep.subr.mxu0 0.0
    %1244 = vmatpush1.msra.mxu0 0.0
    %1245 = vmatprep.subr.mxu0 0.0
    %1246 = vmatpush1.msra.mxu0 0.0
    %1247 = vmatprep.subr.mxu0 0.0
    %1248 = vmatpush1.msra.mxu0 0.0
    %1249 = vmatprep.subr.mxu0 0.0
    %1250 = vmatpush1.msra.mxu0 0.0
    %1251 = vmatprep.subr.mxu0 0.0
    %1252 = vmatpush1.msra.mxu0 0.0
    %1253 = vmatprep.subr.mxu0 0.0
    %1254 = vmatpush1.msra.mxu0 0.0
    %1255 = vmatprep.subr.mxu0 0.0
    %1256 = vmatpush1.msra.mxu0 0.0
    %1257 = vmatprep.subr.mxu0 0.0
    %1258 = vmatpush1.msra.mxu0 0.0
    %1259 = vmatprep.subr.mxu0 0.0
    %1260 = vmatpush1.msra.mxu0 0.0
    %1261 = vmatprep.subr.mxu0 0.0
    %1262 = vmatpush1.msra.mxu0 0.0
    %1263 = vmatprep.subr.mxu0 0.0
    %1264 = vmatpush1.msra.mxu0 0.0
    %1265 = vmatprep.subr.mxu0 0.0
    %1266 = vmatpush1.msra.mxu0 0.0
    %1267 = vmatprep.subr.mxu0 0.0
    %1268 = vmatpush1.msra.mxu0 0.0
    %1269 = vmatprep.subr.mxu0 0.0
    %1270 = vmatpush1.msra.mxu0 0.0
    %1271 = vmatprep.subr.mxu0 0.0
    %1272 = vmatpush1.msra.mxu0 0.0
    %1273 = vmatprep.subr.mxu0 0.0
    %1274 = vmatpush1.msra.mxu0 0.0
    %1275 = vmatprep.subr.mxu0 0.0
    %1276 = vmatpush1.msra.mxu0 0.0
    %1277 = vmatprep.subr.mxu0 0.0
    %1278 = vmatpush1.msra.mxu0 0.0
    %1279 = vmatprep.subr.mxu0 0.0
    %1280 = vmatpush1.msra.mxu0 0.0
    %1281 = vmatprep.subr.mxu0 0.0
    %1282 = vmatpush1.msra.mxu0 0.0
    %1283 = vmatprep.subr.mxu0 0.0
    %1284 = vmatpush1.msra.mxu0 0.0
    %1285 = vmatprep.subr.mxu0 0.0
    %1286 = vmatpush1.msra.mxu0 0.0
    %1287 = vmatprep.subr.mxu0 0.0
    %1288 = vmatpush1.msra.mxu0 0.0
    %1289 = vmatprep.mubr.f32.mxu0 0.0
    %1290 = vmatmul.mubr.f32.gmra.mrb[0].mxu0 %v1223
    %v1291 = vpop.f32.mrb[0].mxu0
    %v1292 = vadd.f32 %v1220, %v1291
    %v1293 = vpop.f32.mrb[0].mxu0
    %1294 = vdwg.mxu0
    %v1295 = vsub.f32 %v1127, %v1121
    %v1296 = vsub.f32 %v1130, %v1124
    %v1297 = vmul.f32 %v1295, %v540
    %v1298 = vmul.f32 %v1296, %v540
    %1301 = vrot.lane.b32.xlu0 %v1297, 112
    %v1302 = vpop.permute.xlu0 %1301
    %1303 = vrot.lane.b32.xlu0 %v1298, 112
    %v1304 = vpop.permute.xlu0 %1303
    %v1307 = vadd.f32 %v1211, %v1302
    %v1308 = vadd.f32 %v1292, %v1304
    %1309 = vrot.lane.b32.xlu0 %v528, 96
    %v1310 = vpop.permute.xlu0 %1309
    %1311 = vrot.lane.b32.xlu0 %v529, 96
    %v1312 = vpop.permute.xlu0 %1311
    %v1315 = vsel %vm124, %v1310, 0.0
    %1316 = vadd.xlane.f32.xlu0 %v1315
    %v1317 = vpop.xlane.xlu0 %1316
    %v1318 = vsel %vm124, %v1312, 0.0
    %1319 = vadd.xlane.f32.xlu0 %v1318
    %v1320 = vpop.xlane.xlu0 %1319
    %1321 = vrot.lane.b32.xlu0 %v542, 96
    %v1322 = vpop.permute.xlu0 %1321
    %1323 = vrot.lane.b32.xlu0 %v543, 96
    %v1324 = vpop.permute.xlu0 %1323
    %v1327 = vsel %vm124, %v1322, 0.0
    %1328 = vadd.xlane.f32.xlu0 %v1327
    %v1329 = vpop.xlane.xlu0 %1328
    %v1330 = vsel %vm124, %v1324, 0.0
    %1331 = vadd.xlane.f32.xlu0 %v1330
    %v1332 = vpop.xlane.xlu0 %1331
    %v1333 = vmul.f32 %v208, %v1317
    %v1334 = vmul.f32 %v209, %v1320
    %1335 = vrot.lane.b32.xlu0 %v340, 96
    %v1336 = vpop.permute.xlu0 %1335
    %1337 = vrot.lane.b32.xlu0 %v426, 96
    %v1338 = vpop.permute.xlu0 %1337
    %v1339 = vsel %vm124, %v1336, 0
    %v1341 = vsel %vm124, %v1338, 0
    %1343 = vmatprep.subr.mxu0 0.0
    %1344 = vmatpush1.xpose.msra.mxu0 %v1341
    %1345 = vmatprep.subr.mxu0 0.0
    %1346 = vmatpush1.xpose.msra.mxu0 0.0
    %1347 = vmatprep.subr.mxu0 0.0
    %1348 = vmatpush1.xpose.msra.mxu0 0.0
    %1349 = vmatprep.subr.mxu0 0.0
    %1350 = vmatpush1.xpose.msra.mxu0 0.0
    %1351 = vmatprep.subr.mxu0 0.0
    %1352 = vmatpush1.xpose.msra.mxu0 0.0
    %1353 = vmatprep.subr.mxu0 0.0
    %1354 = vmatpush1.xpose.msra.mxu0 0.0
    %1355 = vmatprep.subr.mxu0 0.0
    %1356 = vmatpush1.xpose.msra.mxu0 0.0
    %1357 = vmatprep.subr.mxu0 0.0
    %1358 = vmatpush1.xpose.msra.mxu0 0.0
    %1359 = vmatprep.subr.mxu0 0.0
    %1360 = vmatpush1.xpose.msra.mxu0 0.0
    %1361 = vmatprep.subr.mxu0 0.0
    %1362 = vmatpush1.xpose.msra.mxu0 0.0
    %1363 = vmatprep.subr.mxu0 0.0
    %1364 = vmatpush1.xpose.msra.mxu0 0.0
    %1365 = vmatprep.subr.mxu0 0.0
    %1366 = vmatpush1.xpose.msra.mxu0 0.0
    %1367 = vmatprep.subr.mxu0 0.0
    %1368 = vmatpush1.xpose.msra.mxu0 0.0
    %1369 = vmatprep.subr.mxu0 0.0
    %1370 = vmatpush1.xpose.msra.mxu0 0.0
    %1371 = vmatprep.subr.mxu0 0.0
    %1372 = vmatpush1.xpose.msra.mxu0 0.0
    %1373 = vmatprep.subr.mxu0 0.0
    %1374 = vmatpush1.xpose.msra.mxu0 0.0
    %1375 = vmatprep.subr.mxu0 0.0
    %1376 = vmatpush1.xpose.msra.mxu0 0.0
    %1377 = vmatprep.subr.mxu0 0.0
    %1378 = vmatpush1.xpose.msra.mxu0 0.0
    %1379 = vmatprep.subr.mxu0 0.0
    %1380 = vmatpush1.xpose.msra.mxu0 0.0
    %1381 = vmatprep.subr.mxu0 0.0
    %1382 = vmatpush1.xpose.msra.mxu0 0.0
    %1383 = vmatprep.subr.mxu0 0.0
    %1384 = vmatpush1.xpose.msra.mxu0 0.0
    %1385 = vmatprep.subr.mxu0 0.0
    %1386 = vmatpush1.xpose.msra.mxu0 0.0
    %1387 = vmatprep.subr.mxu0 0.0
    %1388 = vmatpush1.xpose.msra.mxu0 0.0
    %1389 = vmatprep.subr.mxu0 0.0
    %1390 = vmatpush1.xpose.msra.mxu0 0.0
    %1391 = vmatprep.subr.mxu0 0.0
    %1392 = vmatpush1.xpose.msra.mxu0 0.0
    %1393 = vmatprep.subr.mxu0 0.0
    %1394 = vmatpush1.xpose.msra.mxu0 0.0
    %1395 = vmatprep.subr.mxu0 0.0
    %1396 = vmatpush1.xpose.msra.mxu0 0.0
    %1397 = vmatprep.subr.mxu0 0.0
    %1398 = vmatpush1.xpose.msra.mxu0 0.0
    %1399 = vmatprep.subr.mxu0 0.0
    %1400 = vmatpush1.xpose.msra.mxu0 0.0
    %1401 = vmatprep.subr.mxu0 0.0
    %1402 = vmatpush1.xpose.msra.mxu0 0.0
    %1403 = vmatprep.subr.mxu0 0.0
    %1404 = vmatpush1.xpose.msra.mxu0 0.0
    %1405 = vmatprep.subr.mxu0 0.0
    %1406 = vmatpush1.xpose.msra.mxu0 0.0
    %1407 = vmatprep.mubr.f32.mxu0 0.0
    %1408 = vmatmul.mubr.f32.gmra.mrb[0].mxu0 %v1339
    %v1409 = vpop.f32.mrb[0].mxu0
    %v1410 = vadd.f32 %v1333, %v1409
    %v1411 = vpop.f32.mrb[0].mxu0
    %1412 = vdwg.mxu0
    %1413 = vrot.lane.b32.xlu0 %v345, 96
    %v1414 = vpop.permute.xlu0 %1413
    %1415 = vrot.lane.b32.xlu0 %v431, 96
    %v1416 = vpop.permute.xlu0 %1415
    %v1417 = vsel %vm124, %v1414, 0
    %v1419 = vsel %vm124, %v1416, 0
    %1421 = vmatprep.subr.mxu0 0.0
    %1422 = vmatpush1.xpose.msra.mxu0 %v1419
    %1423 = vmatprep.subr.mxu0 0.0
    %1424 = vmatpush1.xpose.msra.mxu0 0.0
    %1425 = vmatprep.subr.mxu0 0.0
    %1426 = vmatpush1.xpose.msra.mxu0 0.0
    %1427 = vmatprep.subr.mxu0 0.0
    %1428 = vmatpush1.xpose.msra.mxu0 0.0
    %1429 = vmatprep.subr.mxu0 0.0
    %1430 = vmatpush1.xpose.msra.mxu0 0.0
    %1431 = vmatprep.subr.mxu0 0.0
    %1432 = vmatpush1.xpose.msra.mxu0 0.0
    %1433 = vmatprep.subr.mxu0 0.0
    %1434 = vmatpush1.xpose.msra.mxu0 0.0
    %1435 = vmatprep.subr.mxu0 0.0
    %1436 = vmatpush1.xpose.msra.mxu0 0.0
    %1437 = vmatprep.subr.mxu0 0.0
    %1438 = vmatpush1.xpose.msra.mxu0 0.0
    %1439 = vmatprep.subr.mxu0 0.0
    %1440 = vmatpush1.xpose.msra.mxu0 0.0
    %1441 = vmatprep.subr.mxu0 0.0
    %1442 = vmatpush1.xpose.msra.mxu0 0.0
    %1443 = vmatprep.subr.mxu0 0.0
    %1444 = vmatpush1.xpose.msra.mxu0 0.0
    %1445 = vmatprep.subr.mxu0 0.0
    %1446 = vmatpush1.xpose.msra.mxu0 0.0
    %1447 = vmatprep.subr.mxu0 0.0
    %1448 = vmatpush1.xpose.msra.mxu0 0.0
    %1449 = vmatprep.subr.mxu0 0.0
    %1450 = vmatpush1.xpose.msra.mxu0 0.0
    %1451 = vmatprep.subr.mxu0 0.0
    %1452 = vmatpush1.xpose.msra.mxu0 0.0
    %1453 = vmatprep.subr.mxu0 0.0
    %1454 = vmatpush1.xpose.msra.mxu0 0.0
    %1455 = vmatprep.subr.mxu0 0.0
    %1456 = vmatpush1.xpose.msra.mxu0 0.0
    %1457 = vmatprep.subr.mxu0 0.0
    %1458 = vmatpush1.xpose.msra.mxu0 0.0
    %1459 = vmatprep.subr.mxu0 0.0
    %1460 = vmatpush1.xpose.msra.mxu0 0.0
    %1461 = vmatprep.subr.mxu0 0.0
    %1462 = vmatpush1.xpose.msra.mxu0 0.0
    %1463 = vmatprep.subr.mxu0 0.0
    %1464 = vmatpush1.xpose.msra.mxu0 0.0
    %1465 = vmatprep.subr.mxu0 0.0
    %1466 = vmatpush1.xpose.msra.mxu0 0.0
    %1467 = vmatprep.subr.mxu0 0.0
    %1468 = vmatpush1.xpose.msra.mxu0 0.0
    %1469 = vmatprep.subr.mxu0 0.0
    %1470 = vmatpush1.xpose.msra.mxu0 0.0
    %1471 = vmatprep.subr.mxu0 0.0
    %1472 = vmatpush1.xpose.msra.mxu0 0.0
    %1473 = vmatprep.subr.mxu0 0.0
    %1474 = vmatpush1.xpose.msra.mxu0 0.0
    %1475 = vmatprep.subr.mxu0 0.0
    %1476 = vmatpush1.xpose.msra.mxu0 0.0
    %1477 = vmatprep.subr.mxu0 0.0
    %1478 = vmatpush1.xpose.msra.mxu0 0.0
    %1479 = vmatprep.subr.mxu0 0.0
    %1480 = vmatpush1.xpose.msra.mxu0 0.0
    %1481 = vmatprep.subr.mxu0 0.0
    %1482 = vmatpush1.xpose.msra.mxu0 0.0
    %1483 = vmatprep.subr.mxu0 0.0
    %1484 = vmatpush1.xpose.msra.mxu0 0.0
    %1485 = vmatprep.mubr.f32.mxu0 0.0
    %1486 = vmatmul.mubr.f32.gmra.mrb[0].mxu0 %v1417
    %v1487 = vpop.f32.mrb[0].mxu0
    %v1488 = vadd.f32 %v1334, %v1487
    %v1489 = vpop.f32.mrb[0].mxu0
    %1490 = vdwg.mxu0
    %v1491 = vmul.f32 %v704, %v1329
    %v1492 = vmul.f32 %v705, %v1332
    %v1493 = vadd.f32 %v1410, %v1491
    %v1494 = vadd.f32 %v1488, %v1492
    %v1495 = vmul.f32 %v1493, 0.25
    %v1496 = vmul.f32 %v1494, 0.25
    %v1497 = vsel %vm712, %v1495, -inf
    %1498 = vmax.xlane.f32.xlu0 %v1497
    %v1499 = vpop.xlane.xlu0 %1498
    %v1500 = vsel %vm712, %v1496, -inf
    %1501 = vmax.xlane.f32.xlu0 %v1500
    %v1502 = vpop.xlane.xlu0 %1501
    %v1503 = vsub.f32 %v1495, %v1499
    %v1504 = vsub.f32 %v1496, %v1502
    %v1505 = vmul.f32 %v1503, 1.442695
    %v1506 = vpow.pop %v1505
    %v1507 = vmul.f32 %v1504, 1.442695
    %v1508 = vpow.pop %v1507
    %v1509 = vsel %vm712, %v1506, 0.0
    %1510 = vadd.xlane.f32.xlu0 %v1509
    %v1511 = vpop.xlane.xlu0 %1510
    %v1512 = vsel %vm712, %v1508, 0.0
    %1513 = vadd.xlane.f32.xlu0 %v1512
    %v1514 = vpop.xlane.xlu0 %1513
    %v1515 = vrcp.pop %v1511
    %v1516 = vrcp.pop %v1514
    %v1517 = vmul.f32 %v1506, %v1515
    %v1518 = vmul.f32 %v1508, %v1516
    %v1519 = vmul.f32 %v1517, %v208
    %v1520 = vmul.f32 %v1518, %v209
    %v1521 = vsel %vm712, %v1519, 0.0
    %1522 = vadd.xlane.f32.xlu0 %v1521
    %v1523 = vpop.xlane.xlu0 %1522
    %v1524 = vsel %vm712, %v1520, 0.0
    %1525 = vadd.xlane.f32.xlu0 %v1524
    %v1526 = vpop.xlane.xlu0 %1525
    %v1527 = vsel %vm712, %v1517, 0.0
    %1528 = vadd.xlane.f32.xlu0 %v1527
    %v1529 = vpop.xlane.xlu0 %1528
    %v1530 = vsel %vm712, %v1518, 0.0
    %1531 = vadd.xlane.f32.xlu0 %v1530
    %v1532 = vpop.xlane.xlu0 %1531
    %v1533 = vmul.f32 %v1523, %v526
    %v1534 = vmul.f32 %v1526, %v526
    %1535 = vrot.lane.b32.xlu0 %v512, 96
    %v1536 = vpop.permute.xlu0 %1535
    %1539 = vrot.lane.b32.xlu0 %v1533, 96
    %v1540 = vpop.permute.xlu0 %1539
    %v1543 = vsel %vm712, %v1517, 0
    %1545 = vmatprep.subr.mxu0 0.0
    %1546 = vmatpush1.msra.mxu0 %v1536
    %1547 = vmatprep.subr.mxu0 0.0
    %1548 = vmatpush1.msra.mxu0 0.0
    %1549 = vmatprep.subr.mxu0 0.0
    %1550 = vmatpush1.msra.mxu0 0.0
    %1551 = vmatprep.subr.mxu0 0.0
    %1552 = vmatpush1.msra.mxu0 0.0
    %1553 = vmatprep.subr.mxu0 0.0
    %1554 = vmatpush1.msra.mxu0 0.0
    %1555 = vmatprep.subr.mxu0 0.0
    %1556 = vmatpush1.msra.mxu0 0.0
    %1557 = vmatprep.subr.mxu0 0.0
    %1558 = vmatpush1.msra.mxu0 0.0
    %1559 = vmatprep.subr.mxu0 0.0
    %1560 = vmatpush1.msra.mxu0 0.0
    %1561 = vmatprep.subr.mxu0 0.0
    %1562 = vmatpush1.msra.mxu0 0.0
    %1563 = vmatprep.subr.mxu0 0.0
    %1564 = vmatpush1.msra.mxu0 0.0
    %1565 = vmatprep.subr.mxu0 0.0
    %1566 = vmatpush1.msra.mxu0 0.0
    %1567 = vmatprep.subr.mxu0 0.0
    %1568 = vmatpush1.msra.mxu0 0.0
    %1569 = vmatprep.subr.mxu0 0.0
    %1570 = vmatpush1.msra.mxu0 0.0
    %1571 = vmatprep.subr.mxu0 0.0
    %1572 = vmatpush1.msra.mxu0 0.0
    %1573 = vmatprep.subr.mxu0 0.0
    %1574 = vmatpush1.msra.mxu0 0.0
    %1575 = vmatprep.subr.mxu0 0.0
    %1576 = vmatpush1.msra.mxu0 0.0
    %1577 = vmatprep.subr.mxu0 0.0
    %1578 = vmatpush1.msra.mxu0 0.0
    %1579 = vmatprep.subr.mxu0 0.0
    %1580 = vmatpush1.msra.mxu0 0.0
    %1581 = vmatprep.subr.mxu0 0.0
    %1582 = vmatpush1.msra.mxu0 0.0
    %1583 = vmatprep.subr.mxu0 0.0
    %1584 = vmatpush1.msra.mxu0 0.0
    %1585 = vmatprep.subr.mxu0 0.0
    %1586 = vmatpush1.msra.mxu0 0.0
    %1587 = vmatprep.subr.mxu0 0.0
    %1588 = vmatpush1.msra.mxu0 0.0
    %1589 = vmatprep.subr.mxu0 0.0
    %1590 = vmatpush1.msra.mxu0 0.0
    %1591 = vmatprep.subr.mxu0 0.0
    %1592 = vmatpush1.msra.mxu0 0.0
    %1593 = vmatprep.subr.mxu0 0.0
    %1594 = vmatpush1.msra.mxu0 0.0
    %1595 = vmatprep.subr.mxu0 0.0
    %1596 = vmatpush1.msra.mxu0 0.0
    %1597 = vmatprep.subr.mxu0 0.0
    %1598 = vmatpush1.msra.mxu0 0.0
    %1599 = vmatprep.subr.mxu0 0.0
    %1600 = vmatpush1.msra.mxu0 0.0
    %1601 = vmatprep.subr.mxu0 0.0
    %1602 = vmatpush1.msra.mxu0 0.0
    %1603 = vmatprep.subr.mxu0 0.0
    %1604 = vmatpush1.msra.mxu0 0.0
    %1605 = vmatprep.subr.mxu0 0.0
    %1606 = vmatpush1.msra.mxu0 0.0
    %1607 = vmatprep.subr.mxu0 0.0
    %1608 = vmatpush1.msra.mxu0 0.0
    %1609 = vmatprep.mubr.f32.mxu0 0.0
    %1610 = vmatmul.mubr.f32.gmra.mrb[0].mxu0 %v1543
    %v1611 = vpop.f32.mrb[0].mxu0
    %v1612 = vadd.f32 %v1540, %v1611
    %v1613 = vpop.f32.mrb[0].mxu0
    %1614 = vdwg.mxu0
    %1615 = vrot.lane.b32.xlu0 %v517, 96
    %v1616 = vpop.permute.xlu0 %1615
    %1619 = vrot.lane.b32.xlu0 %v1534, 96
    %v1620 = vpop.permute.xlu0 %1619
    %v1623 = vsel %vm712, %v1518, 0
    %1625 = vmatprep.subr.mxu0 0.0
    %1626 = vmatpush1.msra.mxu0 %v1616
    %1627 = vmatprep.subr.mxu0 0.0
    %1628 = vmatpush1.msra.mxu0 0.0
    %1629 = vmatprep.subr.mxu0 0.0
    %1630 = vmatpush1.msra.mxu0 0.0
    %1631 = vmatprep.subr.mxu0 0.0
    %1632 = vmatpush1.msra.mxu0 0.0
    %1633 = vmatprep.subr.mxu0 0.0
    %1634 = vmatpush1.msra.mxu0 0.0
    %1635 = vmatprep.subr.mxu0 0.0
    %1636 = vmatpush1.msra.mxu0 0.0
    %1637 = vmatprep.subr.mxu0 0.0
    %1638 = vmatpush1.msra.mxu0 0.0
    %1639 = vmatprep.subr.mxu0 0.0
    %1640 = vmatpush1.msra.mxu0 0.0
    %1641 = vmatprep.subr.mxu0 0.0
    %1642 = vmatpush1.msra.mxu0 0.0
    %1643 = vmatprep.subr.mxu0 0.0
    %1644 = vmatpush1.msra.mxu0 0.0
    %1645 = vmatprep.subr.mxu0 0.0
    %1646 = vmatpush1.msra.mxu0 0.0
    %1647 = vmatprep.subr.mxu0 0.0
    %1648 = vmatpush1.msra.mxu0 0.0
    %1649 = vmatprep.subr.mxu0 0.0
    %1650 = vmatpush1.msra.mxu0 0.0
    %1651 = vmatprep.subr.mxu0 0.0
    %1652 = vmatpush1.msra.mxu0 0.0
    %1653 = vmatprep.subr.mxu0 0.0
    %1654 = vmatpush1.msra.mxu0 0.0
    %1655 = vmatprep.subr.mxu0 0.0
    %1656 = vmatpush1.msra.mxu0 0.0
    %1657 = vmatprep.subr.mxu0 0.0
    %1658 = vmatpush1.msra.mxu0 0.0
    %1659 = vmatprep.subr.mxu0 0.0
    %1660 = vmatpush1.msra.mxu0 0.0
    %1661 = vmatprep.subr.mxu0 0.0
    %1662 = vmatpush1.msra.mxu0 0.0
    %1663 = vmatprep.subr.mxu0 0.0
    %1664 = vmatpush1.msra.mxu0 0.0
    %1665 = vmatprep.subr.mxu0 0.0
    %1666 = vmatpush1.msra.mxu0 0.0
    %1667 = vmatprep.subr.mxu0 0.0
    %1668 = vmatpush1.msra.mxu0 0.0
    %1669 = vmatprep.subr.mxu0 0.0
    %1670 = vmatpush1.msra.mxu0 0.0
    %1671 = vmatprep.subr.mxu0 0.0
    %1672 = vmatpush1.msra.mxu0 0.0
    %1673 = vmatprep.subr.mxu0 0.0
    %1674 = vmatpush1.msra.mxu0 0.0
    %1675 = vmatprep.subr.mxu0 0.0
    %1676 = vmatpush1.msra.mxu0 0.0
    %1677 = vmatprep.subr.mxu0 0.0
    %1678 = vmatpush1.msra.mxu0 0.0
    %1679 = vmatprep.subr.mxu0 0.0
    %1680 = vmatpush1.msra.mxu0 0.0
    %1681 = vmatprep.subr.mxu0 0.0
    %1682 = vmatpush1.msra.mxu0 0.0
    %1683 = vmatprep.subr.mxu0 0.0
    %1684 = vmatpush1.msra.mxu0 0.0
    %1685 = vmatprep.subr.mxu0 0.0
    %1686 = vmatpush1.msra.mxu0 0.0
    %1687 = vmatprep.subr.mxu0 0.0
    %1688 = vmatpush1.msra.mxu0 0.0
    %1689 = vmatprep.mubr.f32.mxu0 0.0
    %1690 = vmatmul.mubr.f32.gmra.mrb[0].mxu0 %v1623
    %v1691 = vpop.f32.mrb[0].mxu0
    %v1692 = vadd.f32 %v1620, %v1691
    %v1693 = vpop.f32.mrb[0].mxu0
    %1694 = vdwg.mxu0
    %v1695 = vsub.f32 %v1529, %v1523
    %v1696 = vsub.f32 %v1532, %v1526
    %v1697 = vmul.f32 %v1695, %v540
    %v1698 = vmul.f32 %v1696, %v540
    %1701 = vrot.lane.b32.xlu0 %v1697, 96
    %v1702 = vpop.permute.xlu0 %1701
    %1703 = vrot.lane.b32.xlu0 %v1698, 96
    %v1704 = vpop.permute.xlu0 %1703
    %v1707 = vadd.f32 %v1612, %v1702
    %v1708 = vadd.f32 %v1692, %v1704
    %1709 = vrot.lane.b32.xlu0 %v528, 80
    %v1710 = vpop.permute.xlu0 %1709
    %1711 = vrot.lane.b32.xlu0 %v529, 80
    %v1712 = vpop.permute.xlu0 %1711
    %v1715 = vsel %vm124, %v1710, 0.0
    %1716 = vadd.xlane.f32.xlu0 %v1715
    %v1717 = vpop.xlane.xlu0 %1716
    %v1718 = vsel %vm124, %v1712, 0.0
    %1719 = vadd.xlane.f32.xlu0 %v1718
    %v1720 = vpop.xlane.xlu0 %1719
    %1721 = vrot.lane.b32.xlu0 %v542, 80
    %v1722 = vpop.permute.xlu0 %1721
    %1723 = vrot.lane.b32.xlu0 %v543, 80
    %v1724 = vpop.permute.xlu0 %1723
    %v1727 = vsel %vm124, %v1722, 0.0
    %1728 = vadd.xlane.f32.xlu0 %v1727
    %v1729 = vpop.xlane.xlu0 %1728
    %v1730 = vsel %vm124, %v1724, 0.0
    %1731 = vadd.xlane.f32.xlu0 %v1730
    %v1732 = vpop.xlane.xlu0 %1731
    %v1733 = vmul.f32 %v208, %v1717
    %v1734 = vmul.f32 %v209, %v1720
    %1735 = vrot.lane.b32.xlu0 %v340, 80
    %v1736 = vpop.permute.xlu0 %1735
    %1737 = vrot.lane.b32.xlu0 %v426, 80
    %v1738 = vpop.permute.xlu0 %1737
    %v1739 = vsel %vm124, %v1736, 0
    %v1741 = vsel %vm124, %v1738, 0
    %1743 = vmatprep.subr.mxu0 0.0
    %1744 = vmatpush1.xpose.msra.mxu0 %v1741
    %1745 = vmatprep.subr.mxu0 0.0
    %1746 = vmatpush1.xpose.msra.mxu0 0.0
    %1747 = vmatprep.subr.mxu0 0.0
    %1748 = vmatpush1.xpose.msra.mxu0 0.0
    %1749 = vmatprep.subr.mxu0 0.0
    %1750 = vmatpush1.xpose.msra.mxu0 0.0
    %1751 = vmatprep.subr.mxu0 0.0
    %1752 = vmatpush1.xpose.msra.mxu0 0.0
    %1753 = vmatprep.subr.mxu0 0.0
    %1754 = vmatpush1.xpose.msra.mxu0 0.0
    %1755 = vmatprep.subr.mxu0 0.0
    %1756 = vmatpush1.xpose.msra.mxu0 0.0
    %1757 = vmatprep.subr.mxu0 0.0
    %1758 = vmatpush1.xpose.msra.mxu0 0.0
    %1759 = vmatprep.subr.mxu0 0.0
    %1760 = vmatpush1.xpose.msra.mxu0 0.0
    %1761 = vmatprep.subr.mxu0 0.0
    %1762 = vmatpush1.xpose.msra.mxu0 0.0
    %1763 = vmatprep.subr.mxu0 0.0
    %1764 = vmatpush1.xpose.msra.mxu0 0.0
    %1765 = vmatprep.subr.mxu0 0.0
    %1766 = vmatpush1.xpose.msra.mxu0 0.0
    %1767 = vmatprep.subr.mxu0 0.0
    %1768 = vmatpush1.xpose.msra.mxu0 0.0
    %1769 = vmatprep.subr.mxu0 0.0
    %1770 = vmatpush1.xpose.msra.mxu0 0.0
    %1771 = vmatprep.subr.mxu0 0.0
    %1772 = vmatpush1.xpose.msra.mxu0 0.0
    %1773 = vmatprep.subr.mxu0 0.0
    %1774 = vmatpush1.xpose.msra.mxu0 0.0
    %1775 = vmatprep.subr.mxu0 0.0
    %1776 = vmatpush1.xpose.msra.mxu0 0.0
    %1777 = vmatprep.subr.mxu0 0.0
    %1778 = vmatpush1.xpose.msra.mxu0 0.0
    %1779 = vmatprep.subr.mxu0 0.0
    %1780 = vmatpush1.xpose.msra.mxu0 0.0
    %1781 = vmatprep.subr.mxu0 0.0
    %1782 = vmatpush1.xpose.msra.mxu0 0.0
    %1783 = vmatprep.subr.mxu0 0.0
    %1784 = vmatpush1.xpose.msra.mxu0 0.0
    %1785 = vmatprep.subr.mxu0 0.0
    %1786 = vmatpush1.xpose.msra.mxu0 0.0
    %1787 = vmatprep.subr.mxu0 0.0
    %1788 = vmatpush1.xpose.msra.mxu0 0.0
    %1789 = vmatprep.subr.mxu0 0.0
    %1790 = vmatpush1.xpose.msra.mxu0 0.0
    %1791 = vmatprep.subr.mxu0 0.0
    %1792 = vmatpush1.xpose.msra.mxu0 0.0
    %1793 = vmatprep.subr.mxu0 0.0
    %1794 = vmatpush1.xpose.msra.mxu0 0.0
    %1795 = vmatprep.subr.mxu0 0.0
    %1796 = vmatpush1.xpose.msra.mxu0 0.0
    %1797 = vmatprep.subr.mxu0 0.0
    %1798 = vmatpush1.xpose.msra.mxu0 0.0
    %1799 = vmatprep.subr.mxu0 0.0
    %1800 = vmatpush1.xpose.msra.mxu0 0.0
    %1801 = vmatprep.subr.mxu0 0.0
    %1802 = vmatpush1.xpose.msra.mxu0 0.0
    %1803 = vmatprep.subr.mxu0 0.0
    %1804 = vmatpush1.xpose.msra.mxu0 0.0
    %1805 = vmatprep.subr.mxu0 0.0
    %1806 = vmatpush1.xpose.msra.mxu0 0.0
    %1807 = vmatprep.mubr.f32.mxu0 0.0
    %1808 = vmatmul.mubr.f32.gmra.mrb[0].mxu0 %v1739
    %v1809 = vpop.f32.mrb[0].mxu0
    %v1810 = vadd.f32 %v1733, %v1809
    %v1811 = vpop.f32.mrb[0].mxu0
    %1812 = vdwg.mxu0
    %1813 = vrot.lane.b32.xlu0 %v345, 80
    %v1814 = vpop.permute.xlu0 %1813
    %1815 = vrot.lane.b32.xlu0 %v431, 80
    %v1816 = vpop.permute.xlu0 %1815
    %v1817 = vsel %vm124, %v1814, 0
    %v1819 = vsel %vm124, %v1816, 0
    %1821 = vmatprep.subr.mxu0 0.0
    %1822 = vmatpush1.xpose.msra.mxu0 %v1819
    %1823 = vmatprep.subr.mxu0 0.0
    %1824 = vmatpush1.xpose.msra.mxu0 0.0
    %1825 = vmatprep.subr.mxu0 0.0
    %1826 = vmatpush1.xpose.msra.mxu0 0.0
    %1827 = vmatprep.subr.mxu0 0.0
    %1828 = vmatpush1.xpose.msra.mxu0 0.0
    %1829 = vmatprep.subr.mxu0 0.0
    %1830 = vmatpush1.xpose.msra.mxu0 0.0
    %1831 = vmatprep.subr.mxu0 0.0
    %1832 = vmatpush1.xpose.msra.mxu0 0.0
    %1833 = vmatprep.subr.mxu0 0.0
    %1834 = vmatpush1.xpose.msra.mxu0 0.0
    %1835 = vmatprep.subr.mxu0 0.0
    %1836 = vmatpush1.xpose.msra.mxu0 0.0
    %1837 = vmatprep.subr.mxu0 0.0
    %1838 = vmatpush1.xpose.msra.mxu0 0.0
    %1839 = vmatprep.subr.mxu0 0.0
    %1840 = vmatpush1.xpose.msra.mxu0 0.0
    %1841 = vmatprep.subr.mxu0 0.0
    %1842 = vmatpush1.xpose.msra.mxu0 0.0
    %1843 = vmatprep.subr.mxu0 0.0
    %1844 = vmatpush1.xpose.msra.mxu0 0.0
    %1845 = vmatprep.subr.mxu0 0.0
    %1846 = vmatpush1.xpose.msra.mxu0 0.0
    %1847 = vmatprep.subr.mxu0 0.0
    %1848 = vmatpush1.xpose.msra.mxu0 0.0
    %1849 = vmatprep.subr.mxu0 0.0
    %1850 = vmatpush1.xpose.msra.mxu0 0.0
    %1851 = vmatprep.subr.mxu0 0.0
    %1852 = vmatpush1.xpose.msra.mxu0 0.0
    %1853 = vmatprep.subr.mxu0 0.0
    %1854 = vmatpush1.xpose.msra.mxu0 0.0
    %1855 = vmatprep.subr.mxu0 0.0
    %1856 = vmatpush1.xpose.msra.mxu0 0.0
    %1857 = vmatprep.subr.mxu0 0.0
    %1858 = vmatpush1.xpose.msra.mxu0 0.0
    %1859 = vmatprep.subr.mxu0 0.0
    %1860 = vmatpush1.xpose.msra.mxu0 0.0
    %1861 = vmatprep.subr.mxu0 0.0
    %1862 = vmatpush1.xpose.msra.mxu0 0.0
    %1863 = vmatprep.subr.mxu0 0.0
    %1864 = vmatpush1.xpose.msra.mxu0 0.0
    %1865 = vmatprep.subr.mxu0 0.0
    %1866 = vmatpush1.xpose.msra.mxu0 0.0
    %1867 = vmatprep.subr.mxu0 0.0
    %1868 = vmatpush1.xpose.msra.mxu0 0.0
    %1869 = vmatprep.subr.mxu0 0.0
    %1870 = vmatpush1.xpose.msra.mxu0 0.0
    %1871 = vmatprep.subr.mxu0 0.0
    %1872 = vmatpush1.xpose.msra.mxu0 0.0
    %1873 = vmatprep.subr.mxu0 0.0
    %1874 = vmatpush1.xpose.msra.mxu0 0.0
    %1875 = vmatprep.subr.mxu0 0.0
    %1876 = vmatpush1.xpose.msra.mxu0 0.0
    %1877 = vmatprep.subr.mxu0 0.0
    %1878 = vmatpush1.xpose.msra.mxu0 0.0
    %1879 = vmatprep.subr.mxu0 0.0
    %1880 = vmatpush1.xpose.msra.mxu0 0.0
    %1881 = vmatprep.subr.mxu0 0.0
    %1882 = vmatpush1.xpose.msra.mxu0 0.0
    %1883 = vmatprep.subr.mxu0 0.0
    %1884 = vmatpush1.xpose.msra.mxu0 0.0
    %1885 = vmatprep.mubr.f32.mxu0 0.0
    %1886 = vmatmul.mubr.f32.gmra.mrb[0].mxu0 %v1817
    %v1887 = vpop.f32.mrb[0].mxu0
    %v1888 = vadd.f32 %v1734, %v1887
    %v1889 = vpop.f32.mrb[0].mxu0
    %1890 = vdwg.mxu0
    %v1891 = vmul.f32 %v704, %v1729
    %v1892 = vmul.f32 %v705, %v1732
    %v1893 = vadd.f32 %v1810, %v1891
    %v1894 = vadd.f32 %v1888, %v1892
    %v1895 = vmul.f32 %v1893, 0.25
    %v1896 = vmul.f32 %v1894, 0.25
    %v1897 = vsel %vm712, %v1895, -inf
    %1898 = vmax.xlane.f32.xlu0 %v1897
    %v1899 = vpop.xlane.xlu0 %1898
    %v1900 = vsel %vm712, %v1896, -inf
    %1901 = vmax.xlane.f32.xlu0 %v1900
    %v1902 = vpop.xlane.xlu0 %1901
    %v1903 = vsub.f32 %v1895, %v1899
    %v1904 = vsub.f32 %v1896, %v1902
    %v1905 = vmul.f32 %v1903, 1.442695
    %v1906 = vpow.pop %v1905
    %v1907 = vmul.f32 %v1904, 1.442695
    %v1908 = vpow.pop %v1907
    %v1909 = vsel %vm712, %v1906, 0.0
    %1910 = vadd.xlane.f32.xlu0 %v1909
    %v1911 = vpop.xlane.xlu0 %1910
    %v1912 = vsel %vm712, %v1908, 0.0
    %1913 = vadd.xlane.f32.xlu0 %v1912
    %v1914 = vpop.xlane.xlu0 %1913
    %v1915 = vrcp.pop %v1911
    %v1916 = vrcp.pop %v1914
    %v1917 = vmul.f32 %v1906, %v1915
    %v1918 = vmul.f32 %v1908, %v1916
    %v1919 = vmul.f32 %v1917, %v208
    %v1920 = vmul.f32 %v1918, %v209
    %v1921 = vsel %vm712, %v1919, 0.0
    %1922 = vadd.xlane.f32.xlu0 %v1921
    %v1923 = vpop.xlane.xlu0 %1922
    %v1924 = vsel %vm712, %v1920, 0.0
    %1925 = vadd.xlane.f32.xlu0 %v1924
    %v1926 = vpop.xlane.xlu0 %1925
    %v1927 = vsel %vm712, %v1917, 0.0
    %1928 = vadd.xlane.f32.xlu0 %v1927
    %v1929 = vpop.xlane.xlu0 %1928
    %v1930 = vsel %vm712, %v1918, 0.0
    %1931 = vadd.xlane.f32.xlu0 %v1930
    %v1932 = vpop.xlane.xlu0 %1931
    %v1933 = vmul.f32 %v1923, %v526
    %v1934 = vmul.f32 %v1926, %v526
    %1935 = vrot.lane.b32.xlu0 %v512, 80
    %v1936 = vpop.permute.xlu0 %1935
    %1939 = vrot.lane.b32.xlu0 %v1933, 80
    %v1940 = vpop.permute.xlu0 %1939
    %v1943 = vsel %vm712, %v1917, 0
    %1945 = vmatprep.subr.mxu0 0.0
    %1946 = vmatpush1.msra.mxu0 %v1936
    %1947 = vmatprep.subr.mxu0 0.0
    %1948 = vmatpush1.msra.mxu0 0.0
    %1949 = vmatprep.subr.mxu0 0.0
    %1950 = vmatpush1.msra.mxu0 0.0
    %1951 = vmatprep.subr.mxu0 0.0
    %1952 = vmatpush1.msra.mxu0 0.0
    %1953 = vmatprep.subr.mxu0 0.0
    %1954 = vmatpush1.msra.mxu0 0.0
    %1955 = vmatprep.subr.mxu0 0.0
    %1956 = vmatpush1.msra.mxu0 0.0
    %1957 = vmatprep.subr.mxu0 0.0
    %1958 = vmatpush1.msra.mxu0 0.0
    %1959 = vmatprep.subr.mxu0 0.0
    %1960 = vmatpush1.msra.mxu0 0.0
    %1961 = vmatprep.subr.mxu0 0.0
    %1962 = vmatpush1.msra.mxu0 0.0
    %1963 = vmatprep.subr.mxu0 0.0
    %1964 = vmatpush1.msra.mxu0 0.0
    %1965 = vmatprep.subr.mxu0 0.0
    %1966 = vmatpush1.msra.mxu0 0.0
    %1967 = vmatprep.subr.mxu0 0.0
    %1968 = vmatpush1.msra.mxu0 0.0
    %1969 = vmatprep.subr.mxu0 0.0
    %1970 = vmatpush1.msra.mxu0 0.0
    %1971 = vmatprep.subr.mxu0 0.0
    %1972 = vmatpush1.msra.mxu0 0.0
    %1973 = vmatprep.subr.mxu0 0.0
    %1974 = vmatpush1.msra.mxu0 0.0
    %1975 = vmatprep.subr.mxu0 0.0
    %1976 = vmatpush1.msra.mxu0 0.0
    %1977 = vmatprep.subr.mxu0 0.0
    %1978 = vmatpush1.msra.mxu0 0.0
    %1979 = vmatprep.subr.mxu0 0.0
    %1980 = vmatpush1.msra.mxu0 0.0
    %1981 = vmatprep.subr.mxu0 0.0
    %1982 = vmatpush1.msra.mxu0 0.0
    %1983 = vmatprep.subr.mxu0 0.0
    %1984 = vmatpush1.msra.mxu0 0.0
    %1985 = vmatprep.subr.mxu0 0.0
    %1986 = vmatpush1.msra.mxu0 0.0
    %1987 = vmatprep.subr.mxu0 0.0
    %1988 = vmatpush1.msra.mxu0 0.0
    %1989 = vmatprep.subr.mxu0 0.0
    %1990 = vmatpush1.msra.mxu0 0.0
    %1991 = vmatprep.subr.mxu0 0.0
    %1992 = vmatpush1.msra.mxu0 0.0
    %1993 = vmatprep.subr.mxu0 0.0
    %1994 = vmatpush1.msra.mxu0 0.0
    %1995 = vmatprep.subr.mxu0 0.0
    %1996 = vmatpush1.msra.mxu0 0.0
    %1997 = vmatprep.subr.mxu0 0.0
    %1998 = vmatpush1.msra.mxu0 0.0
    %1999 = vmatprep.subr.mxu0 0.0
    %2000 = vmatpush1.msra.mxu0 0.0
    %2001 = vmatprep.subr.mxu0 0.0
    %2002 = vmatpush1.msra.mxu0 0.0
    %2003 = vmatprep.subr.mxu0 0.0
    %2004 = vmatpush1.msra.mxu0 0.0
    %2005 = vmatprep.subr.mxu0 0.0
    %2006 = vmatpush1.msra.mxu0 0.0
    %2007 = vmatprep.subr.mxu0 0.0
    %2008 = vmatpush1.msra.mxu0 0.0
    %2009 = vmatprep.mubr.f32.mxu0 0.0
    %2010 = vmatmul.mubr.f32.gmra.mrb[0].mxu0 %v1943
    %v2011 = vpop.f32.mrb[0].mxu0
    %v2012 = vadd.f32 %v1940, %v2011
    %v2013 = vpop.f32.mrb[0].mxu0
    %2014 = vdwg.mxu0
    %2015 = vrot.lane.b32.xlu0 %v517, 80
    %v2016 = vpop.permute.xlu0 %2015
    %2019 = vrot.lane.b32.xlu0 %v1934, 80
    %v2020 = vpop.permute.xlu0 %2019
    %v2023 = vsel %vm712, %v1918, 0
    %2025 = vmatprep.subr.mxu0 0.0
    %2026 = vmatpush1.msra.mxu0 %v2016
    %2027 = vmatprep.subr.mxu0 0.0
    %2028 = vmatpush1.msra.mxu0 0.0
    %2029 = vmatprep.subr.mxu0 0.0
    %2030 = vmatpush1.msra.mxu0 0.0
    %2031 = vmatprep.subr.mxu0 0.0
    %2032 = vmatpush1.msra.mxu0 0.0
    %2033 = vmatprep.subr.mxu0 0.0
    %2034 = vmatpush1.msra.mxu0 0.0
    %2035 = vmatprep.subr.mxu0 0.0
    %2036 = vmatpush1.msra.mxu0 0.0
    %2037 = vmatprep.subr.mxu0 0.0
    %2038 = vmatpush1.msra.mxu0 0.0
    %2039 = vmatprep.subr.mxu0 0.0
    %2040 = vmatpush1.msra.mxu0 0.0
    %2041 = vmatprep.subr.mxu0 0.0
    %2042 = vmatpush1.msra.mxu0 0.0
    %2043 = vmatprep.subr.mxu0 0.0
    %2044 = vmatpush1.msra.mxu0 0.0
    %2045 = vmatprep.subr.mxu0 0.0
    %2046 = vmatpush1.msra.mxu0 0.0
    %2047 = vmatprep.subr.mxu0 0.0
    %2048 = vmatpush1.msra.mxu0 0.0
    %2049 = vmatprep.subr.mxu0 0.0
    %2050 = vmatpush1.msra.mxu0 0.0
    %2051 = vmatprep.subr.mxu0 0.0
    %2052 = vmatpush1.msra.mxu0 0.0
    %2053 = vmatprep.subr.mxu0 0.0
    %2054 = vmatpush1.msra.mxu0 0.0
    %2055 = vmatprep.subr.mxu0 0.0
    %2056 = vmatpush1.msra.mxu0 0.0
    %2057 = vmatprep.subr.mxu0 0.0
    %2058 = vmatpush1.msra.mxu0 0.0
    %2059 = vmatprep.subr.mxu0 0.0
    %2060 = vmatpush1.msra.mxu0 0.0
    %2061 = vmatprep.subr.mxu0 0.0
    %2062 = vmatpush1.msra.mxu0 0.0
    %2063 = vmatprep.subr.mxu0 0.0
    %2064 = vmatpush1.msra.mxu0 0.0
    %2065 = vmatprep.subr.mxu0 0.0
    %2066 = vmatpush1.msra.mxu0 0.0
    %2067 = vmatprep.subr.mxu0 0.0
    %2068 = vmatpush1.msra.mxu0 0.0
    %2069 = vmatprep.subr.mxu0 0.0
    %2070 = vmatpush1.msra.mxu0 0.0
    %2071 = vmatprep.subr.mxu0 0.0
    %2072 = vmatpush1.msra.mxu0 0.0
    %2073 = vmatprep.subr.mxu0 0.0
    %2074 = vmatpush1.msra.mxu0 0.0
    %2075 = vmatprep.subr.mxu0 0.0
    %2076 = vmatpush1.msra.mxu0 0.0
    %2077 = vmatprep.subr.mxu0 0.0
    %2078 = vmatpush1.msra.mxu0 0.0
    %2079 = vmatprep.subr.mxu0 0.0
    %2080 = vmatpush1.msra.mxu0 0.0
    %2081 = vmatprep.subr.mxu0 0.0
    %2082 = vmatpush1.msra.mxu0 0.0
    %2083 = vmatprep.subr.mxu0 0.0
    %2084 = vmatpush1.msra.mxu0 0.0
    %2085 = vmatprep.subr.mxu0 0.0
    %2086 = vmatpush1.msra.mxu0 0.0
    %2087 = vmatprep.subr.mxu0 0.0
    %2088 = vmatpush1.msra.mxu0 0.0
    %2089 = vmatprep.mubr.f32.mxu0 0.0
    %2090 = vmatmul.mubr.f32.gmra.mrb[0].mxu0 %v2023
    %v2091 = vpop.f32.mrb[0].mxu0
    %v2092 = vadd.f32 %v2020, %v2091
    %v2093 = vpop.f32.mrb[0].mxu0
    %2094 = vdwg.mxu0
    %v2095 = vsub.f32 %v1929, %v1923
    %v2096 = vsub.f32 %v1932, %v1926
    %v2097 = vmul.f32 %v2095, %v540
    %v2098 = vmul.f32 %v2096, %v540
    %2101 = vrot.lane.b32.xlu0 %v2097, 80
    %v2102 = vpop.permute.xlu0 %2101
    %2103 = vrot.lane.b32.xlu0 %v2098, 80
    %v2104 = vpop.permute.xlu0 %2103
    %v2107 = vadd.f32 %v2012, %v2102
    %v2108 = vadd.f32 %v2092, %v2104
    %2111 = vrot.lane.b32.xlu0 %v1307, 16
    %v2112 = vpop.permute.xlu0 %2111
    %2113 = vrot.lane.b32.xlu0 %v1308, 16
    %v2114 = vpop.permute.xlu0 %2113
    %2119 = vrot.lane.b32.xlu0 %v1707, 32
    %v2120 = vpop.permute.xlu0 %2119
    %2121 = vrot.lane.b32.xlu0 %v1708, 32
    %v2122 = vpop.permute.xlu0 %2121
    %2127 = vrot.lane.b32.xlu0 %v2107, 48
    %v2128 = vpop.permute.xlu0 %2127
    %2129 = vrot.lane.b32.xlu0 %v2108, 48
    %v2130 = vpop.permute.xlu0 %2129
    %v2133 = vsel %vm124, %v901, %v2112
    %v2134 = vsel %vm124, %v902, %v2114
    %v2135 = vsel %vm210, %v2133, %v2120
    %v2136 = vsel %vm210, %v2134, %v2122
    %vm2137 = vcmask 392192
    %v2138 = vsel %vm2137, %v2135, %v2128
    %v2139 = vsel %vm2137, %v2136, %v2130
    %v2140 = vld [vmem:[%s14] sm:$0xff]
    %v2141 = vld [vmem:[%s14 + $0x8] sm:$0xff]
    %v2142 = vld [vmem:[%s14 + $0x10] sm:$0xff]
    %v2143 = vld [vmem:[%s14 + $0x18] sm:$0xff]
    %v2144 = vld [vmem:[%s14 + $0x20] sm:$0xff]
    %v2145 = vld [vmem:[%s14 + $0x28] sm:$0xff]
    %v2146 = vld [vmem:[%s14 + $0x30] sm:$0xff]
    %v2147 = vld [vmem:[%s14 + $0x38] sm:$0xff]
    %v2148 = vld [vmem:[%s15] sm:$0x1]
    %v2150 = vlaneseq
    %v2151 = vshrl.u32 %v2150, 7
    %v2152 = vsub.s32 0, %v2151
    %v2153 = vrot.slane %v2148, %v2152
    %vm2155 = vcmask 523264
    %v2157 = vsel %vm2155, %v2138, 0
    %v2160 = vsel %vm2155, %v2139, 0
    %2162 = vmatprep.subr.mxu0 0.0
    %2163 = vmatpush1.msra.mxu0 %v2140
    %2164 = vmatprep.subr.mxu0 0.0
    %2165 = vmatpush1.msra.mxu0 %v2141
    %2166 = vmatprep.subr.mxu0 0.0
    %2167 = vmatpush1.msra.mxu0 %v2142
    %2168 = vmatprep.subr.mxu0 0.0
    %2169 = vmatpush1.msra.mxu0 %v2143
    %2170 = vmatprep.subr.mxu0 0.0
    %2171 = vmatpush1.msra.mxu0 %v2144
    %2172 = vmatprep.subr.mxu0 0.0
    %2173 = vmatpush1.msra.mxu0 %v2145
    %2174 = vmatprep.subr.mxu0 0.0
    %2175 = vmatpush1.msra.mxu0 %v2146
    %2176 = vmatprep.subr.mxu0 0.0
    %2177 = vmatpush1.msra.mxu0 %v2147
    %2178 = vmatprep.subr.mxu0 0.0
    %2179 = vmatpush1.msra.mxu0 0.0
    %2180 = vmatprep.subr.mxu0 0.0
    %2181 = vmatpush1.msra.mxu0 0.0
    %2182 = vmatprep.subr.mxu0 0.0
    %2183 = vmatpush1.msra.mxu0 0.0
    %2184 = vmatprep.subr.mxu0 0.0
    %2185 = vmatpush1.msra.mxu0 0.0
    %2186 = vmatprep.subr.mxu0 0.0
    %2187 = vmatpush1.msra.mxu0 0.0
    %2188 = vmatprep.subr.mxu0 0.0
    %2189 = vmatpush1.msra.mxu0 0.0
    %2190 = vmatprep.subr.mxu0 0.0
    %2191 = vmatpush1.msra.mxu0 0.0
    %2192 = vmatprep.subr.mxu0 0.0
    %2193 = vmatpush1.msra.mxu0 0.0
    %2194 = vmatprep.subr.mxu0 0.0
    %2195 = vmatpush1.msra.mxu0 0.0
    %2196 = vmatprep.subr.mxu0 0.0
    %2197 = vmatpush1.msra.mxu0 0.0
    %2198 = vmatprep.subr.mxu0 0.0
    %2199 = vmatpush1.msra.mxu0 0.0
    %2200 = vmatprep.subr.mxu0 0.0
    %2201 = vmatpush1.msra.mxu0 0.0
    %2202 = vmatprep.subr.mxu0 0.0
    %2203 = vmatpush1.msra.mxu0 0.0
    %2204 = vmatprep.subr.mxu0 0.0
    %2205 = vmatpush1.msra.mxu0 0.0
    %2206 = vmatprep.subr.mxu0 0.0
    %2207 = vmatpush1.msra.mxu0 0.0
    %2208 = vmatprep.subr.mxu0 0.0
    %2209 = vmatpush1.msra.mxu0 0.0
    %2210 = vmatprep.subr.mxu0 0.0
    %2211 = vmatpush1.msra.mxu0 0.0
    %2212 = vmatprep.subr.mxu0 0.0
    %2213 = vmatpush1.msra.mxu0 0.0
    %2214 = vmatprep.subr.mxu0 0.0
    %2215 = vmatpush1.msra.mxu0 0.0
    %2216 = vmatprep.subr.mxu0 0.0
    %2217 = vmatpush1.msra.mxu0 0.0
    %2218 = vmatprep.subr.mxu0 0.0
    %2219 = vmatpush1.msra.mxu0 0.0
    %2220 = vmatprep.subr.mxu0 0.0
    %2221 = vmatpush1.msra.mxu0 0.0
    %2222 = vmatprep.subr.mxu0 0.0
    %2223 = vmatpush1.msra.mxu0 0.0
    %2224 = vmatprep.subr.mxu0 0.0
    %2225 = vmatpush1.msra.mxu0 0.0
    %2226 = vmatprep.mubr.f32.mxu0 0.0
    %2227 = vmatmul.mubr.f32.gmra.mrb[0].mxu0 %v2157
    %v2228 = vpop.f32.mrb[0].mxu0
    %v2229 = vadd.f32 %v2153, %v2228
    %v2230 = vpop.f32.mrb[0].mxu0
    %2231 = vmatprep.mubr.f32.mxu0 0.0
    %2232 = vmatmul.mubr.f32.gmra.mrb[0].mxu0 %v2160
    %v2233 = vpop.f32.mrb[0].mxu0
    %v2234 = vadd.f32 %v2153, %v2233
    %v2235 = vpop.f32.mrb[0].mxu0
    %2236 = vdwg.mxu0
    %v2237 = vld [vmem:[%s16] sm:$0x1]
    %v2239 = vlaneseq
    %v2240 = vshrl.u32 %v2239, 7
    %v2241 = vsub.s32 0, %v2240
    %v2242 = vrot.slane %v2237, %v2241
    %v2244 = vmul.f32 %v2229, %v2242
    %v2245 = vmul.f32 %v2234, %v2242
    %v2246 = vsel %vm210, %v2244, 0.0
    %2247 = vadd.xlane.f32.xlu0 %v2246
    %v2248 = vpop.xlane.xlu0 %2247
    %v2249 = vsel %vm210, %v2245, 0.0
    %2250 = vadd.xlane.f32.xlu0 %v2249
    %v2251 = vpop.xlane.xlu0 %2250
    %v2252 = vld [vmem:[%s17] sm:$0x1]
    %v2254 = vlaneseq
    %v2255 = vshrl.u32 %v2254, 7
    %v2256 = vsub.s32 0, %v2255
    %v2257 = vrot.slane %v2252, %v2256
    %v2259 = vmul.f32 %v206, %v2257
    %v2260 = vmul.f32 %v207, %v2257
    %v2261 = vsel %vm210, %v2259, 0.0
    %2262 = vadd.xlane.f32.xlu0 %v2261
    %v2263 = vpop.xlane.xlu0 %2262
    %v2264 = vsel %vm210, %v2260, 0.0
    %2265 = vadd.xlane.f32.xlu0 %v2264
    %v2266 = vpop.xlane.xlu0 %2265
    %v2267 = vadd.f32 %v2248, %v2263
    %v2268 = vadd.f32 %v2251, %v2266
    %v2269 = vxor.u32 %v2267, 2147483648
    %v2270 = vxor.u32 %v2268, 2147483648
    %v2271 = vmul.f32 %v2269, 1.442695
    %v2272 = vpow.pop %v2271
    %v2273 = vmul.f32 %v2270, 1.442695
    %v2274 = vpow.pop %v2273
    %v2275 = vadd.f32 %v2272, 1.0
    %v2276 = vadd.f32 %v2274, 1.0
    %v2277 = vrcp.pop %v2275
    %v2278 = vmul.f32 1.0, %v2277
    %v2279 = vrcp.pop %v2276
    %v2280 = vmul.f32 1.0, %v2279
    %v2281 = vmul.f32 %v2229, %v2278
    %v2282 = vmul.f32 %v2234, %v2280
    %v2283 = vsub.f32 1.0, %v2278
    %v2284 = vsub.f32 1.0, %v2280
    %v2285 = vmul.f32 %v206, %v2283
    %v2286 = vmul.f32 %v207, %v2284
    %v2287 = vadd.f32 %v2281, %v2285
    %v2288 = vadd.f32 %v2282, %v2286
    %v2289 = vsel %vm210, %v2287, 0.0
    %2290 = vadd.xlane.f32.xlu0 %v2289
    %v2291 = vpop.xlane.xlu0 %2290
    %v2292 = vsel %vm210, %v2288, 0.0
    %2293 = vadd.xlane.f32.xlu0 %v2292
    %v2294 = vpop.xlane.xlu0 %2293
    %v2295 = vmul.f32 %v2291, %v217
    %v2296 = vmul.f32 %v2294, %v217
    %v2297 = vsub.f32 %v2287, %v2295
    %v2298 = vsub.f32 %v2288, %v2296
    %v2299 = vmul.f32 %v2297, %v2297
    %v2300 = vmul.f32 %v2298, %v2298
    %v2301 = vsel %vm210, %v2299, 0.0
    %2302 = vadd.xlane.f32.xlu0 %v2301
    %v2303 = vpop.xlane.xlu0 %2302
    %v2304 = vsel %vm210, %v2300, 0.0
    %2305 = vadd.xlane.f32.xlu0 %v2304
    %v2306 = vpop.xlane.xlu0 %2305
    %v2307 = vmul.f32 %v2303, %v217
    %v2308 = vmul.f32 %v2306, %v217
    %v2309 = vadd.f32 %v2307, 1e-05
    %v2310 = vadd.f32 %v2308, 1e-05
    %v2311 = vrsqrt.pop %v2309
    %v2312 = vrsqrt.pop %v2310
    %v2313 = vmul.f32 %v2297, %v2311
    %v2314 = vmul.f32 %v2298, %v2312
    %s2315 = scalar_lea.vmem %s4, 1
    %v2316 = vld [vmem:[%s2315] sm:$0x1]
    %v2318 = vlaneseq
    %v2319 = vshrl.u32 %v2318, 7
    %v2320 = vsub.s32 0, %v2319
    %v2321 = vrot.slane %v2316, %v2320
    %v2323 = vmul.f32 %v2313, %v2321
    %v2324 = vmul.f32 %v2314, %v2321
    %s2325 = scalar_lea.vmem %s5, 1
    %v2326 = vld [vmem:[%s2325] sm:$0x1]
    %v2328 = vlaneseq
    %v2329 = vshrl.u32 %v2328, 7
    %v2330 = vsub.s32 0, %v2329
    %v2331 = vrot.slane %v2326, %v2330
    %v2333 = vadd.f32 %v2323, %v2331
    %v2334 = vadd.f32 %v2324, %v2331
    %s2335 = scalar_lea.vmem %s6, 32
    %v2336 = vld [vmem:[%s2335] sm:$0xff]
    %v2337 = vld [vmem:[%s2335 + $0x8] sm:$0xff]
    %v2338 = vld [vmem:[%s2335 + $0x10] sm:$0xff]
    %v2339 = vld [vmem:[%s2335 + $0x18] sm:$0xff]
    %s2340 = scalar_lea.vmem %s7, 1
    %v2341 = vld [vmem:[%s2340] sm:$0x1]
    %v2343 = vlaneseq
    %v2344 = vshrl.u32 %v2343, 7
    %v2345 = vsub.s32 0, %v2344
    %v2346 = vrot.slane %v2341, %v2345
    %v2349 = vsel %vm210, %v2333, 0
    %v2352 = vsel %vm210, %v2334, 0
    %2354 = vmatprep.subr.mxu0 0.0
    %2355 = vmatpush1.msra.mxu0 %v2336
    %2356 = vmatprep.subr.mxu0 0.0
    %2357 = vmatpush1.msra.mxu0 %v2337
    %2358 = vmatprep.subr.mxu0 0.0
    %2359 = vmatpush1.msra.mxu0 %v2338
    %2360 = vmatprep.subr.mxu0 0.0
    %2361 = vmatpush1.msra.mxu0 %v2339
    %2362 = vmatprep.subr.mxu0 0.0
    %2363 = vmatpush1.msra.mxu0 0.0
    %2364 = vmatprep.subr.mxu0 0.0
    %2365 = vmatpush1.msra.mxu0 0.0
    %2366 = vmatprep.subr.mxu0 0.0
    %2367 = vmatpush1.msra.mxu0 0.0
    %2368 = vmatprep.subr.mxu0 0.0
    %2369 = vmatpush1.msra.mxu0 0.0
    %2370 = vmatprep.subr.mxu0 0.0
    %2371 = vmatpush1.msra.mxu0 0.0
    %2372 = vmatprep.subr.mxu0 0.0
    %2373 = vmatpush1.msra.mxu0 0.0
    %2374 = vmatprep.subr.mxu0 0.0
    %2375 = vmatpush1.msra.mxu0 0.0
    %2376 = vmatprep.subr.mxu0 0.0
    %2377 = vmatpush1.msra.mxu0 0.0
    %2378 = vmatprep.subr.mxu0 0.0
    %2379 = vmatpush1.msra.mxu0 0.0
    %2380 = vmatprep.subr.mxu0 0.0
    %2381 = vmatpush1.msra.mxu0 0.0
    %2382 = vmatprep.subr.mxu0 0.0
    %2383 = vmatpush1.msra.mxu0 0.0
    %2384 = vmatprep.subr.mxu0 0.0
    %2385 = vmatpush1.msra.mxu0 0.0
    %2386 = vmatprep.subr.mxu0 0.0
    %2387 = vmatpush1.msra.mxu0 0.0
    %2388 = vmatprep.subr.mxu0 0.0
    %2389 = vmatpush1.msra.mxu0 0.0
    %2390 = vmatprep.subr.mxu0 0.0
    %2391 = vmatpush1.msra.mxu0 0.0
    %2392 = vmatprep.subr.mxu0 0.0
    %2393 = vmatpush1.msra.mxu0 0.0
    %2394 = vmatprep.subr.mxu0 0.0
    %2395 = vmatpush1.msra.mxu0 0.0
    %2396 = vmatprep.subr.mxu0 0.0
    %2397 = vmatpush1.msra.mxu0 0.0
    %2398 = vmatprep.subr.mxu0 0.0
    %2399 = vmatpush1.msra.mxu0 0.0
    %2400 = vmatprep.subr.mxu0 0.0
    %2401 = vmatpush1.msra.mxu0 0.0
    %2402 = vmatprep.subr.mxu0 0.0
    %2403 = vmatpush1.msra.mxu0 0.0
    %2404 = vmatprep.subr.mxu0 0.0
    %2405 = vmatpush1.msra.mxu0 0.0
    %2406 = vmatprep.subr.mxu0 0.0
    %2407 = vmatpush1.msra.mxu0 0.0
    %2408 = vmatprep.subr.mxu0 0.0
    %2409 = vmatpush1.msra.mxu0 0.0
    %2410 = vmatprep.subr.mxu0 0.0
    %2411 = vmatpush1.msra.mxu0 0.0
    %2412 = vmatprep.subr.mxu0 0.0
    %2413 = vmatpush1.msra.mxu0 0.0
    %2414 = vmatprep.subr.mxu0 0.0
    %2415 = vmatpush1.msra.mxu0 0.0
    %2416 = vmatprep.subr.mxu0 0.0
    %2417 = vmatpush1.msra.mxu0 0.0
    %2418 = vmatprep.mubr.f32.mxu0 0.0
    %2419 = vmatmul.mubr.f32.gmra.mrb[0].mxu0 %v2349
    %v2420 = vpop.f32.mrb[0].mxu0
    %v2421 = vadd.f32 %v2346, %v2420
    %v2422 = vpop.f32.mrb[0].mxu0
    %2423 = vmatprep.mubr.f32.mxu0 0.0
    %2424 = vmatmul.mubr.f32.gmra.mrb[0].mxu0 %v2352
    %v2425 = vpop.f32.mrb[0].mxu0
    %v2426 = vadd.f32 %v2346, %v2425
    %v2427 = vpop.f32.mrb[0].mxu0
    %2428 = vdwg.mxu0
    %s2429 = scalar_lea.vmem %s8, 32
    %v2430 = vld [vmem:[%s2429] sm:$0xff]
    %v2431 = vld [vmem:[%s2429 + $0x8] sm:$0xff]
    %v2432 = vld [vmem:[%s2429 + $0x10] sm:$0xff]
    %v2433 = vld [vmem:[%s2429 + $0x18] sm:$0xff]
    %s2434 = scalar_lea.vmem %s9, 1
    %v2435 = vld [vmem:[%s2434] sm:$0x1]
    %v2437 = vlaneseq
    %v2438 = vshrl.u32 %v2437, 7
    %v2439 = vsub.s32 0, %v2438
    %v2440 = vrot.slane %v2435, %v2439
    %2442 = vmatprep.subr.mxu0 0.0
    %2443 = vmatpush1.msra.mxu0 %v2430
    %2444 = vmatprep.subr.mxu0 0.0
    %2445 = vmatpush1.msra.mxu0 %v2431
    %2446 = vmatprep.subr.mxu0 0.0
    %2447 = vmatpush1.msra.mxu0 %v2432
    %2448 = vmatprep.subr.mxu0 0.0
    %2449 = vmatpush1.msra.mxu0 %v2433
    %2450 = vmatprep.subr.mxu0 0.0
    %2451 = vmatpush1.msra.mxu0 0.0
    %2452 = vmatprep.subr.mxu0 0.0
    %2453 = vmatpush1.msra.mxu0 0.0
    %2454 = vmatprep.subr.mxu0 0.0
    %2455 = vmatpush1.msra.mxu0 0.0
    %2456 = vmatprep.subr.mxu0 0.0
    %2457 = vmatpush1.msra.mxu0 0.0
    %2458 = vmatprep.subr.mxu0 0.0
    %2459 = vmatpush1.msra.mxu0 0.0
    %2460 = vmatprep.subr.mxu0 0.0
    %2461 = vmatpush1.msra.mxu0 0.0
    %2462 = vmatprep.subr.mxu0 0.0
    %2463 = vmatpush1.msra.mxu0 0.0
    %2464 = vmatprep.subr.mxu0 0.0
    %2465 = vmatpush1.msra.mxu0 0.0
    %2466 = vmatprep.subr.mxu0 0.0
    %2467 = vmatpush1.msra.mxu0 0.0
    %2468 = vmatprep.subr.mxu0 0.0
    %2469 = vmatpush1.msra.mxu0 0.0
    %2470 = vmatprep.subr.mxu0 0.0
    %2471 = vmatpush1.msra.mxu0 0.0
    %2472 = vmatprep.subr.mxu0 0.0
    %2473 = vmatpush1.msra.mxu0 0.0
    %2474 = vmatprep.subr.mxu0 0.0
    %2475 = vmatpush1.msra.mxu0 0.0
    %2476 = vmatprep.subr.mxu0 0.0
    %2477 = vmatpush1.msra.mxu0 0.0
    %2478 = vmatprep.subr.mxu0 0.0
    %2479 = vmatpush1.msra.mxu0 0.0
    %2480 = vmatprep.subr.mxu0 0.0
    %2481 = vmatpush1.msra.mxu0 0.0
    %2482 = vmatprep.subr.mxu0 0.0
    %2483 = vmatpush1.msra.mxu0 0.0
    %2484 = vmatprep.subr.mxu0 0.0
    %2485 = vmatpush1.msra.mxu0 0.0
    %2486 = vmatprep.subr.mxu0 0.0
    %2487 = vmatpush1.msra.mxu0 0.0
    %2488 = vmatprep.subr.mxu0 0.0
    %2489 = vmatpush1.msra.mxu0 0.0
    %2490 = vmatprep.subr.mxu0 0.0
    %2491 = vmatpush1.msra.mxu0 0.0
    %2492 = vmatprep.subr.mxu0 0.0
    %2493 = vmatpush1.msra.mxu0 0.0
    %2494 = vmatprep.subr.mxu0 0.0
    %2495 = vmatpush1.msra.mxu0 0.0
    %2496 = vmatprep.subr.mxu0 0.0
    %2497 = vmatpush1.msra.mxu0 0.0
    %2498 = vmatprep.subr.mxu0 0.0
    %2499 = vmatpush1.msra.mxu0 0.0
    %2500 = vmatprep.subr.mxu0 0.0
    %2501 = vmatpush1.msra.mxu0 0.0
    %2502 = vmatprep.subr.mxu0 0.0
    %2503 = vmatpush1.msra.mxu0 0.0
    %2504 = vmatprep.subr.mxu0 0.0
    %2505 = vmatpush1.msra.mxu0 0.0
    %2506 = vmatprep.mubr.f32.mxu0 0.0
    %2507 = vmatmul.mubr.f32.gmra.mrb[0].mxu0 %v2349
    %v2508 = vpop.f32.mrb[0].mxu0
    %v2509 = vadd.f32 %v2440, %v2508
    %v2510 = vpop.f32.mrb[0].mxu0
    %2511 = vmatprep.mubr.f32.mxu0 0.0
    %2512 = vmatmul.mubr.f32.gmra.mrb[0].mxu0 %v2352
    %v2513 = vpop.f32.mrb[0].mxu0
    %v2514 = vadd.f32 %v2440, %v2513
    %v2515 = vpop.f32.mrb[0].mxu0
    %2516 = vdwg.mxu0
    %s2517 = scalar_lea.vmem %s10, 32
    %v2518 = vld [vmem:[%s2517] sm:$0xff]
    %v2519 = vld [vmem:[%s2517 + $0x8] sm:$0xff]
    %v2520 = vld [vmem:[%s2517 + $0x10] sm:$0xff]
    %v2521 = vld [vmem:[%s2517 + $0x18] sm:$0xff]
    %s2522 = scalar_lea.vmem %s11, 1
    %v2523 = vld [vmem:[%s2522] sm:$0x1]
    %v2525 = vlaneseq
    %v2526 = vshrl.u32 %v2525, 7
    %v2527 = vsub.s32 0, %v2526
    %v2528 = vrot.slane %v2523, %v2527
    %2530 = vmatprep.subr.mxu0 0.0
    %2531 = vmatpush1.msra.mxu0 %v2518
    %2532 = vmatprep.subr.mxu0 0.0
    %2533 = vmatpush1.msra.mxu0 %v2519
    %2534 = vmatprep.subr.mxu0 0.0
    %2535 = vmatpush1.msra.mxu0 %v2520
    %2536 = vmatprep.subr.mxu0 0.0
    %2537 = vmatpush1.msra.mxu0 %v2521
    %2538 = vmatprep.subr.mxu0 0.0
    %2539 = vmatpush1.msra.mxu0 0.0
    %2540 = vmatprep.subr.mxu0 0.0
    %2541 = vmatpush1.msra.mxu0 0.0
    %2542 = vmatprep.subr.mxu0 0.0
    %2543 = vmatpush1.msra.mxu0 0.0
    %2544 = vmatprep.subr.mxu0 0.0
    %2545 = vmatpush1.msra.mxu0 0.0
    %2546 = vmatprep.subr.mxu0 0.0
    %2547 = vmatpush1.msra.mxu0 0.0
    %2548 = vmatprep.subr.mxu0 0.0
    %2549 = vmatpush1.msra.mxu0 0.0
    %2550 = vmatprep.subr.mxu0 0.0
    %2551 = vmatpush1.msra.mxu0 0.0
    %2552 = vmatprep.subr.mxu0 0.0
    %2553 = vmatpush1.msra.mxu0 0.0
    %2554 = vmatprep.subr.mxu0 0.0
    %2555 = vmatpush1.msra.mxu0 0.0
    %2556 = vmatprep.subr.mxu0 0.0
    %2557 = vmatpush1.msra.mxu0 0.0
    %2558 = vmatprep.subr.mxu0 0.0
    %2559 = vmatpush1.msra.mxu0 0.0
    %2560 = vmatprep.subr.mxu0 0.0
    %2561 = vmatpush1.msra.mxu0 0.0
    %2562 = vmatprep.subr.mxu0 0.0
    %2563 = vmatpush1.msra.mxu0 0.0
    %2564 = vmatprep.subr.mxu0 0.0
    %2565 = vmatpush1.msra.mxu0 0.0
    %2566 = vmatprep.subr.mxu0 0.0
    %2567 = vmatpush1.msra.mxu0 0.0
    %2568 = vmatprep.subr.mxu0 0.0
    %2569 = vmatpush1.msra.mxu0 0.0
    %2570 = vmatprep.subr.mxu0 0.0
    %2571 = vmatpush1.msra.mxu0 0.0
    %2572 = vmatprep.subr.mxu0 0.0
    %2573 = vmatpush1.msra.mxu0 0.0
    %2574 = vmatprep.subr.mxu0 0.0
    %2575 = vmatpush1.msra.mxu0 0.0
    %2576 = vmatprep.subr.mxu0 0.0
    %2577 = vmatpush1.msra.mxu0 0.0
    %2578 = vmatprep.subr.mxu0 0.0
    %2579 = vmatpush1.msra.mxu0 0.0
    %2580 = vmatprep.subr.mxu0 0.0
    %2581 = vmatpush1.msra.mxu0 0.0
    %2582 = vmatprep.subr.mxu0 0.0
    %2583 = vmatpush1.msra.mxu0 0.0
    %2584 = vmatprep.subr.mxu0 0.0
    %2585 = vmatpush1.msra.mxu0 0.0
    %2586 = vmatprep.subr.mxu0 0.0
    %2587 = vmatpush1.msra.mxu0 0.0
    %2588 = vmatprep.subr.mxu0 0.0
    %2589 = vmatpush1.msra.mxu0 0.0
    %2590 = vmatprep.subr.mxu0 0.0
    %2591 = vmatpush1.msra.mxu0 0.0
    %2592 = vmatprep.subr.mxu0 0.0
    %2593 = vmatpush1.msra.mxu0 0.0
    %2594 = vmatprep.mubr.f32.mxu0 0.0
    %2595 = vmatmul.mubr.f32.gmra.mrb[0].mxu0 %v2349
    %v2596 = vpop.f32.mrb[0].mxu0
    %v2597 = vadd.f32 %v2528, %v2596
    %v2598 = vpop.f32.mrb[0].mxu0
    %2599 = vmatprep.mubr.f32.mxu0 0.0
    %2600 = vmatmul.mubr.f32.gmra.mrb[0].mxu0 %v2352
    %v2601 = vpop.f32.mrb[0].mxu0
    %v2602 = vadd.f32 %v2528, %v2601
    %v2603 = vpop.f32.mrb[0].mxu0
    %2604 = vdwg.mxu0
    %s2605 = scalar_lea.vmem %s12, 1
    %v2606 = vld [vmem:[%s2605] sm:$0x1]
    %s2607 = scalar_lea.vmem %s13, 1
    %v2608 = vld [vmem:[%s2607] sm:$0x1]
    %v2610 = vlaneseq
    %v2611 = vshrl.u32 %v2610, 7
    %v2612 = vsub.s32 0, %v2611
    %v2613 = vrot.slane %v2608, %v2612
    %v2615 = vmul.f32 %v2421, %v2613
    %v2616 = vmul.f32 %v2426, %v2613
    %v2617 = vsel %vm124, %v2615, 0.0
    %2618 = vadd.xlane.f32.xlu0 %v2617
    %v2619 = vpop.xlane.xlu0 %2618
    %v2620 = vsel %vm124, %v2616, 0.0
    %2621 = vadd.xlane.f32.xlu0 %v2620
    %v2622 = vpop.xlane.xlu0 %2621
    %v2624 = vlaneseq
    %v2625 = vshrl.u32 %v2624, 7
    %v2626 = vsub.s32 0, %v2625
    %v2627 = vrot.slane %v2606, %v2626
    %v2629 = vmul.f32 %v2421, %v2627
    %v2630 = vmul.f32 %v2426, %v2627
    %v2631 = vsel %vm124, %v2629, 0.0
    %2632 = vadd.xlane.f32.xlu0 %v2631
    %v2633 = vpop.xlane.xlu0 %2632
    %v2634 = vsel %vm124, %v2630, 0.0
    %2635 = vadd.xlane.f32.xlu0 %v2634
    %v2636 = vpop.xlane.xlu0 %2635
    %v2637 = vmul.f32 %v208, %v2619
    %v2638 = vmul.f32 %v209, %v2622
    %v2640 = vsel %vm124, %v2421, 0
    %v2643 = vsel %vm124, %v2509, 0
    %2645 = vmatprep.subr.mxu0 0.0
    %2646 = vmatpush1.xpose.msra.mxu0 %v2643
    %2647 = vmatprep.subr.mxu0 0.0
    %2648 = vmatpush1.xpose.msra.mxu0 0.0
    %2649 = vmatprep.subr.mxu0 0.0
    %2650 = vmatpush1.xpose.msra.mxu0 0.0
    %2651 = vmatprep.subr.mxu0 0.0
    %2652 = vmatpush1.xpose.msra.mxu0 0.0
    %2653 = vmatprep.subr.mxu0 0.0
    %2654 = vmatpush1.xpose.msra.mxu0 0.0
    %2655 = vmatprep.subr.mxu0 0.0
    %2656 = vmatpush1.xpose.msra.mxu0 0.0
    %2657 = vmatprep.subr.mxu0 0.0
    %2658 = vmatpush1.xpose.msra.mxu0 0.0
    %2659 = vmatprep.subr.mxu0 0.0
    %2660 = vmatpush1.xpose.msra.mxu0 0.0
    %2661 = vmatprep.subr.mxu0 0.0
    %2662 = vmatpush1.xpose.msra.mxu0 0.0
    %2663 = vmatprep.subr.mxu0 0.0
    %2664 = vmatpush1.xpose.msra.mxu0 0.0
    %2665 = vmatprep.subr.mxu0 0.0
    %2666 = vmatpush1.xpose.msra.mxu0 0.0
    %2667 = vmatprep.subr.mxu0 0.0
    %2668 = vmatpush1.xpose.msra.mxu0 0.0
    %2669 = vmatprep.subr.mxu0 0.0
    %2670 = vmatpush1.xpose.msra.mxu0 0.0
    %2671 = vmatprep.subr.mxu0 0.0
    %2672 = vmatpush1.xpose.msra.mxu0 0.0
    %2673 = vmatprep.subr.mxu0 0.0
    %2674 = vmatpush1.xpose.msra.mxu0 0.0
    %2675 = vmatprep.subr.mxu0 0.0
    %2676 = vmatpush1.xpose.msra.mxu0 0.0
    %2677 = vmatprep.subr.mxu0 0.0
    %2678 = vmatpush1.xpose.msra.mxu0 0.0
    %2679 = vmatprep.subr.mxu0 0.0
    %2680 = vmatpush1.xpose.msra.mxu0 0.0
    %2681 = vmatprep.subr.mxu0 0.0
    %2682 = vmatpush1.xpose.msra.mxu0 0.0
    %2683 = vmatprep.subr.mxu0 0.0
    %2684 = vmatpush1.xpose.msra.mxu0 0.0
    %2685 = vmatprep.subr.mxu0 0.0
    %2686 = vmatpush1.xpose.msra.mxu0 0.0
    %2687 = vmatprep.subr.mxu0 0.0
    %2688 = vmatpush1.xpose.msra.mxu0 0.0
    %2689 = vmatprep.subr.mxu0 0.0
    %2690 = vmatpush1.xpose.msra.mxu0 0.0
    %2691 = vmatprep.subr.mxu0 0.0
    %2692 = vmatpush1.xpose.msra.mxu0 0.0
    %2693 = vmatprep.subr.mxu0 0.0
    %2694 = vmatpush1.xpose.msra.mxu0 0.0
    %2695 = vmatprep.subr.mxu0 0.0
    %2696 = vmatpush1.xpose.msra.mxu0 0.0
    %2697 = vmatprep.subr.mxu0 0.0
    %2698 = vmatpush1.xpose.msra.mxu0 0.0
    %2699 = vmatprep.subr.mxu0 0.0
    %2700 = vmatpush1.xpose.msra.mxu0 0.0
    %2701 = vmatprep.subr.mxu0 0.0
    %2702 = vmatpush1.xpose.msra.mxu0 0.0
    %2703 = vmatprep.subr.mxu0 0.0
    %2704 = vmatpush1.xpose.msra.mxu0 0.0
    %2705 = vmatprep.subr.mxu0 0.0
    %2706 = vmatpush1.xpose.msra.mxu0 0.0
    %2707 = vmatprep.subr.mxu0 0.0
    %2708 = vmatpush1.xpose.msra.mxu0 0.0
    %2709 = vmatprep.mubr.f32.mxu0 0.0
    %2710 = vmatmul.mubr.f32.gmra.mrb[0].mxu0 %v2640
    %v2711 = vpop.f32.mrb[0].mxu0
    %v2712 = vadd.f32 %v2637, %v2711
    %v2713 = vpop.f32.mrb[0].mxu0
    %2714 = vdwg.mxu0
    %v2716 = vsel %vm124, %v2426, 0
    %v2719 = vsel %vm124, %v2514, 0
    %2721 = vmatprep.subr.mxu0 0.0
    %2722 = vmatpush1.xpose.msra.mxu0 %v2719
    %2723 = vmatprep.subr.mxu0 0.0
    %2724 = vmatpush1.xpose.msra.mxu0 0.0
    %2725 = vmatprep.subr.mxu0 0.0
    %2726 = vmatpush1.xpose.msra.mxu0 0.0
    %2727 = vmatprep.subr.mxu0 0.0
    %2728 = vmatpush1.xpose.msra.mxu0 0.0
    %2729 = vmatprep.subr.mxu0 0.0
    %2730 = vmatpush1.xpose.msra.mxu0 0.0
    %2731 = vmatprep.subr.mxu0 0.0
    %2732 = vmatpush1.xpose.msra.mxu0 0.0
    %2733 = vmatprep.subr.mxu0 0.0
    %2734 = vmatpush1.xpose.msra.mxu0 0.0
    %2735 = vmatprep.subr.mxu0 0.0
    %2736 = vmatpush1.xpose.msra.mxu0 0.0
    %2737 = vmatprep.subr.mxu0 0.0
    %2738 = vmatpush1.xpose.msra.mxu0 0.0
    %2739 = vmatprep.subr.mxu0 0.0
    %2740 = vmatpush1.xpose.msra.mxu0 0.0
    %2741 = vmatprep.subr.mxu0 0.0
    %2742 = vmatpush1.xpose.msra.mxu0 0.0
    %2743 = vmatprep.subr.mxu0 0.0
    %2744 = vmatpush1.xpose.msra.mxu0 0.0
    %2745 = vmatprep.subr.mxu0 0.0
    %2746 = vmatpush1.xpose.msra.mxu0 0.0
    %2747 = vmatprep.subr.mxu0 0.0
    %2748 = vmatpush1.xpose.msra.mxu0 0.0
    %2749 = vmatprep.subr.mxu0 0.0
    %2750 = vmatpush1.xpose.msra.mxu0 0.0
    %2751 = vmatprep.subr.mxu0 0.0
    %2752 = vmatpush1.xpose.msra.mxu0 0.0
    %2753 = vmatprep.subr.mxu0 0.0
    %2754 = vmatpush1.xpose.msra.mxu0 0.0
    %2755 = vmatprep.subr.mxu0 0.0
    %2756 = vmatpush1.xpose.msra.mxu0 0.0
    %2757 = vmatprep.subr.mxu0 0.0
    %2758 = vmatpush1.xpose.msra.mxu0 0.0
    %2759 = vmatprep.subr.mxu0 0.0
    %2760 = vmatpush1.xpose.msra.mxu0 0.0
    %2761 = vmatprep.subr.mxu0 0.0
    %2762 = vmatpush1.xpose.msra.mxu0 0.0
    %2763 = vmatprep.subr.mxu0 0.0
    %2764 = vmatpush1.xpose.msra.mxu0 0.0
    %2765 = vmatprep.subr.mxu0 0.0
    %2766 = vmatpush1.xpose.msra.mxu0 0.0
    %2767 = vmatprep.subr.mxu0 0.0
    %2768 = vmatpush1.xpose.msra.mxu0 0.0
    %2769 = vmatprep.subr.mxu0 0.0
    %2770 = vmatpush1.xpose.msra.mxu0 0.0
    %2771 = vmatprep.subr.mxu0 0.0
    %2772 = vmatpush1.xpose.msra.mxu0 0.0
    %2773 = vmatprep.subr.mxu0 0.0
    %2774 = vmatpush1.xpose.msra.mxu0 0.0
    %2775 = vmatprep.subr.mxu0 0.0
    %2776 = vmatpush1.xpose.msra.mxu0 0.0
    %2777 = vmatprep.subr.mxu0 0.0
    %2778 = vmatpush1.xpose.msra.mxu0 0.0
    %2779 = vmatprep.subr.mxu0 0.0
    %2780 = vmatpush1.xpose.msra.mxu0 0.0
    %2781 = vmatprep.subr.mxu0 0.0
    %2782 = vmatpush1.xpose.msra.mxu0 0.0
    %2783 = vmatprep.subr.mxu0 0.0
    %2784 = vmatpush1.xpose.msra.mxu0 0.0
    %2785 = vmatprep.mubr.f32.mxu0 0.0
    %2786 = vmatmul.mubr.f32.gmra.mrb[0].mxu0 %v2716
    %v2787 = vpop.f32.mrb[0].mxu0
    %v2788 = vadd.f32 %v2638, %v2787
    %v2789 = vpop.f32.mrb[0].mxu0
    %2790 = vdwg.mxu0
    %v2791 = vmul.f32 %v704, %v2633
    %v2792 = vmul.f32 %v705, %v2636
    %v2793 = vadd.f32 %v2712, %v2791
    %v2794 = vadd.f32 %v2788, %v2792
    %v2795 = vmul.f32 %v2793, 0.25
    %v2796 = vmul.f32 %v2794, 0.25
    %v2797 = vsel %vm712, %v2795, -inf
    %2798 = vmax.xlane.f32.xlu0 %v2797
    %v2799 = vpop.xlane.xlu0 %2798
    %v2800 = vsel %vm712, %v2796, -inf
    %2801 = vmax.xlane.f32.xlu0 %v2800
    %v2802 = vpop.xlane.xlu0 %2801
    %v2803 = vsub.f32 %v2795, %v2799
    %v2804 = vsub.f32 %v2796, %v2802
    %v2805 = vmul.f32 %v2803, 1.442695
    %v2806 = vpow.pop %v2805
    %v2807 = vmul.f32 %v2804, 1.442695
    %v2808 = vpow.pop %v2807
    %v2809 = vsel %vm712, %v2806, 0.0
    %2810 = vadd.xlane.f32.xlu0 %v2809
    %v2811 = vpop.xlane.xlu0 %2810
    %v2812 = vsel %vm712, %v2808, 0.0
    %2813 = vadd.xlane.f32.xlu0 %v2812
    %v2814 = vpop.xlane.xlu0 %2813
    %v2815 = vrcp.pop %v2811
    %v2816 = vrcp.pop %v2814
    %v2817 = vmul.f32 %v2806, %v2815
    %v2818 = vmul.f32 %v2808, %v2816
    %v2819 = vmul.f32 %v2817, %v208
    %v2820 = vmul.f32 %v2818, %v209
    %v2821 = vsel %vm712, %v2819, 0.0
    %2822 = vadd.xlane.f32.xlu0 %v2821
    %v2823 = vpop.xlane.xlu0 %2822
    %v2824 = vsel %vm712, %v2820, 0.0
    %2825 = vadd.xlane.f32.xlu0 %v2824
    %v2826 = vpop.xlane.xlu0 %2825
    %v2827 = vsel %vm712, %v2817, 0.0
    %2828 = vadd.xlane.f32.xlu0 %v2827
    %v2829 = vpop.xlane.xlu0 %2828
    %v2830 = vsel %vm712, %v2818, 0.0
    %2831 = vadd.xlane.f32.xlu0 %v2830
    %v2832 = vpop.xlane.xlu0 %2831
    %v2833 = vmul.f32 %v2823, %v2613
    %v2834 = vmul.f32 %v2826, %v2613
    %v2836 = vsel %vm712, %v2817, 0
    %2838 = vmatprep.subr.mxu0 0.0
    %2839 = vmatpush1.msra.mxu0 %v2597
    %2840 = vmatprep.subr.mxu0 0.0
    %2841 = vmatpush1.msra.mxu0 0.0
    %2842 = vmatprep.subr.mxu0 0.0
    %2843 = vmatpush1.msra.mxu0 0.0
    %2844 = vmatprep.subr.mxu0 0.0
    %2845 = vmatpush1.msra.mxu0 0.0
    %2846 = vmatprep.subr.mxu0 0.0
    %2847 = vmatpush1.msra.mxu0 0.0
    %2848 = vmatprep.subr.mxu0 0.0
    %2849 = vmatpush1.msra.mxu0 0.0
    %2850 = vmatprep.subr.mxu0 0.0
    %2851 = vmatpush1.msra.mxu0 0.0
    %2852 = vmatprep.subr.mxu0 0.0
    %2853 = vmatpush1.msra.mxu0 0.0
    %2854 = vmatprep.subr.mxu0 0.0
    %2855 = vmatpush1.msra.mxu0 0.0
    %2856 = vmatprep.subr.mxu0 0.0
    %2857 = vmatpush1.msra.mxu0 0.0
    %2858 = vmatprep.subr.mxu0 0.0
    %2859 = vmatpush1.msra.mxu0 0.0
    %2860 = vmatprep.subr.mxu0 0.0
    %2861 = vmatpush1.msra.mxu0 0.0
    %2862 = vmatprep.subr.mxu0 0.0
    %2863 = vmatpush1.msra.mxu0 0.0
    %2864 = vmatprep.subr.mxu0 0.0
    %2865 = vmatpush1.msra.mxu0 0.0
    %2866 = vmatprep.subr.mxu0 0.0
    %2867 = vmatpush1.msra.mxu0 0.0
    %2868 = vmatprep.subr.mxu0 0.0
    %2869 = vmatpush1.msra.mxu0 0.0
    %2870 = vmatprep.subr.mxu0 0.0
    %2871 = vmatpush1.msra.mxu0 0.0
    %2872 = vmatprep.subr.mxu0 0.0
    %2873 = vmatpush1.msra.mxu0 0.0
    %2874 = vmatprep.subr.mxu0 0.0
    %2875 = vmatpush1.msra.mxu0 0.0
    %2876 = vmatprep.subr.mxu0 0.0
    %2877 = vmatpush1.msra.mxu0 0.0
    %2878 = vmatprep.subr.mxu0 0.0
    %2879 = vmatpush1.msra.mxu0 0.0
    %2880 = vmatprep.subr.mxu0 0.0
    %2881 = vmatpush1.msra.mxu0 0.0
    %2882 = vmatprep.subr.mxu0 0.0
    %2883 = vmatpush1.msra.mxu0 0.0
    %2884 = vmatprep.subr.mxu0 0.0
    %2885 = vmatpush1.msra.mxu0 0.0
    %2886 = vmatprep.subr.mxu0 0.0
    %2887 = vmatpush1.msra.mxu0 0.0
    %2888 = vmatprep.subr.mxu0 0.0
    %2889 = vmatpush1.msra.mxu0 0.0
    %2890 = vmatprep.subr.mxu0 0.0
    %2891 = vmatpush1.msra.mxu0 0.0
    %2892 = vmatprep.subr.mxu0 0.0
    %2893 = vmatpush1.msra.mxu0 0.0
    %2894 = vmatprep.subr.mxu0 0.0
    %2895 = vmatpush1.msra.mxu0 0.0
    %2896 = vmatprep.subr.mxu0 0.0
    %2897 = vmatpush1.msra.mxu0 0.0
    %2898 = vmatprep.subr.mxu0 0.0
    %2899 = vmatpush1.msra.mxu0 0.0
    %2900 = vmatprep.subr.mxu0 0.0
    %2901 = vmatpush1.msra.mxu0 0.0
    %2902 = vmatprep.mubr.f32.mxu0 0.0
    %2903 = vmatmul.mubr.f32.gmra.mrb[0].mxu0 %v2836
    %v2904 = vpop.f32.mrb[0].mxu0
    %v2905 = vadd.f32 %v2833, %v2904
    %v2906 = vpop.f32.mrb[0].mxu0
    %2907 = vdwg.mxu0
    %v2909 = vsel %vm712, %v2818, 0
    %2911 = vmatprep.subr.mxu0 0.0
    %2912 = vmatpush1.msra.mxu0 %v2602
    %2913 = vmatprep.subr.mxu0 0.0
    %2914 = vmatpush1.msra.mxu0 0.0
    %2915 = vmatprep.subr.mxu0 0.0
    %2916 = vmatpush1.msra.mxu0 0.0
    %2917 = vmatprep.subr.mxu0 0.0
    %2918 = vmatpush1.msra.mxu0 0.0
    %2919 = vmatprep.subr.mxu0 0.0
    %2920 = vmatpush1.msra.mxu0 0.0
    %2921 = vmatprep.subr.mxu0 0.0
    %2922 = vmatpush1.msra.mxu0 0.0
    %2923 = vmatprep.subr.mxu0 0.0
    %2924 = vmatpush1.msra.mxu0 0.0
    %2925 = vmatprep.subr.mxu0 0.0
    %2926 = vmatpush1.msra.mxu0 0.0
    %2927 = vmatprep.subr.mxu0 0.0
    %2928 = vmatpush1.msra.mxu0 0.0
    %2929 = vmatprep.subr.mxu0 0.0
    %2930 = vmatpush1.msra.mxu0 0.0
    %2931 = vmatprep.subr.mxu0 0.0
    %2932 = vmatpush1.msra.mxu0 0.0
    %2933 = vmatprep.subr.mxu0 0.0
    %2934 = vmatpush1.msra.mxu0 0.0
    %2935 = vmatprep.subr.mxu0 0.0
    %2936 = vmatpush1.msra.mxu0 0.0
    %2937 = vmatprep.subr.mxu0 0.0
    %2938 = vmatpush1.msra.mxu0 0.0
    %2939 = vmatprep.subr.mxu0 0.0
    %2940 = vmatpush1.msra.mxu0 0.0
    %2941 = vmatprep.subr.mxu0 0.0
    %2942 = vmatpush1.msra.mxu0 0.0
    %2943 = vmatprep.subr.mxu0 0.0
    %2944 = vmatpush1.msra.mxu0 0.0
    %2945 = vmatprep.subr.mxu0 0.0
    %2946 = vmatpush1.msra.mxu0 0.0
    %2947 = vmatprep.subr.mxu0 0.0
    %2948 = vmatpush1.msra.mxu0 0.0
    %2949 = vmatprep.subr.mxu0 0.0
    %2950 = vmatpush1.msra.mxu0 0.0
    %2951 = vmatprep.subr.mxu0 0.0
    %2952 = vmatpush1.msra.mxu0 0.0
    %2953 = vmatprep.subr.mxu0 0.0
    %2954 = vmatpush1.msra.mxu0 0.0
    %2955 = vmatprep.subr.mxu0 0.0
    %2956 = vmatpush1.msra.mxu0 0.0
    %2957 = vmatprep.subr.mxu0 0.0
    %2958 = vmatpush1.msra.mxu0 0.0
    %2959 = vmatprep.subr.mxu0 0.0
    %2960 = vmatpush1.msra.mxu0 0.0
    %2961 = vmatprep.subr.mxu0 0.0
    %2962 = vmatpush1.msra.mxu0 0.0
    %2963 = vmatprep.subr.mxu0 0.0
    %2964 = vmatpush1.msra.mxu0 0.0
    %2965 = vmatprep.subr.mxu0 0.0
    %2966 = vmatpush1.msra.mxu0 0.0
    %2967 = vmatprep.subr.mxu0 0.0
    %2968 = vmatpush1.msra.mxu0 0.0
    %2969 = vmatprep.subr.mxu0 0.0
    %2970 = vmatpush1.msra.mxu0 0.0
    %2971 = vmatprep.subr.mxu0 0.0
    %2972 = vmatpush1.msra.mxu0 0.0
    %2973 = vmatprep.subr.mxu0 0.0
    %2974 = vmatpush1.msra.mxu0 0.0
    %2975 = vmatprep.mubr.f32.mxu0 0.0
    %2976 = vmatmul.mubr.f32.gmra.mrb[0].mxu0 %v2909
    %v2977 = vpop.f32.mrb[0].mxu0
    %v2978 = vadd.f32 %v2834, %v2977
    %v2979 = vpop.f32.mrb[0].mxu0
    %2980 = vdwg.mxu0
    %v2981 = vsub.f32 %v2829, %v2823
    %v2982 = vsub.f32 %v2832, %v2826
    %v2983 = vmul.f32 %v2981, %v2627
    %v2984 = vmul.f32 %v2982, %v2627
    %v2985 = vadd.f32 %v2905, %v2983
    %v2986 = vadd.f32 %v2978, %v2984
    %2989 = vrot.lane.b32.xlu0 %v2615, 112
    %v2990 = vpop.permute.xlu0 %2989
    %2991 = vrot.lane.b32.xlu0 %v2616, 112
    %v2992 = vpop.permute.xlu0 %2991
    %v2995 = vsel %vm124, %v2990, 0.0
    %2996 = vadd.xlane.f32.xlu0 %v2995
    %v2997 = vpop.xlane.xlu0 %2996
    %v2998 = vsel %vm124, %v2992, 0.0
    %2999 = vadd.xlane.f32.xlu0 %v2998
    %v3000 = vpop.xlane.xlu0 %2999
    %3003 = vrot.lane.b32.xlu0 %v2629, 112
    %v3004 = vpop.permute.xlu0 %3003
    %3005 = vrot.lane.b32.xlu0 %v2630, 112
    %v3006 = vpop.permute.xlu0 %3005
    %v3009 = vsel %vm124, %v3004, 0.0
    %3010 = vadd.xlane.f32.xlu0 %v3009
    %v3011 = vpop.xlane.xlu0 %3010
    %v3012 = vsel %vm124, %v3006, 0.0
    %3013 = vadd.xlane.f32.xlu0 %v3012
    %v3014 = vpop.xlane.xlu0 %3013
    %v3015 = vmul.f32 %v208, %v2997
    %v3016 = vmul.f32 %v209, %v3000
    %3017 = vrot.lane.b32.xlu0 %v2421, 112
    %v3018 = vpop.permute.xlu0 %3017
    %3019 = vrot.lane.b32.xlu0 %v2509, 112
    %v3020 = vpop.permute.xlu0 %3019
    %v3021 = vsel %vm124, %v3018, 0
    %v3023 = vsel %vm124, %v3020, 0
    %3025 = vmatprep.subr.mxu0 0.0
    %3026 = vmatpush1.xpose.msra.mxu0 %v3023
    %3027 = vmatprep.subr.mxu0 0.0
    %3028 = vmatpush1.xpose.msra.mxu0 0.0
    %3029 = vmatprep.subr.mxu0 0.0
    %3030 = vmatpush1.xpose.msra.mxu0 0.0
    %3031 = vmatprep.subr.mxu0 0.0
    %3032 = vmatpush1.xpose.msra.mxu0 0.0
    %3033 = vmatprep.subr.mxu0 0.0
    %3034 = vmatpush1.xpose.msra.mxu0 0.0
    %3035 = vmatprep.subr.mxu0 0.0
    %3036 = vmatpush1.xpose.msra.mxu0 0.0
    %3037 = vmatprep.subr.mxu0 0.0
    %3038 = vmatpush1.xpose.msra.mxu0 0.0
    %3039 = vmatprep.subr.mxu0 0.0
    %3040 = vmatpush1.xpose.msra.mxu0 0.0
    %3041 = vmatprep.subr.mxu0 0.0
    %3042 = vmatpush1.xpose.msra.mxu0 0.0
    %3043 = vmatprep.subr.mxu0 0.0
    %3044 = vmatpush1.xpose.msra.mxu0 0.0
    %3045 = vmatprep.subr.mxu0 0.0
    %3046 = vmatpush1.xpose.msra.mxu0 0.0
    %3047 = vmatprep.subr.mxu0 0.0
    %3048 = vmatpush1.xpose.msra.mxu0 0.0
    %3049 = vmatprep.subr.mxu0 0.0
    %3050 = vmatpush1.xpose.msra.mxu0 0.0
    %3051 = vmatprep.subr.mxu0 0.0
    %3052 = vmatpush1.xpose.msra.mxu0 0.0
    %3053 = vmatprep.subr.mxu0 0.0
    %3054 = vmatpush1.xpose.msra.mxu0 0.0
    %3055 = vmatprep.subr.mxu0 0.0
    %3056 = vmatpush1.xpose.msra.mxu0 0.0
    %3057 = vmatprep.subr.mxu0 0.0
    %3058 = vmatpush1.xpose.msra.mxu0 0.0
    %3059 = vmatprep.subr.mxu0 0.0
    %3060 = vmatpush1.xpose.msra.mxu0 0.0
    %3061 = vmatprep.subr.mxu0 0.0
    %3062 = vmatpush1.xpose.msra.mxu0 0.0
    %3063 = vmatprep.subr.mxu0 0.0
    %3064 = vmatpush1.xpose.msra.mxu0 0.0
    %3065 = vmatprep.subr.mxu0 0.0
    %3066 = vmatpush1.xpose.msra.mxu0 0.0
    %3067 = vmatprep.subr.mxu0 0.0
    %3068 = vmatpush1.xpose.msra.mxu0 0.0
    %3069 = vmatprep.subr.mxu0 0.0
    %3070 = vmatpush1.xpose.msra.mxu0 0.0
    %3071 = vmatprep.subr.mxu0 0.0
    %3072 = vmatpush1.xpose.msra.mxu0 0.0
    %3073 = vmatprep.subr.mxu0 0.0
    %3074 = vmatpush1.xpose.msra.mxu0 0.0
    %3075 = vmatprep.subr.mxu0 0.0
    %3076 = vmatpush1.xpose.msra.mxu0 0.0
    %3077 = vmatprep.subr.mxu0 0.0
    %3078 = vmatpush1.xpose.msra.mxu0 0.0
    %3079 = vmatprep.subr.mxu0 0.0
    %3080 = vmatpush1.xpose.msra.mxu0 0.0
    %3081 = vmatprep.subr.mxu0 0.0
    %3082 = vmatpush1.xpose.msra.mxu0 0.0
    %3083 = vmatprep.subr.mxu0 0.0
    %3084 = vmatpush1.xpose.msra.mxu0 0.0
    %3085 = vmatprep.subr.mxu0 0.0
    %3086 = vmatpush1.xpose.msra.mxu0 0.0
    %3087 = vmatprep.subr.mxu0 0.0
    %3088 = vmatpush1.xpose.msra.mxu0 0.0
    %3089 = vmatprep.mubr.f32.mxu0 0.0
    %3090 = vmatmul.mubr.f32.gmra.mrb[0].mxu0 %v3021
    %v3091 = vpop.f32.mrb[0].mxu0
    %v3092 = vadd.f32 %v3015, %v3091
    %v3093 = vpop.f32.mrb[0].mxu0
    %3094 = vdwg.mxu0
    %3095 = vrot.lane.b32.xlu0 %v2426, 112
    %v3096 = vpop.permute.xlu0 %3095
    %3097 = vrot.lane.b32.xlu0 %v2514, 112
    %v3098 = vpop.permute.xlu0 %3097
    %v3099 = vsel %vm124, %v3096, 0
    %v3101 = vsel %vm124, %v3098, 0
    %3103 = vmatprep.subr.mxu0 0.0
    %3104 = vmatpush1.xpose.msra.mxu0 %v3101
    %3105 = vmatprep.subr.mxu0 0.0
    %3106 = vmatpush1.xpose.msra.mxu0 0.0
    %3107 = vmatprep.subr.mxu0 0.0
    %3108 = vmatpush1.xpose.msra.mxu0 0.0
    %3109 = vmatprep.subr.mxu0 0.0
    %3110 = vmatpush1.xpose.msra.mxu0 0.0
    %3111 = vmatprep.subr.mxu0 0.0
    %3112 = vmatpush1.xpose.msra.mxu0 0.0
    %3113 = vmatprep.subr.mxu0 0.0
    %3114 = vmatpush1.xpose.msra.mxu0 0.0
    %3115 = vmatprep.subr.mxu0 0.0
    %3116 = vmatpush1.xpose.msra.mxu0 0.0
    %3117 = vmatprep.subr.mxu0 0.0
    %3118 = vmatpush1.xpose.msra.mxu0 0.0
    %3119 = vmatprep.subr.mxu0 0.0
    %3120 = vmatpush1.xpose.msra.mxu0 0.0
    %3121 = vmatprep.subr.mxu0 0.0
    %3122 = vmatpush1.xpose.msra.mxu0 0.0
    %3123 = vmatprep.subr.mxu0 0.0
    %3124 = vmatpush1.xpose.msra.mxu0 0.0
    %3125 = vmatprep.subr.mxu0 0.0
    %3126 = vmatpush1.xpose.msra.mxu0 0.0
    %3127 = vmatprep.subr.mxu0 0.0
    %3128 = vmatpush1.xpose.msra.mxu0 0.0
    %3129 = vmatprep.subr.mxu0 0.0
    %3130 = vmatpush1.xpose.msra.mxu0 0.0
    %3131 = vmatprep.subr.mxu0 0.0
    %3132 = vmatpush1.xpose.msra.mxu0 0.0
    %3133 = vmatprep.subr.mxu0 0.0
    %3134 = vmatpush1.xpose.msra.mxu0 0.0
    %3135 = vmatprep.subr.mxu0 0.0
    %3136 = vmatpush1.xpose.msra.mxu0 0.0
    %3137 = vmatprep.subr.mxu0 0.0
    %3138 = vmatpush1.xpose.msra.mxu0 0.0
    %3139 = vmatprep.subr.mxu0 0.0
    %3140 = vmatpush1.xpose.msra.mxu0 0.0
    %3141 = vmatprep.subr.mxu0 0.0
    %3142 = vmatpush1.xpose.msra.mxu0 0.0
    %3143 = vmatprep.subr.mxu0 0.0
    %3144 = vmatpush1.xpose.msra.mxu0 0.0
    %3145 = vmatprep.subr.mxu0 0.0
    %3146 = vmatpush1.xpose.msra.mxu0 0.0
    %3147 = vmatprep.subr.mxu0 0.0
    %3148 = vmatpush1.xpose.msra.mxu0 0.0
    %3149 = vmatprep.subr.mxu0 0.0
    %3150 = vmatpush1.xpose.msra.mxu0 0.0
    %3151 = vmatprep.subr.mxu0 0.0
    %3152 = vmatpush1.xpose.msra.mxu0 0.0
    %3153 = vmatprep.subr.mxu0 0.0
    %3154 = vmatpush1.xpose.msra.mxu0 0.0
    %3155 = vmatprep.subr.mxu0 0.0
    %3156 = vmatpush1.xpose.msra.mxu0 0.0
    %3157 = vmatprep.subr.mxu0 0.0
    %3158 = vmatpush1.xpose.msra.mxu0 0.0
    %3159 = vmatprep.subr.mxu0 0.0
    %3160 = vmatpush1.xpose.msra.mxu0 0.0
    %3161 = vmatprep.subr.mxu0 0.0
    %3162 = vmatpush1.xpose.msra.mxu0 0.0
    %3163 = vmatprep.subr.mxu0 0.0
    %3164 = vmatpush1.xpose.msra.mxu0 0.0
    %3165 = vmatprep.subr.mxu0 0.0
    %3166 = vmatpush1.xpose.msra.mxu0 0.0
    %3167 = vmatprep.mubr.f32.mxu0 0.0
    %3168 = vmatmul.mubr.f32.gmra.mrb[0].mxu0 %v3099
    %v3169 = vpop.f32.mrb[0].mxu0
    %v3170 = vadd.f32 %v3016, %v3169
    %v3171 = vpop.f32.mrb[0].mxu0
    %3172 = vdwg.mxu0
    %v3173 = vmul.f32 %v704, %v3011
    %v3174 = vmul.f32 %v705, %v3014
    %v3175 = vadd.f32 %v3092, %v3173
    %v3176 = vadd.f32 %v3170, %v3174
    %v3177 = vmul.f32 %v3175, 0.25
    %v3178 = vmul.f32 %v3176, 0.25
    %v3179 = vsel %vm712, %v3177, -inf
    %3180 = vmax.xlane.f32.xlu0 %v3179
    %v3181 = vpop.xlane.xlu0 %3180
    %v3182 = vsel %vm712, %v3178, -inf
    %3183 = vmax.xlane.f32.xlu0 %v3182
    %v3184 = vpop.xlane.xlu0 %3183
    %v3185 = vsub.f32 %v3177, %v3181
    %v3186 = vsub.f32 %v3178, %v3184
    %v3187 = vmul.f32 %v3185, 1.442695
    %v3188 = vpow.pop %v3187
    %v3189 = vmul.f32 %v3186, 1.442695
    %v3190 = vpow.pop %v3189
    %v3191 = vsel %vm712, %v3188, 0.0
    %3192 = vadd.xlane.f32.xlu0 %v3191
    %v3193 = vpop.xlane.xlu0 %3192
    %v3194 = vsel %vm712, %v3190, 0.0
    %3195 = vadd.xlane.f32.xlu0 %v3194
    %v3196 = vpop.xlane.xlu0 %3195
    %v3197 = vrcp.pop %v3193
    %v3198 = vrcp.pop %v3196
    %v3199 = vmul.f32 %v3188, %v3197
    %v3200 = vmul.f32 %v3190, %v3198
    %v3201 = vmul.f32 %v3199, %v208
    %v3202 = vmul.f32 %v3200, %v209
    %v3203 = vsel %vm712, %v3201, 0.0
    %3204 = vadd.xlane.f32.xlu0 %v3203
    %v3205 = vpop.xlane.xlu0 %3204
    %v3206 = vsel %vm712, %v3202, 0.0
    %3207 = vadd.xlane.f32.xlu0 %v3206
    %v3208 = vpop.xlane.xlu0 %3207
    %v3209 = vsel %vm712, %v3199, 0.0
    %3210 = vadd.xlane.f32.xlu0 %v3209
    %v3211 = vpop.xlane.xlu0 %3210
    %v3212 = vsel %vm712, %v3200, 0.0
    %3213 = vadd.xlane.f32.xlu0 %v3212
    %v3214 = vpop.xlane.xlu0 %3213
    %v3215 = vmul.f32 %v3205, %v2613
    %v3216 = vmul.f32 %v3208, %v2613
    %3218 = vrot.lane.b32.xlu0 %v2597, 112
    %v3219 = vpop.permute.xlu0 %3218
    %3222 = vrot.lane.b32.xlu0 %v3215, 112
    %v3223 = vpop.permute.xlu0 %3222
    %v3226 = vsel %vm712, %v3199, 0
    %3228 = vmatprep.subr.mxu0 0.0
    %3229 = vmatpush1.msra.mxu0 %v3219
    %3230 = vmatprep.subr.mxu0 0.0
    %3231 = vmatpush1.msra.mxu0 0.0
    %3232 = vmatprep.subr.mxu0 0.0
    %3233 = vmatpush1.msra.mxu0 0.0
    %3234 = vmatprep.subr.mxu0 0.0
    %3235 = vmatpush1.msra.mxu0 0.0
    %3236 = vmatprep.subr.mxu0 0.0
    %3237 = vmatpush1.msra.mxu0 0.0
    %3238 = vmatprep.subr.mxu0 0.0
    %3239 = vmatpush1.msra.mxu0 0.0
    %3240 = vmatprep.subr.mxu0 0.0
    %3241 = vmatpush1.msra.mxu0 0.0
    %3242 = vmatprep.subr.mxu0 0.0
    %3243 = vmatpush1.msra.mxu0 0.0
    %3244 = vmatprep.subr.mxu0 0.0
    %3245 = vmatpush1.msra.mxu0 0.0
    %3246 = vmatprep.subr.mxu0 0.0
    %3247 = vmatpush1.msra.mxu0 0.0
    %3248 = vmatprep.subr.mxu0 0.0
    %3249 = vmatpush1.msra.mxu0 0.0
    %3250 = vmatprep.subr.mxu0 0.0
    %3251 = vmatpush1.msra.mxu0 0.0
    %3252 = vmatprep.subr.mxu0 0.0
    %3253 = vmatpush1.msra.mxu0 0.0
    %3254 = vmatprep.subr.mxu0 0.0
    %3255 = vmatpush1.msra.mxu0 0.0
    %3256 = vmatprep.subr.mxu0 0.0
    %3257 = vmatpush1.msra.mxu0 0.0
    %3258 = vmatprep.subr.mxu0 0.0
    %3259 = vmatpush1.msra.mxu0 0.0
    %3260 = vmatprep.subr.mxu0 0.0
    %3261 = vmatpush1.msra.mxu0 0.0
    %3262 = vmatprep.subr.mxu0 0.0
    %3263 = vmatpush1.msra.mxu0 0.0
    %3264 = vmatprep.subr.mxu0 0.0
    %3265 = vmatpush1.msra.mxu0 0.0
    %3266 = vmatprep.subr.mxu0 0.0
    %3267 = vmatpush1.msra.mxu0 0.0
    %3268 = vmatprep.subr.mxu0 0.0
    %3269 = vmatpush1.msra.mxu0 0.0
    %3270 = vmatprep.subr.mxu0 0.0
    %3271 = vmatpush1.msra.mxu0 0.0
    %3272 = vmatprep.subr.mxu0 0.0
    %3273 = vmatpush1.msra.mxu0 0.0
    %3274 = vmatprep.subr.mxu0 0.0
    %3275 = vmatpush1.msra.mxu0 0.0
    %3276 = vmatprep.subr.mxu0 0.0
    %3277 = vmatpush1.msra.mxu0 0.0
    %3278 = vmatprep.subr.mxu0 0.0
    %3279 = vmatpush1.msra.mxu0 0.0
    %3280 = vmatprep.subr.mxu0 0.0
    %3281 = vmatpush1.msra.mxu0 0.0
    %3282 = vmatprep.subr.mxu0 0.0
    %3283 = vmatpush1.msra.mxu0 0.0
    %3284 = vmatprep.subr.mxu0 0.0
    %3285 = vmatpush1.msra.mxu0 0.0
    %3286 = vmatprep.subr.mxu0 0.0
    %3287 = vmatpush1.msra.mxu0 0.0
    %3288 = vmatprep.subr.mxu0 0.0
    %3289 = vmatpush1.msra.mxu0 0.0
    %3290 = vmatprep.subr.mxu0 0.0
    %3291 = vmatpush1.msra.mxu0 0.0
    %3292 = vmatprep.mubr.f32.mxu0 0.0
    %3293 = vmatmul.mubr.f32.gmra.mrb[0].mxu0 %v3226
    %v3294 = vpop.f32.mrb[0].mxu0
    %v3295 = vadd.f32 %v3223, %v3294
    %v3296 = vpop.f32.mrb[0].mxu0
    %3297 = vdwg.mxu0
    %3299 = vrot.lane.b32.xlu0 %v2602, 112
    %v3300 = vpop.permute.xlu0 %3299
    %3303 = vrot.lane.b32.xlu0 %v3216, 112
    %v3304 = vpop.permute.xlu0 %3303
    %v3307 = vsel %vm712, %v3200, 0
    %3309 = vmatprep.subr.mxu0 0.0
    %3310 = vmatpush1.msra.mxu0 %v3300
    %3311 = vmatprep.subr.mxu0 0.0
    %3312 = vmatpush1.msra.mxu0 0.0
    %3313 = vmatprep.subr.mxu0 0.0
    %3314 = vmatpush1.msra.mxu0 0.0
    %3315 = vmatprep.subr.mxu0 0.0
    %3316 = vmatpush1.msra.mxu0 0.0
    %3317 = vmatprep.subr.mxu0 0.0
    %3318 = vmatpush1.msra.mxu0 0.0
    %3319 = vmatprep.subr.mxu0 0.0
    %3320 = vmatpush1.msra.mxu0 0.0
    %3321 = vmatprep.subr.mxu0 0.0
    %3322 = vmatpush1.msra.mxu0 0.0
    %3323 = vmatprep.subr.mxu0 0.0
    %3324 = vmatpush1.msra.mxu0 0.0
    %3325 = vmatprep.subr.mxu0 0.0
    %3326 = vmatpush1.msra.mxu0 0.0
    %3327 = vmatprep.subr.mxu0 0.0
    %3328 = vmatpush1.msra.mxu0 0.0
    %3329 = vmatprep.subr.mxu0 0.0
    %3330 = vmatpush1.msra.mxu0 0.0
    %3331 = vmatprep.subr.mxu0 0.0
    %3332 = vmatpush1.msra.mxu0 0.0
    %3333 = vmatprep.subr.mxu0 0.0
    %3334 = vmatpush1.msra.mxu0 0.0
    %3335 = vmatprep.subr.mxu0 0.0
    %3336 = vmatpush1.msra.mxu0 0.0
    %3337 = vmatprep.subr.mxu0 0.0
    %3338 = vmatpush1.msra.mxu0 0.0
    %3339 = vmatprep.subr.mxu0 0.0
    %3340 = vmatpush1.msra.mxu0 0.0
    %3341 = vmatprep.subr.mxu0 0.0
    %3342 = vmatpush1.msra.mxu0 0.0
    %3343 = vmatprep.subr.mxu0 0.0
    %3344 = vmatpush1.msra.mxu0 0.0
    %3345 = vmatprep.subr.mxu0 0.0
    %3346 = vmatpush1.msra.mxu0 0.0
    %3347 = vmatprep.subr.mxu0 0.0
    %3348 = vmatpush1.msra.mxu0 0.0
    %3349 = vmatprep.subr.mxu0 0.0
    %3350 = vmatpush1.msra.mxu0 0.0
    %3351 = vmatprep.subr.mxu0 0.0
    %3352 = vmatpush1.msra.mxu0 0.0
    %3353 = vmatprep.subr.mxu0 0.0
    %3354 = vmatpush1.msra.mxu0 0.0
    %3355 = vmatprep.subr.mxu0 0.0
    %3356 = vmatpush1.msra.mxu0 0.0
    %3357 = vmatprep.subr.mxu0 0.0
    %3358 = vmatpush1.msra.mxu0 0.0
    %3359 = vmatprep.subr.mxu0 0.0
    %3360 = vmatpush1.msra.mxu0 0.0
    %3361 = vmatprep.subr.mxu0 0.0
    %3362 = vmatpush1.msra.mxu0 0.0
    %3363 = vmatprep.subr.mxu0 0.0
    %3364 = vmatpush1.msra.mxu0 0.0
    %3365 = vmatprep.subr.mxu0 0.0
    %3366 = vmatpush1.msra.mxu0 0.0
    %3367 = vmatprep.subr.mxu0 0.0
    %3368 = vmatpush1.msra.mxu0 0.0
    %3369 = vmatprep.subr.mxu0 0.0
    %3370 = vmatpush1.msra.mxu0 0.0
    %3371 = vmatprep.subr.mxu0 0.0
    %3372 = vmatpush1.msra.mxu0 0.0
    %3373 = vmatprep.mubr.f32.mxu0 0.0
    %3374 = vmatmul.mubr.f32.gmra.mrb[0].mxu0 %v3307
    %v3375 = vpop.f32.mrb[0].mxu0
    %v3376 = vadd.f32 %v3304, %v3375
    %v3377 = vpop.f32.mrb[0].mxu0
    %3378 = vdwg.mxu0
    %v3379 = vsub.f32 %v3211, %v3205
    %v3380 = vsub.f32 %v3214, %v3208
    %v3381 = vmul.f32 %v3379, %v2627
    %v3382 = vmul.f32 %v3380, %v2627
    %3385 = vrot.lane.b32.xlu0 %v3381, 112
    %v3386 = vpop.permute.xlu0 %3385
    %3387 = vrot.lane.b32.xlu0 %v3382, 112
    %v3388 = vpop.permute.xlu0 %3387
    %v3391 = vadd.f32 %v3295, %v3386
    %v3392 = vadd.f32 %v3376, %v3388
    %3393 = vrot.lane.b32.xlu0 %v2615, 96
    %v3394 = vpop.permute.xlu0 %3393
    %3395 = vrot.lane.b32.xlu0 %v2616, 96
    %v3396 = vpop.permute.xlu0 %3395
    %v3399 = vsel %vm124, %v3394, 0.0
    %3400 = vadd.xlane.f32.xlu0 %v3399
    %v3401 = vpop.xlane.xlu0 %3400
    %v3402 = vsel %vm124, %v3396, 0.0
    %3403 = vadd.xlane.f32.xlu0 %v3402
    %v3404 = vpop.xlane.xlu0 %3403
    %3405 = vrot.lane.b32.xlu0 %v2629, 96
    %v3406 = vpop.permute.xlu0 %3405
    %3407 = vrot.lane.b32.xlu0 %v2630, 96
    %v3408 = vpop.permute.xlu0 %3407
    %v3411 = vsel %vm124, %v3406, 0.0
    %3412 = vadd.xlane.f32.xlu0 %v3411
    %v3413 = vpop.xlane.xlu0 %3412
    %v3414 = vsel %vm124, %v3408, 0.0
    %3415 = vadd.xlane.f32.xlu0 %v3414
    %v3416 = vpop.xlane.xlu0 %3415
    %v3417 = vmul.f32 %v208, %v3401
    %v3418 = vmul.f32 %v209, %v3404
    %3419 = vrot.lane.b32.xlu0 %v2421, 96
    %v3420 = vpop.permute.xlu0 %3419
    %3421 = vrot.lane.b32.xlu0 %v2509, 96
    %v3422 = vpop.permute.xlu0 %3421
    %v3423 = vsel %vm124, %v3420, 0
    %v3425 = vsel %vm124, %v3422, 0
    %3427 = vmatprep.subr.mxu0 0.0
    %3428 = vmatpush1.xpose.msra.mxu0 %v3425
    %3429 = vmatprep.subr.mxu0 0.0
    %3430 = vmatpush1.xpose.msra.mxu0 0.0
    %3431 = vmatprep.subr.mxu0 0.0
    %3432 = vmatpush1.xpose.msra.mxu0 0.0
    %3433 = vmatprep.subr.mxu0 0.0
    %3434 = vmatpush1.xpose.msra.mxu0 0.0
    %3435 = vmatprep.subr.mxu0 0.0
    %3436 = vmatpush1.xpose.msra.mxu0 0.0
    %3437 = vmatprep.subr.mxu0 0.0
    %3438 = vmatpush1.xpose.msra.mxu0 0.0
    %3439 = vmatprep.subr.mxu0 0.0
    %3440 = vmatpush1.xpose.msra.mxu0 0.0
    %3441 = vmatprep.subr.mxu0 0.0
    %3442 = vmatpush1.xpose.msra.mxu0 0.0
    %3443 = vmatprep.subr.mxu0 0.0
    %3444 = vmatpush1.xpose.msra.mxu0 0.0
    %3445 = vmatprep.subr.mxu0 0.0
    %3446 = vmatpush1.xpose.msra.mxu0 0.0
    %3447 = vmatprep.subr.mxu0 0.0
    %3448 = vmatpush1.xpose.msra.mxu0 0.0
    %3449 = vmatprep.subr.mxu0 0.0
    %3450 = vmatpush1.xpose.msra.mxu0 0.0
    %3451 = vmatprep.subr.mxu0 0.0
    %3452 = vmatpush1.xpose.msra.mxu0 0.0
    %3453 = vmatprep.subr.mxu0 0.0
    %3454 = vmatpush1.xpose.msra.mxu0 0.0
    %3455 = vmatprep.subr.mxu0 0.0
    %3456 = vmatpush1.xpose.msra.mxu0 0.0
    %3457 = vmatprep.subr.mxu0 0.0
    %3458 = vmatpush1.xpose.msra.mxu0 0.0
    %3459 = vmatprep.subr.mxu0 0.0
    %3460 = vmatpush1.xpose.msra.mxu0 0.0
    %3461 = vmatprep.subr.mxu0 0.0
    %3462 = vmatpush1.xpose.msra.mxu0 0.0
    %3463 = vmatprep.subr.mxu0 0.0
    %3464 = vmatpush1.xpose.msra.mxu0 0.0
    %3465 = vmatprep.subr.mxu0 0.0
    %3466 = vmatpush1.xpose.msra.mxu0 0.0
    %3467 = vmatprep.subr.mxu0 0.0
    %3468 = vmatpush1.xpose.msra.mxu0 0.0
    %3469 = vmatprep.subr.mxu0 0.0
    %3470 = vmatpush1.xpose.msra.mxu0 0.0
    %3471 = vmatprep.subr.mxu0 0.0
    %3472 = vmatpush1.xpose.msra.mxu0 0.0
    %3473 = vmatprep.subr.mxu0 0.0
    %3474 = vmatpush1.xpose.msra.mxu0 0.0
    %3475 = vmatprep.subr.mxu0 0.0
    %3476 = vmatpush1.xpose.msra.mxu0 0.0
    %3477 = vmatprep.subr.mxu0 0.0
    %3478 = vmatpush1.xpose.msra.mxu0 0.0
    %3479 = vmatprep.subr.mxu0 0.0
    %3480 = vmatpush1.xpose.msra.mxu0 0.0
    %3481 = vmatprep.subr.mxu0 0.0
    %3482 = vmatpush1.xpose.msra.mxu0 0.0
    %3483 = vmatprep.subr.mxu0 0.0
    %3484 = vmatpush1.xpose.msra.mxu0 0.0
    %3485 = vmatprep.subr.mxu0 0.0
    %3486 = vmatpush1.xpose.msra.mxu0 0.0
    %3487 = vmatprep.subr.mxu0 0.0
    %3488 = vmatpush1.xpose.msra.mxu0 0.0
    %3489 = vmatprep.subr.mxu0 0.0
    %3490 = vmatpush1.xpose.msra.mxu0 0.0
    %3491 = vmatprep.mubr.f32.mxu0 0.0
    %3492 = vmatmul.mubr.f32.gmra.mrb[0].mxu0 %v3423
    %v3493 = vpop.f32.mrb[0].mxu0
    %v3494 = vadd.f32 %v3417, %v3493
    %v3495 = vpop.f32.mrb[0].mxu0
    %3496 = vdwg.mxu0
    %3497 = vrot.lane.b32.xlu0 %v2426, 96
    %v3498 = vpop.permute.xlu0 %3497
    %3499 = vrot.lane.b32.xlu0 %v2514, 96
    %v3500 = vpop.permute.xlu0 %3499
    %v3501 = vsel %vm124, %v3498, 0
    %v3503 = vsel %vm124, %v3500, 0
    %3505 = vmatprep.subr.mxu0 0.0
    %3506 = vmatpush1.xpose.msra.mxu0 %v3503
    %3507 = vmatprep.subr.mxu0 0.0
    %3508 = vmatpush1.xpose.msra.mxu0 0.0
    %3509 = vmatprep.subr.mxu0 0.0
    %3510 = vmatpush1.xpose.msra.mxu0 0.0
    %3511 = vmatprep.subr.mxu0 0.0
    %3512 = vmatpush1.xpose.msra.mxu0 0.0
    %3513 = vmatprep.subr.mxu0 0.0
    %3514 = vmatpush1.xpose.msra.mxu0 0.0
    %3515 = vmatprep.subr.mxu0 0.0
    %3516 = vmatpush1.xpose.msra.mxu0 0.0
    %3517 = vmatprep.subr.mxu0 0.0
    %3518 = vmatpush1.xpose.msra.mxu0 0.0
    %3519 = vmatprep.subr.mxu0 0.0
    %3520 = vmatpush1.xpose.msra.mxu0 0.0
    %3521 = vmatprep.subr.mxu0 0.0
    %3522 = vmatpush1.xpose.msra.mxu0 0.0
    %3523 = vmatprep.subr.mxu0 0.0
    %3524 = vmatpush1.xpose.msra.mxu0 0.0
    %3525 = vmatprep.subr.mxu0 0.0
    %3526 = vmatpush1.xpose.msra.mxu0 0.0
    %3527 = vmatprep.subr.mxu0 0.0
    %3528 = vmatpush1.xpose.msra.mxu0 0.0
    %3529 = vmatprep.subr.mxu0 0.0
    %3530 = vmatpush1.xpose.msra.mxu0 0.0
    %3531 = vmatprep.subr.mxu0 0.0
    %3532 = vmatpush1.xpose.msra.mxu0 0.0
    %3533 = vmatprep.subr.mxu0 0.0
    %3534 = vmatpush1.xpose.msra.mxu0 0.0
    %3535 = vmatprep.subr.mxu0 0.0
    %3536 = vmatpush1.xpose.msra.mxu0 0.0
    %3537 = vmatprep.subr.mxu0 0.0
    %3538 = vmatpush1.xpose.msra.mxu0 0.0
    %3539 = vmatprep.subr.mxu0 0.0
    %3540 = vmatpush1.xpose.msra.mxu0 0.0
    %3541 = vmatprep.subr.mxu0 0.0
    %3542 = vmatpush1.xpose.msra.mxu0 0.0
    %3543 = vmatprep.subr.mxu0 0.0
    %3544 = vmatpush1.xpose.msra.mxu0 0.0
    %3545 = vmatprep.subr.mxu0 0.0
    %3546 = vmatpush1.xpose.msra.mxu0 0.0
    %3547 = vmatprep.subr.mxu0 0.0
    %3548 = vmatpush1.xpose.msra.mxu0 0.0
    %3549 = vmatprep.subr.mxu0 0.0
    %3550 = vmatpush1.xpose.msra.mxu0 0.0
    %3551 = vmatprep.subr.mxu0 0.0
    %3552 = vmatpush1.xpose.msra.mxu0 0.0
    %3553 = vmatprep.subr.mxu0 0.0
    %3554 = vmatpush1.xpose.msra.mxu0 0.0
    %3555 = vmatprep.subr.mxu0 0.0
    %3556 = vmatpush1.xpose.msra.mxu0 0.0
    %3557 = vmatprep.subr.mxu0 0.0
    %3558 = vmatpush1.xpose.msra.mxu0 0.0
    %3559 = vmatprep.subr.mxu0 0.0
    %3560 = vmatpush1.xpose.msra.mxu0 0.0
    %3561 = vmatprep.subr.mxu0 0.0
    %3562 = vmatpush1.xpose.msra.mxu0 0.0
    %3563 = vmatprep.subr.mxu0 0.0
    %3564 = vmatpush1.xpose.msra.mxu0 0.0
    %3565 = vmatprep.subr.mxu0 0.0
    %3566 = vmatpush1.xpose.msra.mxu0 0.0
    %3567 = vmatprep.subr.mxu0 0.0
    %3568 = vmatpush1.xpose.msra.mxu0 0.0
    %3569 = vmatprep.mubr.f32.mxu0 0.0
    %3570 = vmatmul.mubr.f32.gmra.mrb[0].mxu0 %v3501
    %v3571 = vpop.f32.mrb[0].mxu0
    %v3572 = vadd.f32 %v3418, %v3571
    %v3573 = vpop.f32.mrb[0].mxu0
    %3574 = vdwg.mxu0
    %v3575 = vmul.f32 %v704, %v3413
    %v3576 = vmul.f32 %v705, %v3416
    %v3577 = vadd.f32 %v3494, %v3575
    %v3578 = vadd.f32 %v3572, %v3576
    %v3579 = vmul.f32 %v3577, 0.25
    %v3580 = vmul.f32 %v3578, 0.25
    %v3581 = vsel %vm712, %v3579, -inf
    %3582 = vmax.xlane.f32.xlu0 %v3581
    %v3583 = vpop.xlane.xlu0 %3582
    %v3584 = vsel %vm712, %v3580, -inf
    %3585 = vmax.xlane.f32.xlu0 %v3584
    %v3586 = vpop.xlane.xlu0 %3585
    %v3587 = vsub.f32 %v3579, %v3583
    %v3588 = vsub.f32 %v3580, %v3586
    %v3589 = vmul.f32 %v3587, 1.442695
    %v3590 = vpow.pop %v3589
    %v3591 = vmul.f32 %v3588, 1.442695
    %v3592 = vpow.pop %v3591
    %v3593 = vsel %vm712, %v3590, 0.0
    %3594 = vadd.xlane.f32.xlu0 %v3593
    %v3595 = vpop.xlane.xlu0 %3594
    %v3596 = vsel %vm712, %v3592, 0.0
    %3597 = vadd.xlane.f32.xlu0 %v3596
    %v3598 = vpop.xlane.xlu0 %3597
    %v3599 = vrcp.pop %v3595
    %v3600 = vrcp.pop %v3598
    %v3601 = vmul.f32 %v3590, %v3599
    %v3602 = vmul.f32 %v3592, %v3600
    %v3603 = vmul.f32 %v3601, %v208
    %v3604 = vmul.f32 %v3602, %v209
    %v3605 = vsel %vm712, %v3603, 0.0
    %3606 = vadd.xlane.f32.xlu0 %v3605
    %v3607 = vpop.xlane.xlu0 %3606
    %v3608 = vsel %vm712, %v3604, 0.0
    %3609 = vadd.xlane.f32.xlu0 %v3608
    %v3610 = vpop.xlane.xlu0 %3609
    %v3611 = vsel %vm712, %v3601, 0.0
    %3612 = vadd.xlane.f32.xlu0 %v3611
    %v3613 = vpop.xlane.xlu0 %3612
    %v3614 = vsel %vm712, %v3602, 0.0
    %3615 = vadd.xlane.f32.xlu0 %v3614
    %v3616 = vpop.xlane.xlu0 %3615
    %v3617 = vmul.f32 %v3607, %v2613
    %v3618 = vmul.f32 %v3610, %v2613
    %3619 = vrot.lane.b32.xlu0 %v2597, 96
    %v3620 = vpop.permute.xlu0 %3619
    %3623 = vrot.lane.b32.xlu0 %v3617, 96
    %v3624 = vpop.permute.xlu0 %3623
    %v3627 = vsel %vm712, %v3601, 0
    %3629 = vmatprep.subr.mxu0 0.0
    %3630 = vmatpush1.msra.mxu0 %v3620
    %3631 = vmatprep.subr.mxu0 0.0
    %3632 = vmatpush1.msra.mxu0 0.0
    %3633 = vmatprep.subr.mxu0 0.0
    %3634 = vmatpush1.msra.mxu0 0.0
    %3635 = vmatprep.subr.mxu0 0.0
    %3636 = vmatpush1.msra.mxu0 0.0
    %3637 = vmatprep.subr.mxu0 0.0
    %3638 = vmatpush1.msra.mxu0 0.0
    %3639 = vmatprep.subr.mxu0 0.0
    %3640 = vmatpush1.msra.mxu0 0.0
    %3641 = vmatprep.subr.mxu0 0.0
    %3642 = vmatpush1.msra.mxu0 0.0
    %3643 = vmatprep.subr.mxu0 0.0
    %3644 = vmatpush1.msra.mxu0 0.0
    %3645 = vmatprep.subr.mxu0 0.0
    %3646 = vmatpush1.msra.mxu0 0.0
    %3647 = vmatprep.subr.mxu0 0.0
    %3648 = vmatpush1.msra.mxu0 0.0
    %3649 = vmatprep.subr.mxu0 0.0
    %3650 = vmatpush1.msra.mxu0 0.0
    %3651 = vmatprep.subr.mxu0 0.0
    %3652 = vmatpush1.msra.mxu0 0.0
    %3653 = vmatprep.subr.mxu0 0.0
    %3654 = vmatpush1.msra.mxu0 0.0
    %3655 = vmatprep.subr.mxu0 0.0
    %3656 = vmatpush1.msra.mxu0 0.0
    %3657 = vmatprep.subr.mxu0 0.0
    %3658 = vmatpush1.msra.mxu0 0.0
    %3659 = vmatprep.subr.mxu0 0.0
    %3660 = vmatpush1.msra.mxu0 0.0
    %3661 = vmatprep.subr.mxu0 0.0
    %3662 = vmatpush1.msra.mxu0 0.0
    %3663 = vmatprep.subr.mxu0 0.0
    %3664 = vmatpush1.msra.mxu0 0.0
    %3665 = vmatprep.subr.mxu0 0.0
    %3666 = vmatpush1.msra.mxu0 0.0
    %3667 = vmatprep.subr.mxu0 0.0
    %3668 = vmatpush1.msra.mxu0 0.0
    %3669 = vmatprep.subr.mxu0 0.0
    %3670 = vmatpush1.msra.mxu0 0.0
    %3671 = vmatprep.subr.mxu0 0.0
    %3672 = vmatpush1.msra.mxu0 0.0
    %3673 = vmatprep.subr.mxu0 0.0
    %3674 = vmatpush1.msra.mxu0 0.0
    %3675 = vmatprep.subr.mxu0 0.0
    %3676 = vmatpush1.msra.mxu0 0.0
    %3677 = vmatprep.subr.mxu0 0.0
    %3678 = vmatpush1.msra.mxu0 0.0
    %3679 = vmatprep.subr.mxu0 0.0
    %3680 = vmatpush1.msra.mxu0 0.0
    %3681 = vmatprep.subr.mxu0 0.0
    %3682 = vmatpush1.msra.mxu0 0.0
    %3683 = vmatprep.subr.mxu0 0.0
    %3684 = vmatpush1.msra.mxu0 0.0
    %3685 = vmatprep.subr.mxu0 0.0
    %3686 = vmatpush1.msra.mxu0 0.0
    %3687 = vmatprep.subr.mxu0 0.0
    %3688 = vmatpush1.msra.mxu0 0.0
    %3689 = vmatprep.subr.mxu0 0.0
    %3690 = vmatpush1.msra.mxu0 0.0
    %3691 = vmatprep.subr.mxu0 0.0
    %3692 = vmatpush1.msra.mxu0 0.0
    %3693 = vmatprep.mubr.f32.mxu0 0.0
    %3694 = vmatmul.mubr.f32.gmra.mrb[0].mxu0 %v3627
    %v3695 = vpop.f32.mrb[0].mxu0
    %v3696 = vadd.f32 %v3624, %v3695
    %v3697 = vpop.f32.mrb[0].mxu0
    %3698 = vdwg.mxu0
    %3699 = vrot.lane.b32.xlu0 %v2602, 96
    %v3700 = vpop.permute.xlu0 %3699
    %3703 = vrot.lane.b32.xlu0 %v3618, 96
    %v3704 = vpop.permute.xlu0 %3703
    %v3707 = vsel %vm712, %v3602, 0
    %3709 = vmatprep.subr.mxu0 0.0
    %3710 = vmatpush1.msra.mxu0 %v3700
    %3711 = vmatprep.subr.mxu0 0.0
    %3712 = vmatpush1.msra.mxu0 0.0
    %3713 = vmatprep.subr.mxu0 0.0
    %3714 = vmatpush1.msra.mxu0 0.0
    %3715 = vmatprep.subr.mxu0 0.0
    %3716 = vmatpush1.msra.mxu0 0.0
    %3717 = vmatprep.subr.mxu0 0.0
    %3718 = vmatpush1.msra.mxu0 0.0
    %3719 = vmatprep.subr.mxu0 0.0
    %3720 = vmatpush1.msra.mxu0 0.0
    %3721 = vmatprep.subr.mxu0 0.0
    %3722 = vmatpush1.msra.mxu0 0.0
    %3723 = vmatprep.subr.mxu0 0.0
    %3724 = vmatpush1.msra.mxu0 0.0
    %3725 = vmatprep.subr.mxu0 0.0
    %3726 = vmatpush1.msra.mxu0 0.0
    %3727 = vmatprep.subr.mxu0 0.0
    %3728 = vmatpush1.msra.mxu0 0.0
    %3729 = vmatprep.subr.mxu0 0.0
    %3730 = vmatpush1.msra.mxu0 0.0
    %3731 = vmatprep.subr.mxu0 0.0
    %3732 = vmatpush1.msra.mxu0 0.0
    %3733 = vmatprep.subr.mxu0 0.0
    %3734 = vmatpush1.msra.mxu0 0.0
    %3735 = vmatprep.subr.mxu0 0.0
    %3736 = vmatpush1.msra.mxu0 0.0
    %3737 = vmatprep.subr.mxu0 0.0
    %3738 = vmatpush1.msra.mxu0 0.0
    %3739 = vmatprep.subr.mxu0 0.0
    %3740 = vmatpush1.msra.mxu0 0.0
    %3741 = vmatprep.subr.mxu0 0.0
    %3742 = vmatpush1.msra.mxu0 0.0
    %3743 = vmatprep.subr.mxu0 0.0
    %3744 = vmatpush1.msra.mxu0 0.0
    %3745 = vmatprep.subr.mxu0 0.0
    %3746 = vmatpush1.msra.mxu0 0.0
    %3747 = vmatprep.subr.mxu0 0.0
    %3748 = vmatpush1.msra.mxu0 0.0
    %3749 = vmatprep.subr.mxu0 0.0
    %3750 = vmatpush1.msra.mxu0 0.0
    %3751 = vmatprep.subr.mxu0 0.0
    %3752 = vmatpush1.msra.mxu0 0.0
    %3753 = vmatprep.subr.mxu0 0.0
    %3754 = vmatpush1.msra.mxu0 0.0
    %3755 = vmatprep.subr.mxu0 0.0
    %3756 = vmatpush1.msra.mxu0 0.0
    %3757 = vmatprep.subr.mxu0 0.0
    %3758 = vmatpush1.msra.mxu0 0.0
    %3759 = vmatprep.subr.mxu0 0.0
    %3760 = vmatpush1.msra.mxu0 0.0
    %3761 = vmatprep.subr.mxu0 0.0
    %3762 = vmatpush1.msra.mxu0 0.0
    %3763 = vmatprep.subr.mxu0 0.0
    %3764 = vmatpush1.msra.mxu0 0.0
    %3765 = vmatprep.subr.mxu0 0.0
    %3766 = vmatpush1.msra.mxu0 0.0
    %3767 = vmatprep.subr.mxu0 0.0
    %3768 = vmatpush1.msra.mxu0 0.0
    %3769 = vmatprep.subr.mxu0 0.0
    %3770 = vmatpush1.msra.mxu0 0.0
    %3771 = vmatprep.subr.mxu0 0.0
    %3772 = vmatpush1.msra.mxu0 0.0
    %3773 = vmatprep.mubr.f32.mxu0 0.0
    %3774 = vmatmul.mubr.f32.gmra.mrb[0].mxu0 %v3707
    %v3775 = vpop.f32.mrb[0].mxu0
    %v3776 = vadd.f32 %v3704, %v3775
    %v3777 = vpop.f32.mrb[0].mxu0
    %3778 = vdwg.mxu0
    %v3779 = vsub.f32 %v3613, %v3607
    %v3780 = vsub.f32 %v3616, %v3610
    %v3781 = vmul.f32 %v3779, %v2627
    %v3782 = vmul.f32 %v3780, %v2627
    %3785 = vrot.lane.b32.xlu0 %v3781, 96
    %v3786 = vpop.permute.xlu0 %3785
    %3787 = vrot.lane.b32.xlu0 %v3782, 96
    %v3788 = vpop.permute.xlu0 %3787
    %v3791 = vadd.f32 %v3696, %v3786
    %v3792 = vadd.f32 %v3776, %v3788
    %3793 = vrot.lane.b32.xlu0 %v2615, 80
    %v3794 = vpop.permute.xlu0 %3793
    %3795 = vrot.lane.b32.xlu0 %v2616, 80
    %v3796 = vpop.permute.xlu0 %3795
    %v3799 = vsel %vm124, %v3794, 0.0
    %3800 = vadd.xlane.f32.xlu0 %v3799
    %v3801 = vpop.xlane.xlu0 %3800
    %v3802 = vsel %vm124, %v3796, 0.0
    %3803 = vadd.xlane.f32.xlu0 %v3802
    %v3804 = vpop.xlane.xlu0 %3803
    %3805 = vrot.lane.b32.xlu0 %v2629, 80
    %v3806 = vpop.permute.xlu0 %3805
    %3807 = vrot.lane.b32.xlu0 %v2630, 80
    %v3808 = vpop.permute.xlu0 %3807
    %v3811 = vsel %vm124, %v3806, 0.0
    %3812 = vadd.xlane.f32.xlu0 %v3811
    %v3813 = vpop.xlane.xlu0 %3812
    %v3814 = vsel %vm124, %v3808, 0.0
    %3815 = vadd.xlane.f32.xlu0 %v3814
    %v3816 = vpop.xlane.xlu0 %3815
    %v3817 = vmul.f32 %v208, %v3801
    %v3818 = vmul.f32 %v209, %v3804
    %3819 = vrot.lane.b32.xlu0 %v2421, 80
    %v3820 = vpop.permute.xlu0 %3819
    %3821 = vrot.lane.b32.xlu0 %v2509, 80
    %v3822 = vpop.permute.xlu0 %3821
    %v3823 = vsel %vm124, %v3820, 0
    %v3825 = vsel %vm124, %v3822, 0
    %3827 = vmatprep.subr.mxu0 0.0
    %3828 = vmatpush1.xpose.msra.mxu0 %v3825
    %3829 = vmatprep.subr.mxu0 0.0
    %3830 = vmatpush1.xpose.msra.mxu0 0.0
    %3831 = vmatprep.subr.mxu0 0.0
    %3832 = vmatpush1.xpose.msra.mxu0 0.0
    %3833 = vmatprep.subr.mxu0 0.0
    %3834 = vmatpush1.xpose.msra.mxu0 0.0
    %3835 = vmatprep.subr.mxu0 0.0
    %3836 = vmatpush1.xpose.msra.mxu0 0.0
    %3837 = vmatprep.subr.mxu0 0.0
    %3838 = vmatpush1.xpose.msra.mxu0 0.0
    %3839 = vmatprep.subr.mxu0 0.0
    %3840 = vmatpush1.xpose.msra.mxu0 0.0
    %3841 = vmatprep.subr.mxu0 0.0
    %3842 = vmatpush1.xpose.msra.mxu0 0.0
    %3843 = vmatprep.subr.mxu0 0.0
    %3844 = vmatpush1.xpose.msra.mxu0 0.0
    %3845 = vmatprep.subr.mxu0 0.0
    %3846 = vmatpush1.xpose.msra.mxu0 0.0
    %3847 = vmatprep.subr.mxu0 0.0
    %3848 = vmatpush1.xpose.msra.mxu0 0.0
    %3849 = vmatprep.subr.mxu0 0.0
    %3850 = vmatpush1.xpose.msra.mxu0 0.0
    %3851 = vmatprep.subr.mxu0 0.0
    %3852 = vmatpush1.xpose.msra.mxu0 0.0
    %3853 = vmatprep.subr.mxu0 0.0
    %3854 = vmatpush1.xpose.msra.mxu0 0.0
    %3855 = vmatprep.subr.mxu0 0.0
    %3856 = vmatpush1.xpose.msra.mxu0 0.0
    %3857 = vmatprep.subr.mxu0 0.0
    %3858 = vmatpush1.xpose.msra.mxu0 0.0
    %3859 = vmatprep.subr.mxu0 0.0
    %3860 = vmatpush1.xpose.msra.mxu0 0.0
    %3861 = vmatprep.subr.mxu0 0.0
    %3862 = vmatpush1.xpose.msra.mxu0 0.0
    %3863 = vmatprep.subr.mxu0 0.0
    %3864 = vmatpush1.xpose.msra.mxu0 0.0
    %3865 = vmatprep.subr.mxu0 0.0
    %3866 = vmatpush1.xpose.msra.mxu0 0.0
    %3867 = vmatprep.subr.mxu0 0.0
    %3868 = vmatpush1.xpose.msra.mxu0 0.0
    %3869 = vmatprep.subr.mxu0 0.0
    %3870 = vmatpush1.xpose.msra.mxu0 0.0
    %3871 = vmatprep.subr.mxu0 0.0
    %3872 = vmatpush1.xpose.msra.mxu0 0.0
    %3873 = vmatprep.subr.mxu0 0.0
    %3874 = vmatpush1.xpose.msra.mxu0 0.0
    %3875 = vmatprep.subr.mxu0 0.0
    %3876 = vmatpush1.xpose.msra.mxu0 0.0
    %3877 = vmatprep.subr.mxu0 0.0
    %3878 = vmatpush1.xpose.msra.mxu0 0.0
    %3879 = vmatprep.subr.mxu0 0.0
    %3880 = vmatpush1.xpose.msra.mxu0 0.0
    %3881 = vmatprep.subr.mxu0 0.0
    %3882 = vmatpush1.xpose.msra.mxu0 0.0
    %3883 = vmatprep.subr.mxu0 0.0
    %3884 = vmatpush1.xpose.msra.mxu0 0.0
    %3885 = vmatprep.subr.mxu0 0.0
    %3886 = vmatpush1.xpose.msra.mxu0 0.0
    %3887 = vmatprep.subr.mxu0 0.0
    %3888 = vmatpush1.xpose.msra.mxu0 0.0
    %3889 = vmatprep.subr.mxu0 0.0
    %3890 = vmatpush1.xpose.msra.mxu0 0.0
    %3891 = vmatprep.mubr.f32.mxu0 0.0
    %3892 = vmatmul.mubr.f32.gmra.mrb[0].mxu0 %v3823
    %v3893 = vpop.f32.mrb[0].mxu0
    %v3894 = vadd.f32 %v3817, %v3893
    %v3895 = vpop.f32.mrb[0].mxu0
    %3896 = vdwg.mxu0
    %3897 = vrot.lane.b32.xlu0 %v2426, 80
    %v3898 = vpop.permute.xlu0 %3897
    %3899 = vrot.lane.b32.xlu0 %v2514, 80
    %v3900 = vpop.permute.xlu0 %3899
    %v3901 = vsel %vm124, %v3898, 0
    %v3903 = vsel %vm124, %v3900, 0
    %3905 = vmatprep.subr.mxu0 0.0
    %3906 = vmatpush1.xpose.msra.mxu0 %v3903
    %3907 = vmatprep.subr.mxu0 0.0
    %3908 = vmatpush1.xpose.msra.mxu0 0.0
    %3909 = vmatprep.subr.mxu0 0.0
    %3910 = vmatpush1.xpose.msra.mxu0 0.0
    %3911 = vmatprep.subr.mxu0 0.0
    %3912 = vmatpush1.xpose.msra.mxu0 0.0
    %3913 = vmatprep.subr.mxu0 0.0
    %3914 = vmatpush1.xpose.msra.mxu0 0.0
    %3915 = vmatprep.subr.mxu0 0.0
    %3916 = vmatpush1.xpose.msra.mxu0 0.0
    %3917 = vmatprep.subr.mxu0 0.0
    %3918 = vmatpush1.xpose.msra.mxu0 0.0
    %3919 = vmatprep.subr.mxu0 0.0
    %3920 = vmatpush1.xpose.msra.mxu0 0.0
    %3921 = vmatprep.subr.mxu0 0.0
    %3922 = vmatpush1.xpose.msra.mxu0 0.0
    %3923 = vmatprep.subr.mxu0 0.0
    %3924 = vmatpush1.xpose.msra.mxu0 0.0
    %3925 = vmatprep.subr.mxu0 0.0
    %3926 = vmatpush1.xpose.msra.mxu0 0.0
    %3927 = vmatprep.subr.mxu0 0.0
    %3928 = vmatpush1.xpose.msra.mxu0 0.0
    %3929 = vmatprep.subr.mxu0 0.0
    %3930 = vmatpush1.xpose.msra.mxu0 0.0
    %3931 = vmatprep.subr.mxu0 0.0
    %3932 = vmatpush1.xpose.msra.mxu0 0.0
    %3933 = vmatprep.subr.mxu0 0.0
    %3934 = vmatpush1.xpose.msra.mxu0 0.0
    %3935 = vmatprep.subr.mxu0 0.0
    %3936 = vmatpush1.xpose.msra.mxu0 0.0
    %3937 = vmatprep.subr.mxu0 0.0
    %3938 = vmatpush1.xpose.msra.mxu0 0.0
    %3939 = vmatprep.subr.mxu0 0.0
    %3940 = vmatpush1.xpose.msra.mxu0 0.0
    %3941 = vmatprep.subr.mxu0 0.0
    %3942 = vmatpush1.xpose.msra.mxu0 0.0
    %3943 = vmatprep.subr.mxu0 0.0
    %3944 = vmatpush1.xpose.msra.mxu0 0.0
    %3945 = vmatprep.subr.mxu0 0.0
    %3946 = vmatpush1.xpose.msra.mxu0 0.0
    %3947 = vmatprep.subr.mxu0 0.0
    %3948 = vmatpush1.xpose.msra.mxu0 0.0
    %3949 = vmatprep.subr.mxu0 0.0
    %3950 = vmatpush1.xpose.msra.mxu0 0.0
    %3951 = vmatprep.subr.mxu0 0.0
    %3952 = vmatpush1.xpose.msra.mxu0 0.0
    %3953 = vmatprep.subr.mxu0 0.0
    %3954 = vmatpush1.xpose.msra.mxu0 0.0
    %3955 = vmatprep.subr.mxu0 0.0
    %3956 = vmatpush1.xpose.msra.mxu0 0.0
    %3957 = vmatprep.subr.mxu0 0.0
    %3958 = vmatpush1.xpose.msra.mxu0 0.0
    %3959 = vmatprep.subr.mxu0 0.0
    %3960 = vmatpush1.xpose.msra.mxu0 0.0
    %3961 = vmatprep.subr.mxu0 0.0
    %3962 = vmatpush1.xpose.msra.mxu0 0.0
    %3963 = vmatprep.subr.mxu0 0.0
    %3964 = vmatpush1.xpose.msra.mxu0 0.0
    %3965 = vmatprep.subr.mxu0 0.0
    %3966 = vmatpush1.xpose.msra.mxu0 0.0
    %3967 = vmatprep.subr.mxu0 0.0
    %3968 = vmatpush1.xpose.msra.mxu0 0.0
    %3969 = vmatprep.mubr.f32.mxu0 0.0
    %3970 = vmatmul.mubr.f32.gmra.mrb[0].mxu0 %v3901
    %v3971 = vpop.f32.mrb[0].mxu0
    %v3972 = vadd.f32 %v3818, %v3971
    %v3973 = vpop.f32.mrb[0].mxu0
    %3974 = vdwg.mxu0
    %v3975 = vmul.f32 %v704, %v3813
    %v3976 = vmul.f32 %v705, %v3816
    %v3977 = vadd.f32 %v3894, %v3975
    %v3978 = vadd.f32 %v3972, %v3976
    %v3979 = vmul.f32 %v3977, 0.25
    %v3980 = vmul.f32 %v3978, 0.25
    %v3981 = vsel %vm712, %v3979, -inf
    %3982 = vmax.xlane.f32.xlu0 %v3981
    %v3983 = vpop.xlane.xlu0 %3982
    %v3984 = vsel %vm712, %v3980, -inf
    %3985 = vmax.xlane.f32.xlu0 %v3984
    %v3986 = vpop.xlane.xlu0 %3985
    %v3987 = vsub.f32 %v3979, %v3983
    %v3988 = vsub.f32 %v3980, %v3986
    %v3989 = vmul.f32 %v3987, 1.442695
    %v3990 = vpow.pop %v3989
    %v3991 = vmul.f32 %v3988, 1.442695
    %v3992 = vpow.pop %v3991
    %v3993 = vsel %vm712, %v3990, 0.0
    %3994 = vadd.xlane.f32.xlu0 %v3993
    %v3995 = vpop.xlane.xlu0 %3994
    %v3996 = vsel %vm712, %v3992, 0.0
    %3997 = vadd.xlane.f32.xlu0 %v3996
    %v3998 = vpop.xlane.xlu0 %3997
    %v3999 = vrcp.pop %v3995
    %v4000 = vrcp.pop %v3998
    %v4001 = vmul.f32 %v3990, %v3999
    %v4002 = vmul.f32 %v3992, %v4000
    %v4003 = vmul.f32 %v4001, %v208
    %v4004 = vmul.f32 %v4002, %v209
    %v4005 = vsel %vm712, %v4003, 0.0
    %4006 = vadd.xlane.f32.xlu0 %v4005
    %v4007 = vpop.xlane.xlu0 %4006
    %v4008 = vsel %vm712, %v4004, 0.0
    %4009 = vadd.xlane.f32.xlu0 %v4008
    %v4010 = vpop.xlane.xlu0 %4009
    %v4011 = vsel %vm712, %v4001, 0.0
    %4012 = vadd.xlane.f32.xlu0 %v4011
    %v4013 = vpop.xlane.xlu0 %4012
    %v4014 = vsel %vm712, %v4002, 0.0
    %4015 = vadd.xlane.f32.xlu0 %v4014
    %v4016 = vpop.xlane.xlu0 %4015
    %v4017 = vmul.f32 %v4007, %v2613
    %v4018 = vmul.f32 %v4010, %v2613
    %4019 = vrot.lane.b32.xlu0 %v2597, 80
    %v4020 = vpop.permute.xlu0 %4019
    %4023 = vrot.lane.b32.xlu0 %v4017, 80
    %v4024 = vpop.permute.xlu0 %4023
    %v4027 = vsel %vm712, %v4001, 0
    %4029 = vmatprep.subr.mxu0 0.0
    %4030 = vmatpush1.msra.mxu0 %v4020
    %4031 = vmatprep.subr.mxu0 0.0
    %4032 = vmatpush1.msra.mxu0 0.0
    %4033 = vmatprep.subr.mxu0 0.0
    %4034 = vmatpush1.msra.mxu0 0.0
    %4035 = vmatprep.subr.mxu0 0.0
    %4036 = vmatpush1.msra.mxu0 0.0
    %4037 = vmatprep.subr.mxu0 0.0
    %4038 = vmatpush1.msra.mxu0 0.0
    %4039 = vmatprep.subr.mxu0 0.0
    %4040 = vmatpush1.msra.mxu0 0.0
    %4041 = vmatprep.subr.mxu0 0.0
    %4042 = vmatpush1.msra.mxu0 0.0
    %4043 = vmatprep.subr.mxu0 0.0
    %4044 = vmatpush1.msra.mxu0 0.0
    %4045 = vmatprep.subr.mxu0 0.0
    %4046 = vmatpush1.msra.mxu0 0.0
    %4047 = vmatprep.subr.mxu0 0.0
    %4048 = vmatpush1.msra.mxu0 0.0
    %4049 = vmatprep.subr.mxu0 0.0
    %4050 = vmatpush1.msra.mxu0 0.0
    %4051 = vmatprep.subr.mxu0 0.0
    %4052 = vmatpush1.msra.mxu0 0.0
    %4053 = vmatprep.subr.mxu0 0.0
    %4054 = vmatpush1.msra.mxu0 0.0
    %4055 = vmatprep.subr.mxu0 0.0
    %4056 = vmatpush1.msra.mxu0 0.0
    %4057 = vmatprep.subr.mxu0 0.0
    %4058 = vmatpush1.msra.mxu0 0.0
    %4059 = vmatprep.subr.mxu0 0.0
    %4060 = vmatpush1.msra.mxu0 0.0
    %4061 = vmatprep.subr.mxu0 0.0
    %4062 = vmatpush1.msra.mxu0 0.0
    %4063 = vmatprep.subr.mxu0 0.0
    %4064 = vmatpush1.msra.mxu0 0.0
    %4065 = vmatprep.subr.mxu0 0.0
    %4066 = vmatpush1.msra.mxu0 0.0
    %4067 = vmatprep.subr.mxu0 0.0
    %4068 = vmatpush1.msra.mxu0 0.0
    %4069 = vmatprep.subr.mxu0 0.0
    %4070 = vmatpush1.msra.mxu0 0.0
    %4071 = vmatprep.subr.mxu0 0.0
    %4072 = vmatpush1.msra.mxu0 0.0
    %4073 = vmatprep.subr.mxu0 0.0
    %4074 = vmatpush1.msra.mxu0 0.0
    %4075 = vmatprep.subr.mxu0 0.0
    %4076 = vmatpush1.msra.mxu0 0.0
    %4077 = vmatprep.subr.mxu0 0.0
    %4078 = vmatpush1.msra.mxu0 0.0
    %4079 = vmatprep.subr.mxu0 0.0
    %4080 = vmatpush1.msra.mxu0 0.0
    %4081 = vmatprep.subr.mxu0 0.0
    %4082 = vmatpush1.msra.mxu0 0.0
    %4083 = vmatprep.subr.mxu0 0.0
    %4084 = vmatpush1.msra.mxu0 0.0
    %4085 = vmatprep.subr.mxu0 0.0
    %4086 = vmatpush1.msra.mxu0 0.0
    %4087 = vmatprep.subr.mxu0 0.0
    %4088 = vmatpush1.msra.mxu0 0.0
    %4089 = vmatprep.subr.mxu0 0.0
    %4090 = vmatpush1.msra.mxu0 0.0
    %4091 = vmatprep.subr.mxu0 0.0
    %4092 = vmatpush1.msra.mxu0 0.0
    %4093 = vmatprep.mubr.f32.mxu0 0.0
    %4094 = vmatmul.mubr.f32.gmra.mrb[0].mxu0 %v4027
    %v4095 = vpop.f32.mrb[0].mxu0
    %v4096 = vadd.f32 %v4024, %v4095
    %v4097 = vpop.f32.mrb[0].mxu0
    %4098 = vdwg.mxu0
    %4099 = vrot.lane.b32.xlu0 %v2602, 80
    %v4100 = vpop.permute.xlu0 %4099
    %4103 = vrot.lane.b32.xlu0 %v4018, 80
    %v4104 = vpop.permute.xlu0 %4103
    %v4107 = vsel %vm712, %v4002, 0
    %4109 = vmatprep.subr.mxu0 0.0
    %4110 = vmatpush1.msra.mxu0 %v4100
    %4111 = vmatprep.subr.mxu0 0.0
    %4112 = vmatpush1.msra.mxu0 0.0
    %4113 = vmatprep.subr.mxu0 0.0
    %4114 = vmatpush1.msra.mxu0 0.0
    %4115 = vmatprep.subr.mxu0 0.0
    %4116 = vmatpush1.msra.mxu0 0.0
    %4117 = vmatprep.subr.mxu0 0.0
    %4118 = vmatpush1.msra.mxu0 0.0
    %4119 = vmatprep.subr.mxu0 0.0
    %4120 = vmatpush1.msra.mxu0 0.0
    %4121 = vmatprep.subr.mxu0 0.0
    %4122 = vmatpush1.msra.mxu0 0.0
    %4123 = vmatprep.subr.mxu0 0.0
    %4124 = vmatpush1.msra.mxu0 0.0
    %4125 = vmatprep.subr.mxu0 0.0
    %4126 = vmatpush1.msra.mxu0 0.0
    %4127 = vmatprep.subr.mxu0 0.0
    %4128 = vmatpush1.msra.mxu0 0.0
    %4129 = vmatprep.subr.mxu0 0.0
    %4130 = vmatpush1.msra.mxu0 0.0
    %4131 = vmatprep.subr.mxu0 0.0
    %4132 = vmatpush1.msra.mxu0 0.0
    %4133 = vmatprep.subr.mxu0 0.0
    %4134 = vmatpush1.msra.mxu0 0.0
    %4135 = vmatprep.subr.mxu0 0.0
    %4136 = vmatpush1.msra.mxu0 0.0
    %4137 = vmatprep.subr.mxu0 0.0
    %4138 = vmatpush1.msra.mxu0 0.0
    %4139 = vmatprep.subr.mxu0 0.0
    %4140 = vmatpush1.msra.mxu0 0.0
    %4141 = vmatprep.subr.mxu0 0.0
    %4142 = vmatpush1.msra.mxu0 0.0
    %4143 = vmatprep.subr.mxu0 0.0
    %4144 = vmatpush1.msra.mxu0 0.0
    %4145 = vmatprep.subr.mxu0 0.0
    %4146 = vmatpush1.msra.mxu0 0.0
    %4147 = vmatprep.subr.mxu0 0.0
    %4148 = vmatpush1.msra.mxu0 0.0
    %4149 = vmatprep.subr.mxu0 0.0
    %4150 = vmatpush1.msra.mxu0 0.0
    %4151 = vmatprep.subr.mxu0 0.0
    %4152 = vmatpush1.msra.mxu0 0.0
    %4153 = vmatprep.subr.mxu0 0.0
    %4154 = vmatpush1.msra.mxu0 0.0
    %4155 = vmatprep.subr.mxu0 0.0
    %4156 = vmatpush1.msra.mxu0 0.0
    %4157 = vmatprep.subr.mxu0 0.0
    %4158 = vmatpush1.msra.mxu0 0.0
    %4159 = vmatprep.subr.mxu0 0.0
    %4160 = vmatpush1.msra.mxu0 0.0
    %4161 = vmatprep.subr.mxu0 0.0
    %4162 = vmatpush1.msra.mxu0 0.0
    %4163 = vmatprep.subr.mxu0 0.0
    %4164 = vmatpush1.msra.mxu0 0.0
    %4165 = vmatprep.subr.mxu0 0.0
    %4166 = vmatpush1.msra.mxu0 0.0
    %4167 = vmatprep.subr.mxu0 0.0
    %4168 = vmatpush1.msra.mxu0 0.0
    %4169 = vmatprep.subr.mxu0 0.0
    %4170 = vmatpush1.msra.mxu0 0.0
    %4171 = vmatprep.subr.mxu0 0.0
    %4172 = vmatpush1.msra.mxu0 0.0
    %4173 = vmatprep.mubr.f32.mxu0 0.0
    %4174 = vmatmul.mubr.f32.gmra.mrb[0].mxu0 %v4107
    %v4175 = vpop.f32.mrb[0].mxu0
    %v4176 = vadd.f32 %v4104, %v4175
    %v4177 = vpop.f32.mrb[0].mxu0
    %4178 = vdwg.mxu0
    %v4179 = vsub.f32 %v4013, %v4007
    %v4180 = vsub.f32 %v4016, %v4010
    %v4181 = vmul.f32 %v4179, %v2627
    %v4182 = vmul.f32 %v4180, %v2627
    %4185 = vrot.lane.b32.xlu0 %v4181, 80
    %v4186 = vpop.permute.xlu0 %4185
    %4187 = vrot.lane.b32.xlu0 %v4182, 80
    %v4188 = vpop.permute.xlu0 %4187
    %v4191 = vadd.f32 %v4096, %v4186
    %v4192 = vadd.f32 %v4176, %v4188
    %4195 = vrot.lane.b32.xlu0 %v3391, 16
    %v4196 = vpop.permute.xlu0 %4195
    %4197 = vrot.lane.b32.xlu0 %v3392, 16
    %v4198 = vpop.permute.xlu0 %4197
    %4203 = vrot.lane.b32.xlu0 %v3791, 32
    %v4204 = vpop.permute.xlu0 %4203
    %4205 = vrot.lane.b32.xlu0 %v3792, 32
    %v4206 = vpop.permute.xlu0 %4205
    %4211 = vrot.lane.b32.xlu0 %v4191, 48
    %v4212 = vpop.permute.xlu0 %4211
    %4213 = vrot.lane.b32.xlu0 %v4192, 48
    %v4214 = vpop.permute.xlu0 %4213
    %v4217 = vsel %vm124, %v2985, %v4196
    %v4218 = vsel %vm124, %v2986, %v4198
    %v4219 = vsel %vm210, %v4217, %v4204
    %v4220 = vsel %vm210, %v4218, %v4206
    %v4221 = vsel %vm2137, %v4219, %v4212
    %v4222 = vsel %vm2137, %v4220, %v4214
    %s4223 = scalar_lea.vmem %s14, 64
    %v4224 = vld [vmem:[%s4223] sm:$0xff]
    %v4225 = vld [vmem:[%s4223 + $0x8] sm:$0xff]
    %v4226 = vld [vmem:[%s4223 + $0x10] sm:$0xff]
    %v4227 = vld [vmem:[%s4223 + $0x18] sm:$0xff]
    %v4228 = vld [vmem:[%s4223 + $0x20] sm:$0xff]
    %v4229 = vld [vmem:[%s4223 + $0x28] sm:$0xff]
    %v4230 = vld [vmem:[%s4223 + $0x30] sm:$0xff]
    %v4231 = vld [vmem:[%s4223 + $0x38] sm:$0xff]
    %s4232 = scalar_lea.vmem %s15, 1
    %v4233 = vld [vmem:[%s4232] sm:$0x1]
    %v4235 = vlaneseq
    %v4236 = vshrl.u32 %v4235, 7
    %v4237 = vsub.s32 0, %v4236
    %v4238 = vrot.slane %v4233, %v4237
    %v4241 = vsel %vm2155, %v4221, 0
    %v4244 = vsel %vm2155, %v4222, 0
    %4246 = vmatprep.subr.mxu0 0.0
    %4247 = vmatpush1.msra.mxu0 %v4224
    %4248 = vmatprep.subr.mxu0 0.0
    %4249 = vmatpush1.msra.mxu0 %v4225
    %4250 = vmatprep.subr.mxu0 0.0
    %4251 = vmatpush1.msra.mxu0 %v4226
    %4252 = vmatprep.subr.mxu0 0.0
    %4253 = vmatpush1.msra.mxu0 %v4227
    %4254 = vmatprep.subr.mxu0 0.0
    %4255 = vmatpush1.msra.mxu0 %v4228
    %4256 = vmatprep.subr.mxu0 0.0
    %4257 = vmatpush1.msra.mxu0 %v4229
    %4258 = vmatprep.subr.mxu0 0.0
    %4259 = vmatpush1.msra.mxu0 %v4230
    %4260 = vmatprep.subr.mxu0 0.0
    %4261 = vmatpush1.msra.mxu0 %v4231
    %4262 = vmatprep.subr.mxu0 0.0
    %4263 = vmatpush1.msra.mxu0 0.0
    %4264 = vmatprep.subr.mxu0 0.0
    %4265 = vmatpush1.msra.mxu0 0.0
    %4266 = vmatprep.subr.mxu0 0.0
    %4267 = vmatpush1.msra.mxu0 0.0
    %4268 = vmatprep.subr.mxu0 0.0
    %4269 = vmatpush1.msra.mxu0 0.0
    %4270 = vmatprep.subr.mxu0 0.0
    %4271 = vmatpush1.msra.mxu0 0.0
    %4272 = vmatprep.subr.mxu0 0.0
    %4273 = vmatpush1.msra.mxu0 0.0
    %4274 = vmatprep.subr.mxu0 0.0
    %4275 = vmatpush1.msra.mxu0 0.0
    %4276 = vmatprep.subr.mxu0 0.0
    %4277 = vmatpush1.msra.mxu0 0.0
    %4278 = vmatprep.subr.mxu0 0.0
    %4279 = vmatpush1.msra.mxu0 0.0
    %4280 = vmatprep.subr.mxu0 0.0
    %4281 = vmatpush1.msra.mxu0 0.0
    %4282 = vmatprep.subr.mxu0 0.0
    %4283 = vmatpush1.msra.mxu0 0.0
    %4284 = vmatprep.subr.mxu0 0.0
    %4285 = vmatpush1.msra.mxu0 0.0
    %4286 = vmatprep.subr.mxu0 0.0
    %4287 = vmatpush1.msra.mxu0 0.0
    %4288 = vmatprep.subr.mxu0 0.0
    %4289 = vmatpush1.msra.mxu0 0.0
    %4290 = vmatprep.subr.mxu0 0.0
    %4291 = vmatpush1.msra.mxu0 0.0
    %4292 = vmatprep.subr.mxu0 0.0
    %4293 = vmatpush1.msra.mxu0 0.0
    %4294 = vmatprep.subr.mxu0 0.0
    %4295 = vmatpush1.msra.mxu0 0.0
    %4296 = vmatprep.subr.mxu0 0.0
    %4297 = vmatpush1.msra.mxu0 0.0
    %4298 = vmatprep.subr.mxu0 0.0
    %4299 = vmatpush1.msra.mxu0 0.0
    %4300 = vmatprep.subr.mxu0 0.0
    %4301 = vmatpush1.msra.mxu0 0.0
    %4302 = vmatprep.subr.mxu0 0.0
    %4303 = vmatpush1.msra.mxu0 0.0
    %4304 = vmatprep.subr.mxu0 0.0
    %4305 = vmatpush1.msra.mxu0 0.0
    %4306 = vmatprep.subr.mxu0 0.0
    %4307 = vmatpush1.msra.mxu0 0.0
    %4308 = vmatprep.subr.mxu0 0.0
    %4309 = vmatpush1.msra.mxu0 0.0
    %4310 = vmatprep.mubr.f32.mxu0 0.0
    %4311 = vmatmul.mubr.f32.gmra.mrb[0].mxu0 %v4241
    %v4312 = vpop.f32.mrb[0].mxu0
    %v4313 = vadd.f32 %v4238, %v4312
    %v4314 = vpop.f32.mrb[0].mxu0
    %4315 = vmatprep.mubr.f32.mxu0 0.0
    %4316 = vmatmul.mubr.f32.gmra.mrb[0].mxu0 %v4244
    %v4317 = vpop.f32.mrb[0].mxu0
    %v4318 = vadd.f32 %v4238, %v4317
    %v4319 = vpop.f32.mrb[0].mxu0
    %4320 = vdwg.mxu0
    %s4321 = scalar_lea.vmem %s16, 1
    %v4322 = vld [vmem:[%s4321] sm:$0x1]
    %v4324 = vlaneseq
    %v4325 = vshrl.u32 %v4324, 7
    %v4326 = vsub.s32 0, %v4325
    %v4327 = vrot.slane %v4322, %v4326
    %v4329 = vmul.f32 %v4313, %v4327
    %v4330 = vmul.f32 %v4318, %v4327
    %v4331 = vsel %vm210, %v4329, 0.0
    %4332 = vadd.xlane.f32.xlu0 %v4331
    %v4333 = vpop.xlane.xlu0 %4332
    %v4334 = vsel %vm210, %v4330, 0.0
    %4335 = vadd.xlane.f32.xlu0 %v4334
    %v4336 = vpop.xlane.xlu0 %4335
    %s4337 = scalar_lea.vmem %s17, 1
    %v4338 = vld [vmem:[%s4337] sm:$0x1]
    %v4340 = vlaneseq
    %v4341 = vshrl.u32 %v4340, 7
    %v4342 = vsub.s32 0, %v4341
    %v4343 = vrot.slane %v4338, %v4342
    %v4345 = vmul.f32 %v2287, %v4343
    %v4346 = vmul.f32 %v2288, %v4343
    %v4347 = vsel %vm210, %v4345, 0.0
    %4348 = vadd.xlane.f32.xlu0 %v4347
    %v4349 = vpop.xlane.xlu0 %4348
    %v4350 = vsel %vm210, %v4346, 0.0
    %4351 = vadd.xlane.f32.xlu0 %v4350
    %v4352 = vpop.xlane.xlu0 %4351
    %v4353 = vadd.f32 %v4333, %v4349
    %v4354 = vadd.f32 %v4336, %v4352
    %v4355 = vxor.u32 %v4353, 2147483648
    %v4356 = vxor.u32 %v4354, 2147483648
    %v4357 = vmul.f32 %v4355, 1.442695
    %v4358 = vpow.pop %v4357
    %v4359 = vmul.f32 %v4356, 1.442695
    %v4360 = vpow.pop %v4359
    %v4361 = vadd.f32 %v4358, 1.0
    %v4362 = vadd.f32 %v4360, 1.0
    %v4363 = vrcp.pop %v4361
    %v4364 = vmul.f32 1.0, %v4363
    %v4365 = vrcp.pop %v4362
    %v4366 = vmul.f32 1.0, %v4365
    %v4367 = vmul.f32 %v4313, %v4364
    %v4368 = vmul.f32 %v4318, %v4366
    %v4369 = vsub.f32 1.0, %v4364
    %v4370 = vsub.f32 1.0, %v4366
    %v4371 = vmul.f32 %v2287, %v4369
    %v4372 = vmul.f32 %v2288, %v4370
    %v4373 = vadd.f32 %v4367, %v4371
    %v4374 = vadd.f32 %v4368, %v4372
    %4375 = vst.msk [vmem:[#allocation10] sm:$0xff] %vm210, %v4373
    %4376 = vst.msk [vmem:[#allocation10 + $0x8] sm:$0xff] %vm210, %v4374
    // Predicated region
    $region90: #{tpu_custom_call.1} parent=1 // pred_check
      _
    $region91: #{tpu_custom_call.1} parent=1 // pred_check_branch
      %4378 = sbr.rel (0) target = $region93
    $region92: #{tpu_custom_call.1} parent=1 // pred_region
      %s4380 = ssub.s32 256, 256
      %4381 = vsyncadd [#allocation4], %s4380
      %s4382 = sshll.u32 [#allocation10], 4
      %s4383 = int_to_ptr.vmem [resolvable:$true] %s4382
      %4388 = dma.vmem_to_hbm [thread:$0]  %s4383, 256, %s18, [#allocation4], 128, 128, 8
    $region93: #{tpu_custom_call.1} parent=1 // pred_fallthru
      _
    // Predicated region
    $region94: #{tpu_custom_call.1} parent=1 // pred_check
      _
    $region95: #{tpu_custom_call.1} parent=1 // pred_check_branch
      %4390 = sbr.rel (0) target = $region97
    $region96: #{tpu_custom_call.1} parent=1 // pred_region
      %4391 = dma.done [#allocation4], 256
    $region97: #{tpu_custom_call.1} parent=1 // pred_fallthru
      _
    %4392 = vsyncpa [#allocation3], 1
    %4393 = vsyncpa [#allocation6], 1
    %4394 = vsyncpa [#allocation9], 1
    %4395 = vsyncpa [#allocation4], 1

</llo_original>
